<compile_context>
chip_gen: v7x
topology: tpu7x:2x2x1
jax: 0.10.0
libtpu: 0.0.40
codegen_flags: <defaults>
</compile_context>

<pallas_src>
import functools

import jax
import jax.numpy as jnp
from jax.experimental import pallas as pl
from jax.experimental.pallas import tpu as pltpu


# -----------------------------------------------------------------------------
# Fused decoder kernel (one batch element per grid step)
# -----------------------------------------------------------------------------
def _decoder_kernel(q_ref, m_ref, qpos_ref, mpos_ref,
                    # self-attention weights (full (C,C) layout)
                    swq, sbq, swk, sbk, swv, sbv, swo, sbo,
                    # cross-attention weights
                    cwq, cbq, cwk, cbk, cwv, cbv, cwo, cbo,
                    # feed-forward
                    w1_ref, b1_ref, w2_ref, b2_ref,
                    # layer norms
                    g1_ref, be1_ref, g2_ref, be2_ref, g3_ref, be3_ref,
                    # output
                    o_ref,
                    # scratch: per-head contexts concatenated along lanes
                    ctx_ref,
                    *, num_head, head_dim):
    H, D = num_head, head_dim
    scale = 1.0 / (D ** 0.5)

    def mha(xq, xk, xv, wq, bq, wk, bk, wv, bv, wo, bo):
        # Lane-dense full-width projections: one (L,C)@(C,C) MXU matmul each.
        Q = jnp.dot(xq, wq[...], preferred_element_type=jnp.float32) + bq[...]
        Q = Q * scale      # fold 1/sqrt(D) into Q (L*C elems, not H*L*LK scores)
        K = jnp.dot(xk, wk[...], preferred_element_type=jnp.float32) + bk[...]
        V = jnp.dot(xv, wv[...], preferred_element_type=jnp.float32) + bv[...]
        # Heads separated only for the score/context matmuls, via static lane
        # slices — no activation reshape / broadcast relayouts.
        for h in range(H):
            sl = slice(h * D, (h + 1) * D)
            Qh, Kh, Vh = Q[:, sl], K[:, sl], V[:, sl]
            s = jnp.einsum("qd,kd->qk", Qh, Kh,
                           preferred_element_type=jnp.float32)        # (LQ, LK)
            s = s - jnp.max(s, axis=-1, keepdims=True)
            p = jnp.exp(s)
            p = p / jnp.sum(p, axis=-1, keepdims=True)                # exact softmax
            ctx_ref[:, sl] = jnp.dot(p, Vh, preferred_element_type=jnp.float32)
        # Fused output projection: single (L,C)@(C,C) matmul over all heads.
        return jnp.dot(ctx_ref[...], wo[...],
                       preferred_element_type=jnp.float32) + bo[...]

    def add_ln(x, res, g, b):
        # One-pass LayerNorm statistics (sum / sum-of-squares).
        y = x + res
        inv_c = 1.0 / y.shape[-1]
        mu = jnp.sum(y, axis=-1, keepdims=True) * inv_c
        ex2 = jnp.sum(y * y, axis=-1, keepdims=True) * inv_c
        var = ex2 - mu * mu
        return (y - mu) * jax.lax.rsqrt(var + 1e-5) * g[...] + b[...]

    q = q_ref[...].astype(jnp.float32)        # (LEN, C)
    m = m_ref[...].astype(jnp.float32)        # (NHW, C)
    qp = qpos_ref[...].astype(jnp.float32)    # (LEN, C)
    mp = mpos_ref[...].astype(jnp.float32)    # (NHW, C)

    # Self-attention + LN1   (dropout = identity in eval mode)
    q_pe = q + qp
    tgt = mha(q_pe, q_pe, q, swq, sbq, swk, sbk, swv, sbv, swo, sbo)
    tgt = add_ln(q, tgt, g1_ref, be1_ref)

    # Cross-attention + LN2
    tgt1 = mha(tgt + qp, m + mp, m, cwq, cbq, cwk, cbk, cwv, cbv, cwo, cbo)
    tgt = add_ln(tgt, tgt1, g2_ref, be2_ref)

    # FFN + LN3
    hdn = jnp.dot(tgt, w1_ref[...], preferred_element_type=jnp.float32) + b1_ref[...]
    hdn = jnp.maximum(hdn, 0.0)
    tgt2 = jnp.dot(hdn, w2_ref[...], preferred_element_type=jnp.float32) + b2_ref[...]
    tgt = add_ln(tgt, tgt2, g3_ref, be3_ref)

    o_ref[...] = tgt.astype(o_ref.dtype)


# -----------------------------------------------------------------------------
# Wrapper
# -----------------------------------------------------------------------------
def _rep(shape):
    """BlockSpec for an array replicated across the batch grid (full-array block)."""
    zeros = (0,) * len(shape)
    return pl.BlockSpec(shape, lambda b, _z=zeros: _z)


def decoder_forward(params, query, memory, num_head):
    B, LEN, C = query.shape
    _, NHW, _ = memory.shape
    assert C % num_head == 0
    D = C // num_head
    F = params["ffn"][0].shape[1]

    pe = positional_encoding(max(LEN, NHW), C)
    qpos = pe[:LEN]   # (LEN, C) — broadcast over batch inside the kernel
    mpos = pe[:NHW]   # (NHW, C)

    sa = params["self_attn"]          # full (C,C) weights — no per-head splitting
    ca = params["cross_attn"]
    w1, b1, w2, b2 = params["ffn"]
    g1, be1 = params["ln1"]
    g2, be2 = params["ln2"]
    g3, be3 = params["ln3"]

    kernel = functools.partial(_decoder_kernel, num_head=num_head, head_dim=D)

    # Advisory cost estimate for XLA scheduling around the custom call.
    def attn_flops(lq, lk):
        proj = 2 * (2 * lq + 2 * lk) * C * C
        scores = 2 * 2 * lq * lk * C
        return proj + scores
    flops = B * (attn_flops(LEN, LEN) + attn_flops(LEN, NHW) + 2 * 2 * LEN * C * F)
    transcendentals = B * num_head * (LEN * LEN + LEN * NHW)
    weights = sa + ca + (w1, b1, w2, b2, g1, be1, g2, be2, g3, be3)
    bytes_accessed = 4 * (int(query.size) + int(memory.size) + int(qpos.size)
                          + int(mpos.size) + sum(int(p.size) for p in weights)
                          + B * LEN * C)

    in_specs = [
        pl.BlockSpec((None, LEN, C), lambda b: (b, 0, 0)),   # query
        pl.BlockSpec((None, NHW, C), lambda b: (b, 0, 0)),   # memory
        _rep((LEN, C)), _rep((NHW, C)),                      # positional encodings
        # self-attention: wq,bq, wk,bk, wv,bv, wo,bo
        _rep((C, C)), _rep((1, C)), _rep((C, C)), _rep((1, C)),
        _rep((C, C)), _rep((1, C)), _rep((C, C)), _rep((1, C)),
        # cross-attention
        _rep((C, C)), _rep((1, C)), _rep((C, C)), _rep((1, C)),
        _rep((C, C)), _rep((1, C)), _rep((C, C)), _rep((1, C)),
        # feed-forward
        _rep((C, F)), _rep((1, F)), _rep((F, C)), _rep((1, C)),
        # layer norms
        _rep((1, C)), _rep((1, C)),
        _rep((1, C)), _rep((1, C)),
        _rep((1, C)), _rep((1, C)),
    ]

    return pl.pallas_call(
        kernel,
        out_shape=jax.ShapeDtypeStruct((B, LEN, C), query.dtype),
        grid=(B,),
        in_specs=in_specs,
        out_specs=pl.BlockSpec((None, LEN, C), lambda b: (b, 0, 0)),
        scratch_shapes=[pltpu.VMEM((LEN, C), jnp.float32)],   # per-head ctx buffer
        compiler_params=pltpu.CompilerParams(
            dimension_semantics=("parallel",),
            vmem_limit_bytes=32 * 1024 * 1024),
        cost_estimate=pl.CostEstimate(flops=int(flops),
                                      transcendentals=int(transcendentals),
                                      bytes_accessed=int(bytes_accessed)),
    )(query, memory, qpos, mpos, *sa, *ca,
      w1, b1, w2, b2, g1, be1, g2, be2, g3, be3)


# -----------------------------------------------------------------------------
# Parameter init + positional encoding (plain JAX glue)
# -----------------------------------------------------------------------------
def positional_encoding(max_len, embed_dim):
    # NOTE: assumes even embed_dim (as the PyTorch PE does).
    pos = jnp.arange(max_len, dtype=jnp.float32)[:, None]
    item = 10000.0 ** (jnp.arange(0, embed_dim, 2, dtype=jnp.float32) / embed_dim)
    ang = pos / item
    pe = jnp.zeros((max_len, embed_dim), jnp.float32)
    pe = pe.at[:, 0::2].set(jnp.sin(ang))
    pe = pe.at[:, 1::2].set(jnp.cos(ang))
    return pe  # (max_len, C)


def init_decoder_params(key, embed_dim, num_head, ffn_dim):
    """Deterministic parameter init. Linear weights stored as (in, out)."""
    keys = jax.random.split(key, 24)
    ki = iter(keys)

    def lin(in_dim, out_dim):
        w = jax.random.normal(next(ki), (in_dim, out_dim), jnp.float32) * 0.05
        b = jax.random.normal(next(ki), (1, out_dim), jnp.float32) * 0.05
        return w, b

    def mha_params():
        wq, bq = lin(embed_dim, embed_dim)
        wk, bk = lin(embed_dim, embed_dim)
        wv, bv = lin(embed_dim, embed_dim)
        wo, bo = lin(embed_dim, embed_dim)
        return (wq, bq, wk, bk, wv, bv, wo, bo)

    params = {
        "self_attn": mha_params(),
        "cross_attn": mha_params(),
        "ffn": lin(embed_dim, ffn_dim) + lin(ffn_dim, embed_dim),
        "ln1": (jnp.ones((1, embed_dim), jnp.float32), jnp.zeros((1, embed_dim), jnp.float32)),
        "ln2": (jnp.ones((1, embed_dim), jnp.float32), jnp.zeros((1, embed_dim), jnp.float32)),
        "ln3": (jnp.ones((1, embed_dim), jnp.float32), jnp.zeros((1, embed_dim), jnp.float32)),
    }
    # TODO(synk): `init_query` nn.Parameter is unused in the reference forward(); not materialized.
    return params


# -----------------------------------------------------------------------------
# Pure-JAX reference (for validation)
# -----------------------------------------------------------------------------
def _mha_ref(q, k, v, params, num_head):
    wq, bq, wk, bk, wv, bv, wo, bo = params
    B, LQ, C = q.shape
    LK = k.shape[1]
    D = C // num_head
    Q = (q @ wq + bq).reshape(B, LQ, num_head, D).transpose(0, 2, 1, 3)
    K = (k @ wk + bk).reshape(B, LK, num_head, D).transpose(0, 2, 1, 3)
    V = (v @ wv + bv).reshape(B, LK, num_head, D).transpose(0, 2, 1, 3)
    att = jax.nn.softmax(jnp.einsum("bhqd,bhkd->bhqk", Q, K) / (D ** 0.5), axis=-1)
    out = jnp.einsum("bhqk,bhkd->bhqd", att, V).transpose(0, 2, 1, 3).reshape(B, LQ, C)
    return out @ wo + bo


def _ln_ref(x, g, b):
    mu = jnp.mean(x, axis=-1, keepdims=True)
    var = jnp.mean((x - mu) ** 2, axis=-1, keepdims=True)
    return (x - mu) / jnp.sqrt(var + 1e-5) * g + b


def decoder_ref(params, query, memory, num_head):
    B, LEN, C = query.shape
    NHW = memory.shape[1]
    pe = positional_encoding(max(LEN, NHW), C)
    qp, mp = pe[:LEN][None], pe[:NHW][None]
    tgt = _mha_ref(query + qp, query + qp, query, params["self_attn"], num_head)
    tgt = _ln_ref(query + tgt, *params["ln1"])
    tgt1 = _mha_ref(tgt + qp, memory + mp, memory, params["cross_attn"], num_head)
    tgt = _ln_ref(tgt + tgt1, *params["ln2"])
    w1, b1, w2, b2 = params["ffn"]
    tgt2 = jnp.maximum(tgt @ w1 + b1, 0.0) @ w2 + b2
    tgt = _ln_ref(tgt + tgt2, *params["ln3"])
    return tgt


# -----------------------------------------------------------------------------
if __name__ == "__main__":
    B, LEN, NHW, C, NUM_HEAD, FFN = 2, 8, 16, 32, 4, 64

    key = jax.random.PRNGKey(0)
    kq, km, kp = jax.random.split(key, 3)
    query = jax.random.normal(kq, (B, LEN, C), jnp.float32)
    memory = jax.random.normal(km, (B, NHW, C), jnp.float32)
    params = init_decoder_params(kp, C, NUM_HEAD, FFN)

    out = decoder_forward(params, query, memory, NUM_HEAD)
    out = jax.block_until_ready(out)

    ref = decoder_ref(params, query, memory, NUM_HEAD)
    assert out.shape == (B, LEN, C)
    assert jnp.allclose(out, ref, atol=2e-3, rtol=2e-3), "mismatch vs pure-JAX reference"

    print("KERNEL_OK")
</pallas_src>

<mosaic_0001>
module attributes {stable_mosaic.version = 11 : i64} {
  func.func @_decoder_kernel(%arg0: i32, %arg1: memref<1x8x32xf32, #tpu.memory_space<vmem>>, %arg2: memref<1x16x32xf32, #tpu.memory_space<vmem>>, %arg3: memref<8x32xf32, #tpu.memory_space<vmem>>, %arg4: memref<16x32xf32, #tpu.memory_space<vmem>>, %arg5: memref<32x32xf32, #tpu.memory_space<vmem>>, %arg6: memref<1x32xf32, #tpu.memory_space<vmem>>, %arg7: memref<32x32xf32, #tpu.memory_space<vmem>>, %arg8: memref<1x32xf32, #tpu.memory_space<vmem>>, %arg9: memref<32x32xf32, #tpu.memory_space<vmem>>, %arg10: memref<1x32xf32, #tpu.memory_space<vmem>>, %arg11: memref<32x32xf32, #tpu.memory_space<vmem>>, %arg12: memref<1x32xf32, #tpu.memory_space<vmem>>, %arg13: memref<32x32xf32, #tpu.memory_space<vmem>>, %arg14: memref<1x32xf32, #tpu.memory_space<vmem>>, %arg15: memref<32x32xf32, #tpu.memory_space<vmem>>, %arg16: memref<1x32xf32, #tpu.memory_space<vmem>>, %arg17: memref<32x32xf32, #tpu.memory_space<vmem>>, %arg18: memref<1x32xf32, #tpu.memory_space<vmem>>, %arg19: memref<32x32xf32, #tpu.memory_space<vmem>>, %arg20: memref<1x32xf32, #tpu.memory_space<vmem>>, %arg21: memref<32x64xf32, #tpu.memory_space<vmem>>, %arg22: memref<1x64xf32, #tpu.memory_space<vmem>>, %arg23: memref<64x32xf32, #tpu.memory_space<vmem>>, %arg24: memref<1x32xf32, #tpu.memory_space<vmem>>, %arg25: memref<1x32xf32, #tpu.memory_space<vmem>>, %arg26: memref<1x32xf32, #tpu.memory_space<vmem>>, %arg27: memref<1x32xf32, #tpu.memory_space<vmem>>, %arg28: memref<1x32xf32, #tpu.memory_space<vmem>>, %arg29: memref<1x32xf32, #tpu.memory_space<vmem>>, %arg30: memref<1x32xf32, #tpu.memory_space<vmem>>, %arg31: memref<1x8x32xf32, #tpu.memory_space<vmem>>, %arg32: memref<8x32xf32, #tpu.memory_space<vmem>>) attributes {dimension_semantics = [#tpu.dimension_semantics<parallel>], iteration_bounds = array<i64: 2>, scalar_prefetch = 0 : i64, scratch_operands = 1 : i64, tpu.core_type = #tpu.core_type<tc>, window_params = [{transform_indices = @transform_0, window_bounds = array<i64: 1, 8, 32>}, {transform_indices = @transform_1, window_bounds = array<i64: 1, 16, 32>}, {pipeline_mode = #tpu.pipeline_mode<synchronous>, transform_indices = @transform_2, window_bounds = array<i64: 8, 32>}, {pipeline_mode = #tpu.pipeline_mode<synchronous>, transform_indices = @transform_3, window_bounds = array<i64: 16, 32>}, {pipeline_mode = #tpu.pipeline_mode<synchronous>, transform_indices = @transform_4, window_bounds = array<i64: 32, 32>}, {pipeline_mode = #tpu.pipeline_mode<synchronous>, transform_indices = @transform_5, window_bounds = array<i64: 1, 32>}, {pipeline_mode = #tpu.pipeline_mode<synchronous>, transform_indices = @transform_6, window_bounds = array<i64: 32, 32>}, {pipeline_mode = #tpu.pipeline_mode<synchronous>, transform_indices = @transform_7, window_bounds = array<i64: 1, 32>}, {pipeline_mode = #tpu.pipeline_mode<synchronous>, transform_indices = @transform_8, window_bounds = array<i64: 32, 32>}, {pipeline_mode = #tpu.pipeline_mode<synchronous>, transform_indices = @transform_9, window_bounds = array<i64: 1, 32>}, {pipeline_mode = #tpu.pipeline_mode<synchronous>, transform_indices = @transform_10, window_bounds = array<i64: 32, 32>}, {pipeline_mode = #tpu.pipeline_mode<synchronous>, transform_indices = @transform_11, window_bounds = array<i64: 1, 32>}, {pipeline_mode = #tpu.pipeline_mode<synchronous>, transform_indices = @transform_12, window_bounds = array<i64: 32, 32>}, {pipeline_mode = #tpu.pipeline_mode<synchronous>, transform_indices = @transform_13, window_bounds = array<i64: 1, 32>}, {pipeline_mode = #tpu.pipeline_mode<synchronous>, transform_indices = @transform_14, window_bounds = array<i64: 32, 32>}, {pipeline_mode = #tpu.pipeline_mode<synchronous>, transform_indices = @transform_15, window_bounds = array<i64: 1, 32>}, {pipeline_mode = #tpu.pipeline_mode<synchronous>, transform_indices = @transform_16, window_bounds = array<i64: 32, 32>}, {pipeline_mode = #tpu.pipeline_mode<synchronous>, transform_indices = @transform_17, window_bounds = array<i64: 1, 32>}, {pipeline_mode = #tpu.pipeline_mode<synchronous>, transform_indices = @transform_18, window_bounds = array<i64: 32, 32>}, {pipeline_mode = #tpu.pipeline_mode<synchronous>, transform_indices = @transform_19, window_bounds = array<i64: 1, 32>}, {pipeline_mode = #tpu.pipeline_mode<synchronous>, transform_indices = @transform_20, window_bounds = array<i64: 32, 64>}, {pipeline_mode = #tpu.pipeline_mode<synchronous>, transform_indices = @transform_21, window_bounds = array<i64: 1, 64>}, {pipeline_mode = #tpu.pipeline_mode<synchronous>, transform_indices = @transform_22, window_bounds = array<i64: 64, 32>}, {pipeline_mode = #tpu.pipeline_mode<synchronous>, transform_indices = @transform_23, window_bounds = array<i64: 1, 32>}, {pipeline_mode = #tpu.pipeline_mode<synchronous>, transform_indices = @transform_24, window_bounds = array<i64: 1, 32>}, {pipeline_mode = #tpu.pipeline_mode<synchronous>, transform_indices = @transform_25, window_bounds = array<i64: 1, 32>}, {pipeline_mode = #tpu.pipeline_mode<synchronous>, transform_indices = @transform_26, window_bounds = array<i64: 1, 32>}, {pipeline_mode = #tpu.pipeline_mode<synchronous>, transform_indices = @transform_27, window_bounds = array<i64: 1, 32>}, {pipeline_mode = #tpu.pipeline_mode<synchronous>, transform_indices = @transform_28, window_bounds = array<i64: 1, 32>}, {pipeline_mode = #tpu.pipeline_mode<synchronous>, transform_indices = @transform_29, window_bounds = array<i64: 1, 32>}, {transform_indices = @transform_30, window_bounds = array<i64: 1, 8, 32>}]} {
    %c0 = arith.constant 0 : index
    %c0_0 = arith.constant 0 : index
    %c0_1 = arith.constant 0 : index
    %0 = vector.load %arg1[%c0, %c0_0, %c0_1] : memref<1x8x32xf32, #tpu.memory_space<vmem>>, vector<1x8x32xf32>
    %1 = vector.shape_cast %0 : vector<1x8x32xf32> to vector<8x32xf32>
    %c0_2 = arith.constant 0 : index
    %c0_3 = arith.constant 0 : index
    %c0_4 = arith.constant 0 : index
    %2 = vector.load %arg2[%c0_2, %c0_3, %c0_4] : memref<1x16x32xf32, #tpu.memory_space<vmem>>, vector<1x16x32xf32>
    %3 = vector.shape_cast %2 : vector<1x16x32xf32> to vector<16x32xf32>
    %c0_5 = arith.constant 0 : index
    %c0_6 = arith.constant 0 : index
    %4 = vector.load %arg3[%c0_5, %c0_6] : memref<8x32xf32, #tpu.memory_space<vmem>>, vector<8x32xf32>
    %c0_7 = arith.constant 0 : index
    %c0_8 = arith.constant 0 : index
    %5 = vector.load %arg4[%c0_7, %c0_8] : memref<16x32xf32, #tpu.memory_space<vmem>>, vector<16x32xf32>
    %6 = arith.addf %1, %4 : vector<8x32xf32>
    %c0_9 = arith.constant 0 : index
    %c0_10 = arith.constant 0 : index
    %7 = vector.load %arg5[%c0_9, %c0_10] : memref<32x32xf32, #tpu.memory_space<vmem>>, vector<32x32xf32>
    %cst = arith.constant dense<0.000000e+00> : vector<8x32xf32>
    %8 = tpu.matmul %6, %7, %cst {dimension_numbers = #tpu.dot_dimension_numbers<[1], [0], [0], [1], [0, 0, 1, 1], [], []>} : vector<8x32xf32>, vector<32x32xf32>, vector<8x32xf32> -> vector<8x32xf32>
    %c0_11 = arith.constant 0 : index
    %c0_12 = arith.constant 0 : index
    %9 = vector.load %arg6[%c0_11, %c0_12] : memref<1x32xf32, #tpu.memory_space<vmem>>, vector<1x32xf32>
    %10 = vector.broadcast %9 : vector<1x32xf32> to vector<8x32xf32>
    %11 = arith.addf %8, %10 : vector<8x32xf32>
    %cst_13 = arith.constant 0.353553385 : f32
    %12 = vector.broadcast %cst_13 : f32 to vector<8x32xf32>
    %13 = arith.mulf %11, %12 : vector<8x32xf32>
    %c0_14 = arith.constant 0 : index
    %c0_15 = arith.constant 0 : index
    %14 = vector.load %arg7[%c0_14, %c0_15] : memref<32x32xf32, #tpu.memory_space<vmem>>, vector<32x32xf32>
    %cst_16 = arith.constant dense<0.000000e+00> : vector<8x32xf32>
    %15 = tpu.matmul %6, %14, %cst_16 {dimension_numbers = #tpu.dot_dimension_numbers<[1], [0], [0], [1], [0, 0, 1, 1], [], []>} : vector<8x32xf32>, vector<32x32xf32>, vector<8x32xf32> -> vector<8x32xf32>
    %c0_17 = arith.constant 0 : index
    %c0_18 = arith.constant 0 : index
    %16 = vector.load %arg8[%c0_17, %c0_18] : memref<1x32xf32, #tpu.memory_space<vmem>>, vector<1x32xf32>
    %17 = vector.broadcast %16 : vector<1x32xf32> to vector<8x32xf32>
    %18 = arith.addf %15, %17 : vector<8x32xf32>
    %c0_19 = arith.constant 0 : index
    %c0_20 = arith.constant 0 : index
    %19 = vector.load %arg9[%c0_19, %c0_20] : memref<32x32xf32, #tpu.memory_space<vmem>>, vector<32x32xf32>
    %cst_21 = arith.constant dense<0.000000e+00> : vector<8x32xf32>
    %20 = tpu.matmul %1, %19, %cst_21 {dimension_numbers = #tpu.dot_dimension_numbers<[1], [0], [0], [1], [0, 0, 1, 1], [], []>} : vector<8x32xf32>, vector<32x32xf32>, vector<8x32xf32> -> vector<8x32xf32>
    %c0_22 = arith.constant 0 : index
    %c0_23 = arith.constant 0 : index
    %21 = vector.load %arg10[%c0_22, %c0_23] : memref<1x32xf32, #tpu.memory_space<vmem>>, vector<1x32xf32>
    %22 = vector.broadcast %21 : vector<1x32xf32> to vector<8x32xf32>
    %23 = arith.addf %20, %22 : vector<8x32xf32>
    %24 = vector.extract_strided_slice %13 {offsets = [0, 0], sizes = [8, 8], strides = [1, 1]} : vector<8x32xf32> to vector<8x8xf32>
    %25 = vector.extract_strided_slice %18 {offsets = [0, 0], sizes = [8, 8], strides = [1, 1]} : vector<8x32xf32> to vector<8x8xf32>
    %26 = vector.extract_strided_slice %23 {offsets = [0, 0], sizes = [8, 8], strides = [1, 1]} : vector<8x32xf32> to vector<8x8xf32>
    "tpu.trace_start"() <{level = 10 : i32, message = "qd,kd->qk"}> : () -> ()
    %cst_24 = arith.constant dense<0.000000e+00> : vector<8x8xf32>
    %27 = tpu.matmul %24, %25, %cst_24 {dimension_numbers = #tpu.dot_dimension_numbers<[1], [1], [0], [0], [0, 0, 1, 0], [], []>} : vector<8x8xf32>, vector<8x8xf32>, vector<8x8xf32> -> vector<8x8xf32>
    "tpu.trace_stop"() : () -> ()
    %cst_25 = arith.constant dense<0xFF800000> : vector<8xf32>
    %28 = vector.multi_reduction <maximumf>, %27, %cst_25 [1] : vector<8x8xf32> to vector<8xf32>
    %29 = vector.shape_cast %28 : vector<8xf32> to vector<8x1xf32>
    %30 = vector.broadcast %29 : vector<8x1xf32> to vector<8x8xf32>
    %31 = arith.subf %27, %30 : vector<8x8xf32>
    %32 = math.exp %31 : vector<8x8xf32>
    %cst_26 = arith.constant dense<0.000000e+00> : vector<8xf32>
    %33 = vector.multi_reduction <add>, %32, %cst_26 [1] : vector<8x8xf32> to vector<8xf32>
    %34 = vector.shape_cast %33 : vector<8xf32> to vector<8x1xf32>
    %35 = vector.broadcast %34 : vector<8x1xf32> to vector<8x8xf32>
    %36 = arith.divf %32, %35 : vector<8x8xf32>
    %cst_27 = arith.constant dense<0.000000e+00> : vector<8x8xf32>
    %37 = tpu.matmul %36, %26, %cst_27 {dimension_numbers = #tpu.dot_dimension_numbers<[1], [0], [0], [1], [0, 0, 1, 1], [], []>} : vector<8x8xf32>, vector<8x8xf32>, vector<8x8xf32> -> vector<8x8xf32>
    %c0_28 = arith.constant 0 : index
    %c0_29 = arith.constant 0 : index
    %38 = vector.load %arg32[%c0_28, %c0_29] : memref<8x32xf32, #tpu.memory_space<vmem>>, vector<8x8xf32>
    tpu.vector_store %arg32[%c0_28, %c0_29], %37 {strides = array<i32>} : memref<8x32xf32, #tpu.memory_space<vmem>>, vector<8x8xf32>,
    %39 = vector.extract_strided_slice %13 {offsets = [0, 8], sizes = [8, 8], strides = [1, 1]} : vector<8x32xf32> to vector<8x8xf32>
    %40 = vector.extract_strided_slice %18 {offsets = [0, 8], sizes = [8, 8], strides = [1, 1]} : vector<8x32xf32> to vector<8x8xf32>
    %41 = vector.extract_strided_slice %23 {offsets = [0, 8], sizes = [8, 8], strides = [1, 1]} : vector<8x32xf32> to vector<8x8xf32>
    "tpu.trace_start"() <{level = 10 : i32, message = "qd,kd->qk"}> : () -> ()
    %cst_30 = arith.constant dense<0.000000e+00> : vector<8x8xf32>
    %42 = tpu.matmul %39, %40, %cst_30 {dimension_numbers = #tpu.dot_dimension_numbers<[1], [1], [0], [0], [0, 0, 1, 0], [], []>} : vector<8x8xf32>, vector<8x8xf32>, vector<8x8xf32> -> vector<8x8xf32>
    "tpu.trace_stop"() : () -> ()
    %cst_31 = arith.constant dense<0xFF800000> : vector<8xf32>
    %43 = vector.multi_reduction <maximumf>, %42, %cst_31 [1] : vector<8x8xf32> to vector<8xf32>
    %44 = vector.shape_cast %43 : vector<8xf32> to vector<8x1xf32>
    %45 = vector.broadcast %44 : vector<8x1xf32> to vector<8x8xf32>
    %46 = arith.subf %42, %45 : vector<8x8xf32>
    %47 = math.exp %46 : vector<8x8xf32>
    %cst_32 = arith.constant dense<0.000000e+00> : vector<8xf32>
    %48 = vector.multi_reduction <add>, %47, %cst_32 [1] : vector<8x8xf32> to vector<8xf32>
    %49 = vector.shape_cast %48 : vector<8xf32> to vector<8x1xf32>
    %50 = vector.broadcast %49 : vector<8x1xf32> to vector<8x8xf32>
    %51 = arith.divf %47, %50 : vector<8x8xf32>
    %cst_33 = arith.constant dense<0.000000e+00> : vector<8x8xf32>
    %52 = tpu.matmul %51, %41, %cst_33 {dimension_numbers = #tpu.dot_dimension_numbers<[1], [0], [0], [1], [0, 0, 1, 1], [], []>} : vector<8x8xf32>, vector<8x8xf32>, vector<8x8xf32> -> vector<8x8xf32>
    %c0_34 = arith.constant 0 : index
    %c8 = arith.constant 8 : index
    %53 = vector.load %arg32[%c0_34, %c8] : memref<8x32xf32, #tpu.memory_space<vmem>>, vector<8x8xf32>
    tpu.vector_store %arg32[%c0_34, %c8], %52 {strides = array<i32>} : memref<8x32xf32, #tpu.memory_space<vmem>>, vector<8x8xf32>,
    %54 = vector.extract_strided_slice %13 {offsets = [0, 16], sizes = [8, 8], strides = [1, 1]} : vector<8x32xf32> to vector<8x8xf32>
    %55 = vector.extract_strided_slice %18 {offsets = [0, 16], sizes = [8, 8], strides = [1, 1]} : vector<8x32xf32> to vector<8x8xf32>
    %56 = vector.extract_strided_slice %23 {offsets = [0, 16], sizes = [8, 8], strides = [1, 1]} : vector<8x32xf32> to vector<8x8xf32>
    "tpu.trace_start"() <{level = 10 : i32, message = "qd,kd->qk"}> : () -> ()
    %cst_35 = arith.constant dense<0.000000e+00> : vector<8x8xf32>
    %57 = tpu.matmul %54, %55, %cst_35 {dimension_numbers = #tpu.dot_dimension_numbers<[1], [1], [0], [0], [0, 0, 1, 0], [], []>} : vector<8x8xf32>, vector<8x8xf32>, vector<8x8xf32> -> vector<8x8xf32>
    "tpu.trace_stop"() : () -> ()
    %cst_36 = arith.constant dense<0xFF800000> : vector<8xf32>
    %58 = vector.multi_reduction <maximumf>, %57, %cst_36 [1] : vector<8x8xf32> to vector<8xf32>
    %59 = vector.shape_cast %58 : vector<8xf32> to vector<8x1xf32>
    %60 = vector.broadcast %59 : vector<8x1xf32> to vector<8x8xf32>
    %61 = arith.subf %57, %60 : vector<8x8xf32>
    %62 = math.exp %61 : vector<8x8xf32>
    %cst_37 = arith.constant dense<0.000000e+00> : vector<8xf32>
    %63 = vector.multi_reduction <add>, %62, %cst_37 [1] : vector<8x8xf32> to vector<8xf32>
    %64 = vector.shape_cast %63 : vector<8xf32> to vector<8x1xf32>
    %65 = vector.broadcast %64 : vector<8x1xf32> to vector<8x8xf32>
    %66 = arith.divf %62, %65 : vector<8x8xf32>
    %cst_38 = arith.constant dense<0.000000e+00> : vector<8x8xf32>
    %67 = tpu.matmul %66, %56, %cst_38 {dimension_numbers = #tpu.dot_dimension_numbers<[1], [0], [0], [1], [0, 0, 1, 1], [], []>} : vector<8x8xf32>, vector<8x8xf32>, vector<8x8xf32> -> vector<8x8xf32>
    %c0_39 = arith.constant 0 : index
    %c16 = arith.constant 16 : index
    %68 = vector.load %arg32[%c0_39, %c16] : memref<8x32xf32, #tpu.memory_space<vmem>>, vector<8x8xf32>
    tpu.vector_store %arg32[%c0_39, %c16], %67 {strides = array<i32>} : memref<8x32xf32, #tpu.memory_space<vmem>>, vector<8x8xf32>,
    %69 = vector.extract_strided_slice %13 {offsets = [0, 24], sizes = [8, 8], strides = [1, 1]} : vector<8x32xf32> to vector<8x8xf32>
    %70 = vector.extract_strided_slice %18 {offsets = [0, 24], sizes = [8, 8], strides = [1, 1]} : vector<8x32xf32> to vector<8x8xf32>
    %71 = vector.extract_strided_slice %23 {offsets = [0, 24], sizes = [8, 8], strides = [1, 1]} : vector<8x32xf32> to vector<8x8xf32>
    "tpu.trace_start"() <{level = 10 : i32, message = "qd,kd->qk"}> : () -> ()
    %cst_40 = arith.constant dense<0.000000e+00> : vector<8x8xf32>
    %72 = tpu.matmul %69, %70, %cst_40 {dimension_numbers = #tpu.dot_dimension_numbers<[1], [1], [0], [0], [0, 0, 1, 0], [], []>} : vector<8x8xf32>, vector<8x8xf32>, vector<8x8xf32> -> vector<8x8xf32>
    "tpu.trace_stop"() : () -> ()
    %cst_41 = arith.constant dense<0xFF800000> : vector<8xf32>
    %73 = vector.multi_reduction <maximumf>, %72, %cst_41 [1] : vector<8x8xf32> to vector<8xf32>
    %74 = vector.shape_cast %73 : vector<8xf32> to vector<8x1xf32>
    %75 = vector.broadcast %74 : vector<8x1xf32> to vector<8x8xf32>
    %76 = arith.subf %72, %75 : vector<8x8xf32>
    %77 = math.exp %76 : vector<8x8xf32>
    %cst_42 = arith.constant dense<0.000000e+00> : vector<8xf32>
    %78 = vector.multi_reduction <add>, %77, %cst_42 [1] : vector<8x8xf32> to vector<8xf32>
    %79 = vector.shape_cast %78 : vector<8xf32> to vector<8x1xf32>
    %80 = vector.broadcast %79 : vector<8x1xf32> to vector<8x8xf32>
    %81 = arith.divf %77, %80 : vector<8x8xf32>
    %cst_43 = arith.constant dense<0.000000e+00> : vector<8x8xf32>
    %82 = tpu.matmul %81, %71, %cst_43 {dimension_numbers = #tpu.dot_dimension_numbers<[1], [0], [0], [1], [0, 0, 1, 1], [], []>} : vector<8x8xf32>, vector<8x8xf32>, vector<8x8xf32> -> vector<8x8xf32>
    %c0_44 = arith.constant 0 : index
    %c24 = arith.constant 24 : index
    %83 = vector.load %arg32[%c0_44, %c24] : memref<8x32xf32, #tpu.memory_space<vmem>>, vector<8x8xf32>
    tpu.vector_store %arg32[%c0_44, %c24], %82 {strides = array<i32>} : memref<8x32xf32, #tpu.memory_space<vmem>>, vector<8x8xf32>,
    %c0_45 = arith.constant 0 : index
    %c0_46 = arith.constant 0 : index
    %84 = vector.load %arg32[%c0_45, %c0_46] : memref<8x32xf32, #tpu.memory_space<vmem>>, vector<8x32xf32>
    %c0_47 = arith.constant 0 : index
    %c0_48 = arith.constant 0 : index
    %85 = vector.load %arg11[%c0_47, %c0_48] : memref<32x32xf32, #tpu.memory_space<vmem>>, vector<32x32xf32>
    %cst_49 = arith.constant dense<0.000000e+00> : vector<8x32xf32>
    %86 = tpu.matmul %84, %85, %cst_49 {dimension_numbers = #tpu.dot_dimension_numbers<[1], [0], [0], [1], [0, 0, 1, 1], [], []>} : vector<8x32xf32>, vector<32x32xf32>, vector<8x32xf32> -> vector<8x32xf32>
    %c0_50 = arith.constant 0 : index
    %c0_51 = arith.constant 0 : index
    %87 = vector.load %arg12[%c0_50, %c0_51] : memref<1x32xf32, #tpu.memory_space<vmem>>, vector<1x32xf32>
    %88 = vector.broadcast %87 : vector<1x32xf32> to vector<8x32xf32>
    %89 = arith.addf %86, %88 : vector<8x32xf32>
    %90 = arith.addf %1, %89 : vector<8x32xf32>
    %cst_52 = arith.constant dense<0.000000e+00> : vector<8xf32>
    %91 = vector.multi_reduction <add>, %90, %cst_52 [1] : vector<8x32xf32> to vector<8xf32>
    %92 = vector.shape_cast %91 : vector<8xf32> to vector<8x1xf32>
    %cst_53 = arith.constant 3.125000e-02 : f32
    %93 = vector.broadcast %cst_53 : f32 to vector<8x1xf32>
    %94 = arith.mulf %92, %93 : vector<8x1xf32>
    %95 = arith.mulf %90, %90 : vector<8x32xf32>
    %cst_54 = arith.constant dense<0.000000e+00> : vector<8xf32>
    %96 = vector.multi_reduction <add>, %95, %cst_54 [1] : vector<8x32xf32> to vector<8xf32>
    %97 = vector.shape_cast %96 : vector<8xf32> to vector<8x1xf32>
    %cst_55 = arith.constant 3.125000e-02 : f32
    %98 = vector.broadcast %cst_55 : f32 to vector<8x1xf32>
    %99 = arith.mulf %97, %98 : vector<8x1xf32>
    %100 = arith.mulf %94, %94 : vector<8x1xf32>
    %101 = arith.subf %99, %100 : vector<8x1xf32>
    %102 = vector.broadcast %94 : vector<8x1xf32> to vector<8x32xf32>
    %103 = arith.subf %90, %102 : vector<8x32xf32>
    %cst_56 = arith.constant 9.99999974E-6 : f32
    %104 = vector.broadcast %cst_56 : f32 to vector<8x1xf32>
    %105 = arith.addf %101, %104 : vector<8x1xf32>
    %106 = math.rsqrt %105 : vector<8x1xf32>
    %107 = vector.broadcast %106 : vector<8x1xf32> to vector<8x32xf32>
    %108 = arith.mulf %103, %107 : vector<8x32xf32>
    %c0_57 = arith.constant 0 : index
    %c0_58 = arith.constant 0 : index
    %109 = vector.load %arg25[%c0_57, %c0_58] : memref<1x32xf32, #tpu.memory_space<vmem>>, vector<1x32xf32>
    %110 = vector.broadcast %109 : vector<1x32xf32> to vector<8x32xf32>
    %111 = arith.mulf %108, %110 : vector<8x32xf32>
    %c0_59 = arith.constant 0 : index
    %c0_60 = arith.constant 0 : index
    %112 = vector.load %arg26[%c0_59, %c0_60] : memref<1x32xf32, #tpu.memory_space<vmem>>, vector<1x32xf32>
    %113 = vector.broadcast %112 : vector<1x32xf32> to vector<8x32xf32>
    %114 = arith.addf %111, %113 : vector<8x32xf32>
    %115 = arith.addf %114, %4 : vector<8x32xf32>
    %116 = arith.addf %3, %5 : vector<16x32xf32>
    %c0_61 = arith.constant 0 : index
    %c0_62 = arith.constant 0 : index
    %117 = vector.load %arg13[%c0_61, %c0_62] : memref<32x32xf32, #tpu.memory_space<vmem>>, vector<32x32xf32>
    %cst_63 = arith.constant dense<0.000000e+00> : vector<8x32xf32>
    %118 = tpu.matmul %115, %117, %cst_63 {dimension_numbers = #tpu.dot_dimension_numbers<[1], [0], [0], [1], [0, 0, 1, 1], [], []>} : vector<8x32xf32>, vector<32x32xf32>, vector<8x32xf32> -> vector<8x32xf32>
    %c0_64 = arith.constant 0 : index
    %c0_65 = arith.constant 0 : index
    %119 = vector.load %arg14[%c0_64, %c0_65] : memref<1x32xf32, #tpu.memory_space<vmem>>, vector<1x32xf32>
    %120 = vector.broadcast %119 : vector<1x32xf32> to vector<8x32xf32>
    %121 = arith.addf %118, %120 : vector<8x32xf32>
    %cst_66 = arith.constant 0.353553385 : f32
    %122 = vector.broadcast %cst_66 : f32 to vector<8x32xf32>
    %123 = arith.mulf %121, %122 : vector<8x32xf32>
    %c0_67 = arith.constant 0 : index
    %c0_68 = arith.constant 0 : index
    %124 = vector.load %arg15[%c0_67, %c0_68] : memref<32x32xf32, #tpu.memory_space<vmem>>, vector<32x32xf32>
    %cst_69 = arith.constant dense<0.000000e+00> : vector<16x32xf32>
    %125 = tpu.matmul %116, %124, %cst_69 {dimension_numbers = #tpu.dot_dimension_numbers<[1], [0], [0], [1], [0, 0, 1, 1], [], []>} : vector<16x32xf32>, vector<32x32xf32>, vector<16x32xf32> -> vector<16x32xf32>
    %c0_70 = arith.constant 0 : index
    %c0_71 = arith.constant 0 : index
    %126 = vector.load %arg16[%c0_70, %c0_71] : memref<1x32xf32, #tpu.memory_space<vmem>>, vector<1x32xf32>
    %127 = vector.broadcast %126 : vector<1x32xf32> to vector<16x32xf32>
    %128 = arith.addf %125, %127 : vector<16x32xf32>
    %c0_72 = arith.constant 0 : index
    %c0_73 = arith.constant 0 : index
    %129 = vector.load %arg17[%c0_72, %c0_73] : memref<32x32xf32, #tpu.memory_space<vmem>>, vector<32x32xf32>
    %cst_74 = arith.constant dense<0.000000e+00> : vector<16x32xf32>
    %130 = tpu.matmul %3, %129, %cst_74 {dimension_numbers = #tpu.dot_dimension_numbers<[1], [0], [0], [1], [0, 0, 1, 1], [], []>} : vector<16x32xf32>, vector<32x32xf32>, vector<16x32xf32> -> vector<16x32xf32>
    %c0_75 = arith.constant 0 : index
    %c0_76 = arith.constant 0 : index
    %131 = vector.load %arg18[%c0_75, %c0_76] : memref<1x32xf32, #tpu.memory_space<vmem>>, vector<1x32xf32>
    %132 = vector.broadcast %131 : vector<1x32xf32> to vector<16x32xf32>
    %133 = arith.addf %130, %132 : vector<16x32xf32>
    %134 = vector.extract_strided_slice %123 {offsets = [0, 0], sizes = [8, 8], strides = [1, 1]} : vector<8x32xf32> to vector<8x8xf32>
    %135 = vector.extract_strided_slice %128 {offsets = [0, 0], sizes = [16, 8], strides = [1, 1]} : vector<16x32xf32> to vector<16x8xf32>
    %136 = vector.extract_strided_slice %133 {offsets = [0, 0], sizes = [16, 8], strides = [1, 1]} : vector<16x32xf32> to vector<16x8xf32>
    "tpu.trace_start"() <{level = 10 : i32, message = "qd,kd->qk"}> : () -> ()
    %cst_77 = arith.constant dense<0.000000e+00> : vector<8x16xf32>
    %137 = tpu.matmul %134, %135, %cst_77 {dimension_numbers = #tpu.dot_dimension_numbers<[1], [1], [0], [0], [0, 0, 1, 0], [], []>} : vector<8x8xf32>, vector<16x8xf32>, vector<8x16xf32> -> vector<8x16xf32>
    "tpu.trace_stop"() : () -> ()
    %cst_78 = arith.constant dense<0xFF800000> : vector<8xf32>
    %138 = vector.multi_reduction <maximumf>, %137, %cst_78 [1] : vector<8x16xf32> to vector<8xf32>
    %139 = vector.shape_cast %138 : vector<8xf32> to vector<8x1xf32>
    %140 = vector.broadcast %139 : vector<8x1xf32> to vector<8x16xf32>
    %141 = arith.subf %137, %140 : vector<8x16xf32>
    %142 = math.exp %141 : vector<8x16xf32>
    %cst_79 = arith.constant dense<0.000000e+00> : vector<8xf32>
    %143 = vector.multi_reduction <add>, %142, %cst_79 [1] : vector<8x16xf32> to vector<8xf32>
    %144 = vector.shape_cast %143 : vector<8xf32> to vector<8x1xf32>
    %145 = vector.broadcast %144 : vector<8x1xf32> to vector<8x16xf32>
    %146 = arith.divf %142, %145 : vector<8x16xf32>
    %cst_80 = arith.constant dense<0.000000e+00> : vector<8x8xf32>
    %147 = tpu.matmul %146, %136, %cst_80 {dimension_numbers = #tpu.dot_dimension_numbers<[1], [0], [0], [1], [0, 0, 1, 1], [], []>} : vector<8x16xf32>, vector<16x8xf32>, vector<8x8xf32> -> vector<8x8xf32>
    %c0_81 = arith.constant 0 : index
    %c0_82 = arith.constant 0 : index
    %148 = vector.load %arg32[%c0_81, %c0_82] : memref<8x32xf32, #tpu.memory_space<vmem>>, vector<8x8xf32>
    tpu.vector_store %arg32[%c0_81, %c0_82], %147 {strides = array<i32>} : memref<8x32xf32, #tpu.memory_space<vmem>>, vector<8x8xf32>,
    %149 = vector.extract_strided_slice %123 {offsets = [0, 8], sizes = [8, 8], strides = [1, 1]} : vector<8x32xf32> to vector<8x8xf32>
    %150 = vector.extract_strided_slice %128 {offsets = [0, 8], sizes = [16, 8], strides = [1, 1]} : vector<16x32xf32> to vector<16x8xf32>
    %151 = vector.extract_strided_slice %133 {offsets = [0, 8], sizes = [16, 8], strides = [1, 1]} : vector<16x32xf32> to vector<16x8xf32>
    "tpu.trace_start"() <{level = 10 : i32, message = "qd,kd->qk"}> : () -> ()
    %cst_83 = arith.constant dense<0.000000e+00> : vector<8x16xf32>
    %152 = tpu.matmul %149, %150, %cst_83 {dimension_numbers = #tpu.dot_dimension_numbers<[1], [1], [0], [0], [0, 0, 1, 0], [], []>} : vector<8x8xf32>, vector<16x8xf32>, vector<8x16xf32> -> vector<8x16xf32>
    "tpu.trace_stop"() : () -> ()
    %cst_84 = arith.constant dense<0xFF800000> : vector<8xf32>
    %153 = vector.multi_reduction <maximumf>, %152, %cst_84 [1] : vector<8x16xf32> to vector<8xf32>
    %154 = vector.shape_cast %153 : vector<8xf32> to vector<8x1xf32>
    %155 = vector.broadcast %154 : vector<8x1xf32> to vector<8x16xf32>
    %156 = arith.subf %152, %155 : vector<8x16xf32>
    %157 = math.exp %156 : vector<8x16xf32>
    %cst_85 = arith.constant dense<0.000000e+00> : vector<8xf32>
    %158 = vector.multi_reduction <add>, %157, %cst_85 [1] : vector<8x16xf32> to vector<8xf32>
    %159 = vector.shape_cast %158 : vector<8xf32> to vector<8x1xf32>
    %160 = vector.broadcast %159 : vector<8x1xf32> to vector<8x16xf32>
    %161 = arith.divf %157, %160 : vector<8x16xf32>
    %cst_86 = arith.constant dense<0.000000e+00> : vector<8x8xf32>
    %162 = tpu.matmul %161, %151, %cst_86 {dimension_numbers = #tpu.dot_dimension_numbers<[1], [0], [0], [1], [0, 0, 1, 1], [], []>} : vector<8x16xf32>, vector<16x8xf32>, vector<8x8xf32> -> vector<8x8xf32>
    %c0_87 = arith.constant 0 : index
    %c8_88 = arith.constant 8 : index
    %163 = vector.load %arg32[%c0_87, %c8_88] : memref<8x32xf32, #tpu.memory_space<vmem>>, vector<8x8xf32>
    tpu.vector_store %arg32[%c0_87, %c8_88], %162 {strides = array<i32>} : memref<8x32xf32, #tpu.memory_space<vmem>>, vector<8x8xf32>,
    %164 = vector.extract_strided_slice %123 {offsets = [0, 16], sizes = [8, 8], strides = [1, 1]} : vector<8x32xf32> to vector<8x8xf32>
    %165 = vector.extract_strided_slice %128 {offsets = [0, 16], sizes = [16, 8], strides = [1, 1]} : vector<16x32xf32> to vector<16x8xf32>
    %166 = vector.extract_strided_slice %133 {offsets = [0, 16], sizes = [16, 8], strides = [1, 1]} : vector<16x32xf32> to vector<16x8xf32>
    "tpu.trace_start"() <{level = 10 : i32, message = "qd,kd->qk"}> : () -> ()
    %cst_89 = arith.constant dense<0.000000e+00> : vector<8x16xf32>
    %167 = tpu.matmul %164, %165, %cst_89 {dimension_numbers = #tpu.dot_dimension_numbers<[1], [1], [0], [0], [0, 0, 1, 0], [], []>} : vector<8x8xf32>, vector<16x8xf32>, vector<8x16xf32> -> vector<8x16xf32>
    "tpu.trace_stop"() : () -> ()
    %cst_90 = arith.constant dense<0xFF800000> : vector<8xf32>
    %168 = vector.multi_reduction <maximumf>, %167, %cst_90 [1] : vector<8x16xf32> to vector<8xf32>
    %169 = vector.shape_cast %168 : vector<8xf32> to vector<8x1xf32>
    %170 = vector.broadcast %169 : vector<8x1xf32> to vector<8x16xf32>
    %171 = arith.subf %167, %170 : vector<8x16xf32>
    %172 = math.exp %171 : vector<8x16xf32>
    %cst_91 = arith.constant dense<0.000000e+00> : vector<8xf32>
    %173 = vector.multi_reduction <add>, %172, %cst_91 [1] : vector<8x16xf32> to vector<8xf32>
    %174 = vector.shape_cast %173 : vector<8xf32> to vector<8x1xf32>
    %175 = vector.broadcast %174 : vector<8x1xf32> to vector<8x16xf32>
    %176 = arith.divf %172, %175 : vector<8x16xf32>
    %cst_92 = arith.constant dense<0.000000e+00> : vector<8x8xf32>
    %177 = tpu.matmul %176, %166, %cst_92 {dimension_numbers = #tpu.dot_dimension_numbers<[1], [0], [0], [1], [0, 0, 1, 1], [], []>} : vector<8x16xf32>, vector<16x8xf32>, vector<8x8xf32> -> vector<8x8xf32>
    %c0_93 = arith.constant 0 : index
    %c16_94 = arith.constant 16 : index
    %178 = vector.load %arg32[%c0_93, %c16_94] : memref<8x32xf32, #tpu.memory_space<vmem>>, vector<8x8xf32>
    tpu.vector_store %arg32[%c0_93, %c16_94], %177 {strides = array<i32>} : memref<8x32xf32, #tpu.memory_space<vmem>>, vector<8x8xf32>,
    %179 = vector.extract_strided_slice %123 {offsets = [0, 24], sizes = [8, 8], strides = [1, 1]} : vector<8x32xf32> to vector<8x8xf32>
    %180 = vector.extract_strided_slice %128 {offsets = [0, 24], sizes = [16, 8], strides = [1, 1]} : vector<16x32xf32> to vector<16x8xf32>
    %181 = vector.extract_strided_slice %133 {offsets = [0, 24], sizes = [16, 8], strides = [1, 1]} : vector<16x32xf32> to vector<16x8xf32>
    "tpu.trace_start"() <{level = 10 : i32, message = "qd,kd->qk"}> : () -> ()
    %cst_95 = arith.constant dense<0.000000e+00> : vector<8x16xf32>
    %182 = tpu.matmul %179, %180, %cst_95 {dimension_numbers = #tpu.dot_dimension_numbers<[1], [1], [0], [0], [0, 0, 1, 0], [], []>} : vector<8x8xf32>, vector<16x8xf32>, vector<8x16xf32> -> vector<8x16xf32>
    "tpu.trace_stop"() : () -> ()
    %cst_96 = arith.constant dense<0xFF800000> : vector<8xf32>
    %183 = vector.multi_reduction <maximumf>, %182, %cst_96 [1] : vector<8x16xf32> to vector<8xf32>
    %184 = vector.shape_cast %183 : vector<8xf32> to vector<8x1xf32>
    %185 = vector.broadcast %184 : vector<8x1xf32> to vector<8x16xf32>
    %186 = arith.subf %182, %185 : vector<8x16xf32>
    %187 = math.exp %186 : vector<8x16xf32>
    %cst_97 = arith.constant dense<0.000000e+00> : vector<8xf32>
    %188 = vector.multi_reduction <add>, %187, %cst_97 [1] : vector<8x16xf32> to vector<8xf32>
    %189 = vector.shape_cast %188 : vector<8xf32> to vector<8x1xf32>
    %190 = vector.broadcast %189 : vector<8x1xf32> to vector<8x16xf32>
    %191 = arith.divf %187, %190 : vector<8x16xf32>
    %cst_98 = arith.constant dense<0.000000e+00> : vector<8x8xf32>
    %192 = tpu.matmul %191, %181, %cst_98 {dimension_numbers = #tpu.dot_dimension_numbers<[1], [0], [0], [1], [0, 0, 1, 1], [], []>} : vector<8x16xf32>, vector<16x8xf32>, vector<8x8xf32> -> vector<8x8xf32>
    %c0_99 = arith.constant 0 : index
    %c24_100 = arith.constant 24 : index
    %193 = vector.load %arg32[%c0_99, %c24_100] : memref<8x32xf32, #tpu.memory_space<vmem>>, vector<8x8xf32>
    tpu.vector_store %arg32[%c0_99, %c24_100], %192 {strides = array<i32>} : memref<8x32xf32, #tpu.memory_space<vmem>>, vector<8x8xf32>,
    %c0_101 = arith.constant 0 : index
    %c0_102 = arith.constant 0 : index
    %194 = vector.load %arg32[%c0_101, %c0_102] : memref<8x32xf32, #tpu.memory_space<vmem>>, vector<8x32xf32>
    %c0_103 = arith.constant 0 : index
    %c0_104 = arith.constant 0 : index
    %195 = vector.load %arg19[%c0_103, %c0_104] : memref<32x32xf32, #tpu.memory_space<vmem>>, vector<32x32xf32>
    %cst_105 = arith.constant dense<0.000000e+00> : vector<8x32xf32>
    %196 = tpu.matmul %194, %195, %cst_105 {dimension_numbers = #tpu.dot_dimension_numbers<[1], [0], [0], [1], [0, 0, 1, 1], [], []>} : vector<8x32xf32>, vector<32x32xf32>, vector<8x32xf32> -> vector<8x32xf32>
    %c0_106 = arith.constant 0 : index
    %c0_107 = arith.constant 0 : index
    %197 = vector.load %arg20[%c0_106, %c0_107] : memref<1x32xf32, #tpu.memory_space<vmem>>, vector<1x32xf32>
    %198 = vector.broadcast %197 : vector<1x32xf32> to vector<8x32xf32>
    %199 = arith.addf %196, %198 : vector<8x32xf32>
    %200 = arith.addf %114, %199 : vector<8x32xf32>
    %cst_108 = arith.constant dense<0.000000e+00> : vector<8xf32>
    %201 = vector.multi_reduction <add>, %200, %cst_108 [1] : vector<8x32xf32> to vector<8xf32>
    %202 = vector.shape_cast %201 : vector<8xf32> to vector<8x1xf32>
    %cst_109 = arith.constant 3.125000e-02 : f32
    %203 = vector.broadcast %cst_109 : f32 to vector<8x1xf32>
    %204 = arith.mulf %202, %203 : vector<8x1xf32>
    %205 = arith.mulf %200, %200 : vector<8x32xf32>
    %cst_110 = arith.constant dense<0.000000e+00> : vector<8xf32>
    %206 = vector.multi_reduction <add>, %205, %cst_110 [1] : vector<8x32xf32> to vector<8xf32>
    %207 = vector.shape_cast %206 : vector<8xf32> to vector<8x1xf32>
    %cst_111 = arith.constant 3.125000e-02 : f32
    %208 = vector.broadcast %cst_111 : f32 to vector<8x1xf32>
    %209 = arith.mulf %207, %208 : vector<8x1xf32>
    %210 = arith.mulf %204, %204 : vector<8x1xf32>
    %211 = arith.subf %209, %210 : vector<8x1xf32>
    %212 = vector.broadcast %204 : vector<8x1xf32> to vector<8x32xf32>
    %213 = arith.subf %200, %212 : vector<8x32xf32>
    %cst_112 = arith.constant 9.99999974E-6 : f32
    %214 = vector.broadcast %cst_112 : f32 to vector<8x1xf32>
    %215 = arith.addf %211, %214 : vector<8x1xf32>
    %216 = math.rsqrt %215 : vector<8x1xf32>
    %217 = vector.broadcast %216 : vector<8x1xf32> to vector<8x32xf32>
    %218 = arith.mulf %213, %217 : vector<8x32xf32>
    %c0_113 = arith.constant 0 : index
    %c0_114 = arith.constant 0 : index
    %219 = vector.load %arg27[%c0_113, %c0_114] : memref<1x32xf32, #tpu.memory_space<vmem>>, vector<1x32xf32>
    %220 = vector.broadcast %219 : vector<1x32xf32> to vector<8x32xf32>
    %221 = arith.mulf %218, %220 : vector<8x32xf32>
    %c0_115 = arith.constant 0 : index
    %c0_116 = arith.constant 0 : index
    %222 = vector.load %arg28[%c0_115, %c0_116] : memref<1x32xf32, #tpu.memory_space<vmem>>, vector<1x32xf32>
    %223 = vector.broadcast %222 : vector<1x32xf32> to vector<8x32xf32>
    %224 = arith.addf %221, %223 : vector<8x32xf32>
    %c0_117 = arith.constant 0 : index
    %c0_118 = arith.constant 0 : index
    %225 = vector.load %arg21[%c0_117, %c0_118] : memref<32x64xf32, #tpu.memory_space<vmem>>, vector<32x64xf32>
    %cst_119 = arith.constant dense<0.000000e+00> : vector<8x64xf32>
    %226 = tpu.matmul %224, %225, %cst_119 {dimension_numbers = #tpu.dot_dimension_numbers<[1], [0], [0], [1], [0, 0, 1, 1], [], []>} : vector<8x32xf32>, vector<32x64xf32>, vector<8x64xf32> -> vector<8x64xf32>
    %c0_120 = arith.constant 0 : index
    %c0_121 = arith.constant 0 : index
    %227 = vector.load %arg22[%c0_120, %c0_121] : memref<1x64xf32, #tpu.memory_space<vmem>>, vector<1x64xf32>
    %228 = vector.broadcast %227 : vector<1x64xf32> to vector<8x64xf32>
    %229 = arith.addf %226, %228 : vector<8x64xf32>
    %cst_122 = arith.constant 0.000000e+00 : f32
    %230 = vector.broadcast %cst_122 : f32 to vector<8x64xf32>
    %231 = arith.maximumf %229, %230 : vector<8x64xf32>
    %c0_123 = arith.constant 0 : index
    %c0_124 = arith.constant 0 : index
    %232 = vector.load %arg23[%c0_123, %c0_124] : memref<64x32xf32, #tpu.memory_space<vmem>>, vector<64x32xf32>
    %cst_125 = arith.constant dense<0.000000e+00> : vector<8x32xf32>
    %233 = tpu.matmul %231, %232, %cst_125 {dimension_numbers = #tpu.dot_dimension_numbers<[1], [0], [0], [1], [0, 0, 1, 1], [], []>} : vector<8x64xf32>, vector<64x32xf32>, vector<8x32xf32> -> vector<8x32xf32>
    %c0_126 = arith.constant 0 : index
    %c0_127 = arith.constant 0 : index
    %234 = vector.load %arg24[%c0_126, %c0_127] : memref<1x32xf32, #tpu.memory_space<vmem>>, vector<1x32xf32>
    %235 = vector.broadcast %234 : vector<1x32xf32> to vector<8x32xf32>
    %236 = arith.addf %233, %235 : vector<8x32xf32>
    %237 = arith.addf %224, %236 : vector<8x32xf32>
    %cst_128 = arith.constant dense<0.000000e+00> : vector<8xf32>
    %238 = vector.multi_reduction <add>, %237, %cst_128 [1] : vector<8x32xf32> to vector<8xf32>
    %239 = vector.shape_cast %238 : vector<8xf32> to vector<8x1xf32>
    %cst_129 = arith.constant 3.125000e-02 : f32
    %240 = vector.broadcast %cst_129 : f32 to vector<8x1xf32>
    %241 = arith.mulf %239, %240 : vector<8x1xf32>
    %242 = arith.mulf %237, %237 : vector<8x32xf32>
    %cst_130 = arith.constant dense<0.000000e+00> : vector<8xf32>
    %243 = vector.multi_reduction <add>, %242, %cst_130 [1] : vector<8x32xf32> to vector<8xf32>
    %244 = vector.shape_cast %243 : vector<8xf32> to vector<8x1xf32>
    %cst_131 = arith.constant 3.125000e-02 : f32
    %245 = vector.broadcast %cst_131 : f32 to vector<8x1xf32>
    %246 = arith.mulf %244, %245 : vector<8x1xf32>
    %247 = arith.mulf %241, %241 : vector<8x1xf32>
    %248 = arith.subf %246, %247 : vector<8x1xf32>
    %249 = vector.broadcast %241 : vector<8x1xf32> to vector<8x32xf32>
    %250 = arith.subf %237, %249 : vector<8x32xf32>
    %cst_132 = arith.constant 9.99999974E-6 : f32
    %251 = vector.broadcast %cst_132 : f32 to vector<8x1xf32>
    %252 = arith.addf %248, %251 : vector<8x1xf32>
    %253 = math.rsqrt %252 : vector<8x1xf32>
    %254 = vector.broadcast %253 : vector<8x1xf32> to vector<8x32xf32>
    %255 = arith.mulf %250, %254 : vector<8x32xf32>
    %c0_133 = arith.constant 0 : index
    %c0_134 = arith.constant 0 : index
    %256 = vector.load %arg29[%c0_133, %c0_134] : memref<1x32xf32, #tpu.memory_space<vmem>>, vector<1x32xf32>
    %257 = vector.broadcast %256 : vector<1x32xf32> to vector<8x32xf32>
    %258 = arith.mulf %255, %257 : vector<8x32xf32>
    %c0_135 = arith.constant 0 : index
    %c0_136 = arith.constant 0 : index
    %259 = vector.load %arg30[%c0_135, %c0_136] : memref<1x32xf32, #tpu.memory_space<vmem>>, vector<1x32xf32>
    %260 = vector.broadcast %259 : vector<1x32xf32> to vector<8x32xf32>
    %261 = arith.addf %258, %260 : vector<8x32xf32>
    %c0_137 = arith.constant 0 : index
    %c0_138 = arith.constant 0 : index
    %c0_139 = arith.constant 0 : index
    %262 = vector.load %arg31[%c0_137, %c0_138, %c0_139] : memref<1x8x32xf32, #tpu.memory_space<vmem>>, vector<1x8x32xf32>
    %263 = vector.shape_cast %262 : vector<1x8x32xf32> to vector<8x32xf32>
    %264 = vector.shape_cast %261 : vector<8x32xf32> to vector<1x8x32xf32>
    tpu.vector_store %arg31[%c0_137, %c0_138, %c0_139], %264 {strides = array<i32>} : memref<1x8x32xf32, #tpu.memory_space<vmem>>, vector<1x8x32xf32>,
    return
  }
  func.func @transform_0(%arg0: i32) -> (i32, i32, i32) {
    %c0_i32 = arith.constant 0 : i32
    %c0_i32_0 = arith.constant 0 : i32
    %c0_i32_1 = arith.constant 0 : i32
    return %arg0, %c0_i32, %c0_i32_0 : i32, i32, i32
  }
  func.func @transform_1(%arg0: i32) -> (i32, i32, i32) {
    %c0_i32 = arith.constant 0 : i32
    %c0_i32_0 = arith.constant 0 : i32
    %c0_i32_1 = arith.constant 0 : i32
    return %arg0, %c0_i32, %c0_i32_0 : i32, i32, i32
  }
  func.func @transform_2(%arg0: i32) -> (i32, i32) {
    %c0_i32 = arith.constant 0 : i32
    %c0_i32_0 = arith.constant 0 : i32
    %c0_i32_1 = arith.constant 0 : i32
    return %c0_i32, %c0_i32_0 : i32, i32
  }
  func.func @transform_3(%arg0: i32) -> (i32, i32) {
    %c0_i32 = arith.constant 0 : i32
    %c0_i32_0 = arith.constant 0 : i32
    %c0_i32_1 = arith.constant 0 : i32
    return %c0_i32, %c0_i32_0 : i32, i32
  }
  func.func @transform_4(%arg0: i32) -> (i32, i32) {
    %c0_i32 = arith.constant 0 : i32
    %c0_i32_0 = arith.constant 0 : i32
    %c0_i32_1 = arith.constant 0 : i32
    return %c0_i32, %c0_i32_0 : i32, i32
  }
  func.func @transform_5(%arg0: i32) -> (i32, i32) {
    %c0_i32 = arith.constant 0 : i32
    %c0_i32_0 = arith.constant 0 : i32
    %c0_i32_1 = arith.constant 0 : i32
    return %c0_i32, %c0_i32_0 : i32, i32
  }
  func.func @transform_6(%arg0: i32) -> (i32, i32) {
    %c0_i32 = arith.constant 0 : i32
    %c0_i32_0 = arith.constant 0 : i32
    %c0_i32_1 = arith.constant 0 : i32
    return %c0_i32, %c0_i32_0 : i32, i32
  }
  func.func @transform_7(%arg0: i32) -> (i32, i32) {
    %c0_i32 = arith.constant 0 : i32
    %c0_i32_0 = arith.constant 0 : i32
    %c0_i32_1 = arith.constant 0 : i32
    return %c0_i32, %c0_i32_0 : i32, i32
  }
  func.func @transform_8(%arg0: i32) -> (i32, i32) {
    %c0_i32 = arith.constant 0 : i32
    %c0_i32_0 = arith.constant 0 : i32
    %c0_i32_1 = arith.constant 0 : i32
    return %c0_i32, %c0_i32_0 : i32, i32
  }
  func.func @transform_9(%arg0: i32) -> (i32, i32) {
    %c0_i32 = arith.constant 0 : i32
    %c0_i32_0 = arith.constant 0 : i32
    %c0_i32_1 = arith.constant 0 : i32
    return %c0_i32, %c0_i32_0 : i32, i32
  }
  func.func @transform_10(%arg0: i32) -> (i32, i32) {
    %c0_i32 = arith.constant 0 : i32
    %c0_i32_0 = arith.constant 0 : i32
    %c0_i32_1 = arith.constant 0 : i32
    return %c0_i32, %c0_i32_0 : i32, i32
  }
  func.func @transform_11(%arg0: i32) -> (i32, i32) {
    %c0_i32 = arith.constant 0 : i32
    %c0_i32_0 = arith.constant 0 : i32
    %c0_i32_1 = arith.constant 0 : i32
    return %c0_i32, %c0_i32_0 : i32, i32
  }
  func.func @transform_12(%arg0: i32) -> (i32, i32) {
    %c0_i32 = arith.constant 0 : i32
    %c0_i32_0 = arith.constant 0 : i32
    %c0_i32_1 = arith.constant 0 : i32
    return %c0_i32, %c0_i32_0 : i32, i32
  }
  func.func @transform_13(%arg0: i32) -> (i32, i32) {
    %c0_i32 = arith.constant 0 : i32
    %c0_i32_0 = arith.constant 0 : i32
    %c0_i32_1 = arith.constant 0 : i32
    return %c0_i32, %c0_i32_0 : i32, i32
  }
  func.func @transform_14(%arg0: i32) -> (i32, i32) {
    %c0_i32 = arith.constant 0 : i32
    %c0_i32_0 = arith.constant 0 : i32
    %c0_i32_1 = arith.constant 0 : i32
    return %c0_i32, %c0_i32_0 : i32, i32
  }
  func.func @transform_15(%arg0: i32) -> (i32, i32) {
    %c0_i32 = arith.constant 0 : i32
    %c0_i32_0 = arith.constant 0 : i32
    %c0_i32_1 = arith.constant 0 : i32
    return %c0_i32, %c0_i32_0 : i32, i32
  }
  func.func @transform_16(%arg0: i32) -> (i32, i32) {
    %c0_i32 = arith.constant 0 : i32
    %c0_i32_0 = arith.constant 0 : i32
    %c0_i32_1 = arith.constant 0 : i32
    return %c0_i32, %c0_i32_0 : i32, i32
  }
  func.func @transform_17(%arg0: i32) -> (i32, i32) {
    %c0_i32 = arith.constant 0 : i32
    %c0_i32_0 = arith.constant 0 : i32
    %c0_i32_1 = arith.constant 0 : i32
    return %c0_i32, %c0_i32_0 : i32, i32
  }
  func.func @transform_18(%arg0: i32) -> (i32, i32) {
    %c0_i32 = arith.constant 0 : i32
    %c0_i32_0 = arith.constant 0 : i32
    %c0_i32_1 = arith.constant 0 : i32
    return %c0_i32, %c0_i32_0 : i32, i32
  }
  func.func @transform_19(%arg0: i32) -> (i32, i32) {
    %c0_i32 = arith.constant 0 : i32
    %c0_i32_0 = arith.constant 0 : i32
    %c0_i32_1 = arith.constant 0 : i32
    return %c0_i32, %c0_i32_0 : i32, i32
  }
  func.func @transform_20(%arg0: i32) -> (i32, i32) {
    %c0_i32 = arith.constant 0 : i32
    %c0_i32_0 = arith.constant 0 : i32
    %c0_i32_1 = arith.constant 0 : i32
    return %c0_i32, %c0_i32_0 : i32, i32
  }
  func.func @transform_21(%arg0: i32) -> (i32, i32) {
    %c0_i32 = arith.constant 0 : i32
    %c0_i32_0 = arith.constant 0 : i32
    %c0_i32_1 = arith.constant 0 : i32
    return %c0_i32, %c0_i32_0 : i32, i32
  }
  func.func @transform_22(%arg0: i32) -> (i32, i32) {
    %c0_i32 = arith.constant 0 : i32
    %c0_i32_0 = arith.constant 0 : i32
    %c0_i32_1 = arith.constant 0 : i32
    return %c0_i32, %c0_i32_0 : i32, i32
  }
  func.func @transform_23(%arg0: i32) -> (i32, i32) {
    %c0_i32 = arith.constant 0 : i32
    %c0_i32_0 = arith.constant 0 : i32
    %c0_i32_1 = arith.constant 0 : i32
    return %c0_i32, %c0_i32_0 : i32, i32
  }
  func.func @transform_24(%arg0: i32) -> (i32, i32) {
    %c0_i32 = arith.constant 0 : i32
    %c0_i32_0 = arith.constant 0 : i32
    %c0_i32_1 = arith.constant 0 : i32
    return %c0_i32, %c0_i32_0 : i32, i32
  }
  func.func @transform_25(%arg0: i32) -> (i32, i32) {
    %c0_i32 = arith.constant 0 : i32
    %c0_i32_0 = arith.constant 0 : i32
    %c0_i32_1 = arith.constant 0 : i32
    return %c0_i32, %c0_i32_0 : i32, i32
  }
  func.func @transform_26(%arg0: i32) -> (i32, i32) {
    %c0_i32 = arith.constant 0 : i32
    %c0_i32_0 = arith.constant 0 : i32
    %c0_i32_1 = arith.constant 0 : i32
    return %c0_i32, %c0_i32_0 : i32, i32
  }
  func.func @transform_27(%arg0: i32) -> (i32, i32) {
    %c0_i32 = arith.constant 0 : i32
    %c0_i32_0 = arith.constant 0 : i32
    %c0_i32_1 = arith.constant 0 : i32
    return %c0_i32, %c0_i32_0 : i32, i32
  }
  func.func @transform_28(%arg0: i32) -> (i32, i32) {
    %c0_i32 = arith.constant 0 : i32
    %c0_i32_0 = arith.constant 0 : i32
    %c0_i32_1 = arith.constant 0 : i32
    return %c0_i32, %c0_i32_0 : i32, i32
  }
  func.func @transform_29(%arg0: i32) -> (i32, i32) {
    %c0_i32 = arith.constant 0 : i32
    %c0_i32_0 = arith.constant 0 : i32
    %c0_i32_1 = arith.constant 0 : i32
    return %c0_i32, %c0_i32_0 : i32, i32
  }
  func.func @transform_30(%arg0: i32) -> (i32, i32, i32) {
    %c0_i32 = arith.constant 0 : i32
    %c0_i32_0 = arith.constant 0 : i32
    %c0_i32_1 = arith.constant 0 : i32
    return %arg0, %c0_i32, %c0_i32_0 : i32, i32, i32
  }
}

</mosaic_0001>

<llo_original>
// kernel: tpu_custom_call.1
$region0: #{tpu_custom_call.1}
  #allocation0 [shape = 'u32[]', space=smem, size = 0x4, offset = 0x4, fixed_abs, tag = 'smem constant byte address 0x4 - core index']
  #allocation1 [shape = 'u32[144,128]{1,0:T(1,128)}', space=vmem, size = 0x12000, scoped, tag = 'internal scratch']
  #allocation2 [shape = 'f32[8,32]{1,0:T(8,128)}', space=vmem, size = 0x1000, scoped, tag = 'scratch operand']
  %s0 = inlined_call_operand.smem [shape: u32[31], index: -1, kind: input, shape index: {}]
  %s1 = sld [smem:[%s0]]
  %s2 = scalar_lea.smem %s0, 1
  %s3 = sld [smem:[%s2]]
  %s4 = scalar_lea.smem %s0, 2
  %s5 = sld [smem:[%s4]]
  %s6 = scalar_lea.smem %s0, 3
  %s7 = sld [smem:[%s6]]
  %s8 = scalar_lea.smem %s0, 4
  %s9 = sld [smem:[%s8]]
  %s10 = scalar_lea.smem %s0, 5
  %s11 = sld [smem:[%s10]]
  %s12 = scalar_lea.smem %s0, 6
  %s13 = sld [smem:[%s12]]
  %s14 = scalar_lea.smem %s0, 7
  %s15 = sld [smem:[%s14]]
  %s16 = scalar_lea.smem %s0, 8
  %s17 = sld [smem:[%s16]]
  %s18 = scalar_lea.smem %s0, 9
  %s19 = sld [smem:[%s18]]
  %s20 = scalar_lea.smem %s0, 10
  %s21 = sld [smem:[%s20]]
  %s22 = scalar_lea.smem %s0, 11
  %s23 = sld [smem:[%s22]]
  %s24 = scalar_lea.smem %s0, 12
  %s25 = sld [smem:[%s24]]
  %s26 = scalar_lea.smem %s0, 13
  %s27 = sld [smem:[%s26]]
  %s28 = scalar_lea.smem %s0, 14
  %s29 = sld [smem:[%s28]]
  %s30 = scalar_lea.smem %s0, 15
  %s31 = sld [smem:[%s30]]
  %s32 = scalar_lea.smem %s0, 16
  %s33 = sld [smem:[%s32]]
  %s34 = scalar_lea.smem %s0, 17
  %s35 = sld [smem:[%s34]]
  %s36 = scalar_lea.smem %s0, 18
  %s37 = sld [smem:[%s36]]
  %s38 = scalar_lea.smem %s0, 19
  %s39 = sld [smem:[%s38]]
  %s40 = scalar_lea.smem %s0, 20
  %s41 = sld [smem:[%s40]]
  %s42 = scalar_lea.smem %s0, 21
  %s43 = sld [smem:[%s42]]
  %s44 = scalar_lea.smem %s0, 22
  %s45 = sld [smem:[%s44]]
  %s46 = scalar_lea.smem %s0, 23
  %s47 = sld [smem:[%s46]]
  %s48 = scalar_lea.smem %s0, 24
  %s49 = sld [smem:[%s48]]
  %s50 = scalar_lea.smem %s0, 25
  %s51 = sld [smem:[%s50]]
  %s52 = scalar_lea.smem %s0, 26
  %s53 = sld [smem:[%s52]]
  %s54 = scalar_lea.smem %s0, 27
  %s55 = sld [smem:[%s54]]
  %s56 = scalar_lea.smem %s0, 28
  %s57 = sld [smem:[%s56]]
  %s58 = scalar_lea.smem %s0, 29
  %s59 = sld [smem:[%s58]]
  %s60 = scalar_lea.smem %s0, 30
  %s61 = sld [smem:[%s60]]
  %s62 = sld [smem:[#allocation0]]
  $region213: #{tpu_custom_call.1} parent=0
    _
  %s64 = ssub.s32 1, %s62
  %s65 = scalar_select 0, %s64, %s62
  $region1: #{tpu_custom_call.1} parent=0
    #allocation3 [shape = 'u8[8192]{0}', space=vmem, size = 0x2000, scoped, tag = 'input window, operand 0']
    #allocation4 [shape = 's32[2]{0}', space=sflag, size = 0x8, scoped, tag = 'scoped memory for tpu_custom_call.1']
    #allocation5 [shape = 's32[2]{0}', space=sflag, size = 0x8, scoped, tag = 'scoped memory for tpu_custom_call.1']
    #allocation6 [shape = 'u8[4096]{0}', space=vmem, size = 0x1000, scoped, tag = 'input window, operand 2, single buffered']
    #allocation7 [shape = 's32[1]{0}', space=sflag, size = 0x4, scoped, tag = 'scoped memory for tpu_custom_call.1']
    #allocation8 [shape = 'u8[8192]{0}', space=vmem, size = 0x2000, scoped, tag = 'input window, operand 3, single buffered']
    #allocation9 [shape = 'u8[512]{0}', space=vmem, size = 0x400, scoped, tag = 'input window, operand 5, single buffered']
    #allocation10 [shape = 's32[1]{0}', space=sflag, size = 0x4, scoped, tag = 'scoped memory for tpu_custom_call.1']
    #allocation11 [shape = 'u8[512]{0}', space=vmem, size = 0x400, scoped, tag = 'input window, operand 7, single buffered']
    #allocation12 [shape = 'u8[16384]{0}', space=vmem, size = 0x4000, scoped, tag = 'input window, operand 8, single buffered']
    #allocation13 [shape = 's32[1]{0}', space=sflag, size = 0x4, scoped, tag = 'scoped memory for tpu_custom_call.1']
    #allocation14 [shape = 'u8[512]{0}', space=vmem, size = 0x400, scoped, tag = 'input window, operand 9, single buffered']
    #allocation15 [shape = 'u8[512]{0}', space=vmem, size = 0x400, scoped, tag = 'input window, operand 11, single buffered']
    #allocation16 [shape = 's32[1]{0}', space=sflag, size = 0x4, scoped, tag = 'scoped memory for tpu_custom_call.1']
    #allocation17 [shape = 'u8[16384]{0}', space=vmem, size = 0x4000, scoped, tag = 'input window, operand 12, single buffered']
    #allocation18 [shape = 'u8[512]{0}', space=vmem, size = 0x400, scoped, tag = 'input window, operand 13, single buffered']
    #allocation19 [shape = 's32[1]{0}', space=sflag, size = 0x4, scoped, tag = 'scoped memory for tpu_custom_call.1']
    #allocation20 [shape = 'u8[16384]{0}', space=vmem, size = 0x4000, scoped, tag = 'input window, operand 14, single buffered']
    #allocation21 [shape = 'u8[512]{0}', space=vmem, size = 0x400, scoped, tag = 'input window, operand 15, single buffered']
    #allocation22 [shape = 's32[1]{0}', space=sflag, size = 0x4, scoped, tag = 'scoped memory for tpu_custom_call.1']
    #allocation23 [shape = 'u8[16384]{0}', space=vmem, size = 0x4000, scoped, tag = 'input window, operand 16, single buffered']
    #allocation24 [shape = 'u8[512]{0}', space=vmem, size = 0x400, scoped, tag = 'input window, operand 17, single buffered']
    #allocation25 [shape = 's32[1]{0}', space=sflag, size = 0x4, scoped, tag = 'scoped memory for tpu_custom_call.1']
    #allocation26 [shape = 'u8[16384]{0}', space=vmem, size = 0x4000, scoped, tag = 'input window, operand 20, single buffered']
    #allocation27 [shape = 'u8[8192]{0}', space=vmem, size = 0x2000, scoped, tag = 'output window, operand 0']
    %66 = vsyncpa [#allocation4], 0
    %s67 = scalar_lea.sflag [#allocation4], 1
    %68 = vsyncpa %s67, 0
    %69 = vsyncpa [#allocation7], 0
    %70 = vsyncpa [#allocation10], 0
    %71 = vsyncpa [#allocation13], 0
    %72 = vsyncpa [#allocation16], 0
    %73 = vsyncpa [#allocation19], 0
    %74 = vsyncpa [#allocation22], 0
    %75 = vsyncpa [#allocation25], 0
    %76 = vsyncpa [#allocation5], 0
    %s77 = scalar_lea.sflag [#allocation5], 1
    %78 = vsyncpa %s77, 0
    loop: start=0, step=1, limit=4
    $region2: #{tpu_custom_call.1} parent=1 // loop_pre_header
      _
    $region3: #{tpu_custom_call.1} parent=1 // loop_header
      %s80 = sphi 0, %s84
      %p81 = scmp.ge.s32.totalorder %s80, 4
      %s90 = sphi 0, %s92
      %s93 = sphi 0, %s90
      %s94 = sphi 0, %s93
      %s110 = sphi 0, %s94
      %s116 = sphi 0, %s118
      %s119 = sphi 0, %s116
      %s120 = sphi 0, %s119
      %s136 = sphi 0, %s120
      %s140 = sphi 0, %s140
      %s142 = sphi 0, %s140
      %s143 = sphi 0, %s142
      %s157 = sphi 0, %s143
      %s161 = sphi 0, %s161
      %s163 = sphi 0, %s161
      %s164 = sphi 0, %s163
      %s178 = sphi 0, %s164
      %s182 = sphi 0, %s182
      %s184 = sphi 0, %s182
      %s185 = sphi 0, %s184
      %s199 = sphi 0, %s185
      %s203 = sphi 0, %s203
      %s205 = sphi 0, %s203
      %s206 = sphi 0, %s205
      %s220 = sphi 0, %s206
      %s224 = sphi 0, %s224
      %s226 = sphi 0, %s224
      %s227 = sphi 0, %s226
      %s241 = sphi 0, %s227
      %s245 = sphi 0, %s245
      %s247 = sphi 0, %s245
      %s248 = sphi 0, %s247
      %s262 = sphi 0, %s248
      %s266 = sphi 0, %s266
      %s268 = sphi 0, %s266
      %s269 = sphi 0, %s268
      %s283 = sphi 0, %s269
      %s287 = sphi 0, %s287
      %s289 = sphi 0, %s287
      %s290 = sphi 0, %s289
      %s304 = sphi 0, %s290
      %s308 = sphi 0, %s308
      %s310 = sphi 0, %s308
      %s311 = sphi 0, %s310
      %s325 = sphi 0, %s311
      %s329 = sphi 0, %s329
      %s331 = sphi 0, %s329
      %s332 = sphi 0, %s331
      %s346 = sphi 0, %s332
      %s350 = sphi 0, %s350
      %s352 = sphi 0, %s350
      %s353 = sphi 0, %s352
      %s367 = sphi 0, %s353
      %s371 = sphi 0, %s371
      %s373 = sphi 0, %s371
      %s374 = sphi 0, %s373
      %s388 = sphi 0, %s374
      %s392 = sphi 0, %s392
      %s394 = sphi 0, %s392
      %s395 = sphi 0, %s394
      %s409 = sphi 0, %s395
      %s413 = sphi 0, %s413
      %s415 = sphi 0, %s413
      %s416 = sphi 0, %s415
      %s430 = sphi 0, %s416
      %s434 = sphi 0, %s434
      %s436 = sphi 0, %s434
      %s437 = sphi 0, %s436
      %s451 = sphi 0, %s437
      %s455 = sphi 0, %s455
      %s457 = sphi 0, %s455
      %s458 = sphi 0, %s457
      %s472 = sphi 0, %s458
      %s476 = sphi 0, %s476
      %s478 = sphi 0, %s476
      %s479 = sphi 0, %s478
      %s493 = sphi 0, %s479
      %s497 = sphi 0, %s497
      %s499 = sphi 0, %s497
      %s500 = sphi 0, %s499
      %s514 = sphi 0, %s500
      %s518 = sphi 0, %s518
      %s520 = sphi 0, %s518
      %s521 = sphi 0, %s520
      %s535 = sphi 0, %s521
      %s539 = sphi 0, %s539
      %s541 = sphi 0, %s539
      %s542 = sphi 0, %s541
      %s556 = sphi 0, %s542
      %s560 = sphi 0, %s560
      %s562 = sphi 0, %s560
      %s563 = sphi 0, %s562
      %s577 = sphi 0, %s563
      %s581 = sphi 0, %s581
      %s583 = sphi 0, %s581
      %s584 = sphi 0, %s583
      %s598 = sphi 0, %s584
      %s602 = sphi 0, %s602
      %s604 = sphi 0, %s602
      %s605 = sphi 0, %s604
      %s619 = sphi 0, %s605
      %s623 = sphi 0, %s623
      %s625 = sphi 0, %s623
      %s626 = sphi 0, %s625
      %s640 = sphi 0, %s626
      %s644 = sphi 0, %s644
      %s646 = sphi 0, %s644
      %s647 = sphi 0, %s646
      %s661 = sphi 0, %s647
      %s665 = sphi 0, %s665
      %s667 = sphi 0, %s665
      %s668 = sphi 0, %s667
      %s682 = sphi 0, %s668
      %s686 = sphi 0, %s686
      %s688 = sphi 0, %s686
      %s689 = sphi 0, %s688
      %s703 = sphi 0, %s689
      %s707 = sphi 0, %s707
      %s709 = sphi 0, %s707
      %s710 = sphi 0, %s709
      %s724 = sphi 0, %s710
      %s730 = sphi 0, %s732
      %s733 = sphi 0, %s730
      %s734 = sphi 0, %s733
      %s750 = sphi 0, %s734
    $region4: #{tpu_custom_call.1} parent=1 // loop_header_branch
      %83 = sbr.rel (%p81) target = $region8
    $region5: #{tpu_custom_call.1} parent=1 // loop_body
      %s85 = ssub.s32 %s80, 1
      %s86 = ssub.s32 %s80, 2
      %s87 = sadd.s32 %s80, 1
      %s88 = ssub.s32 %s80, %s87
      %p89 = scmp.eq.s32.totalorder %s88, 0
      %s91 = sadd.s32 %s90, 1
      %s92 = scalar_select %p89, %s90, %s91
      %p95 = pneg %p89
      %p96 = scmp.eq.s32.totalorder %s80, 1
      %p97 = por %p95, %p96
      %p98 = scmp.ne.s32.totalorder %s90, %s93
      %p99 = scmp.eq.s32.totalorder %s80, 0
      %p100 = por %p98, %p99
      %p101 = scmp.ne.s32.totalorder %s90, %s93
      %p102 = scmp.eq.s32.totalorder %s85, 1
      %p103 = por %p101, %p102
      %p104 = scmp.ne.s32.totalorder %s93, %s94
      %p105 = scmp.eq.s32.totalorder %s85, 0
      %p106 = por %p104, %p105
      %p107 = scmp.ne.s32.totalorder %s93, %s94
      %p108 = scmp.eq.s32.totalorder %s86, 1
      %p109 = por %p107, %p108
      %p111 = scmp.ne.s32.totalorder %s94, %s110
      %p112 = scmp.eq.s32.totalorder %s86, 0
      %p113 = por %p111, %p112
      %s114 = ssub.s32 %s80, %s87
      %p115 = scmp.eq.s32.totalorder %s114, 0
      %s117 = sadd.s32 %s116, 1
      %s118 = scalar_select %p115, %s116, %s117
      %p121 = pneg %p115
      %p122 = scmp.eq.s32.totalorder %s80, 1
      %p123 = por %p121, %p122
      %p124 = scmp.ne.s32.totalorder %s116, %s119
      %p125 = scmp.eq.s32.totalorder %s80, 0
      %p126 = por %p124, %p125
      %p127 = scmp.ne.s32.totalorder %s116, %s119
      %p128 = scmp.eq.s32.totalorder %s85, 1
      %p129 = por %p127, %p128
      %p130 = scmp.ne.s32.totalorder %s119, %s120
      %p131 = scmp.eq.s32.totalorder %s85, 0
      %p132 = por %p130, %p131
      %p133 = scmp.ne.s32.totalorder %s119, %s120
      %p134 = scmp.eq.s32.totalorder %s86, 1
      %p135 = por %p133, %p134
      %p137 = scmp.ne.s32.totalorder %s120, %s136
      %p138 = scmp.eq.s32.totalorder %s86, 0
      %p139 = por %p137, %p138
      %s141 = sadd.s32 %s140, 1
      %p144 = scmp.eq.s32.totalorder %s80, 1
      %p145 = scmp.ne.s32.totalorder %s140, %s142
      %p146 = scmp.eq.s32.totalorder %s80, 0
      %p147 = por %p145, %p146
      %p148 = scmp.ne.s32.totalorder %s140, %s142
      %p149 = scmp.eq.s32.totalorder %s85, 1
      %p150 = por %p148, %p149
      %p151 = scmp.ne.s32.totalorder %s142, %s143
      %p152 = scmp.eq.s32.totalorder %s85, 0
      %p153 = por %p151, %p152
      %p154 = scmp.ne.s32.totalorder %s142, %s143
      %p155 = scmp.eq.s32.totalorder %s86, 1
      %p156 = por %p154, %p155
      %p158 = scmp.ne.s32.totalorder %s143, %s157
      %p159 = scmp.eq.s32.totalorder %s86, 0
      %p160 = por %p158, %p159
      %s162 = sadd.s32 %s161, 1
      %p165 = scmp.eq.s32.totalorder %s80, 1
      %p166 = scmp.ne.s32.totalorder %s161, %s163
      %p167 = scmp.eq.s32.totalorder %s80, 0
      %p168 = por %p166, %p167
      %p169 = scmp.ne.s32.totalorder %s161, %s163
      %p170 = scmp.eq.s32.totalorder %s85, 1
      %p171 = por %p169, %p170
      %p172 = scmp.ne.s32.totalorder %s163, %s164
      %p173 = scmp.eq.s32.totalorder %s85, 0
      %p174 = por %p172, %p173
      %p175 = scmp.ne.s32.totalorder %s163, %s164
      %p176 = scmp.eq.s32.totalorder %s86, 1
      %p177 = por %p175, %p176
      %p179 = scmp.ne.s32.totalorder %s164, %s178
      %p180 = scmp.eq.s32.totalorder %s86, 0
      %p181 = por %p179, %p180
      %s183 = sadd.s32 %s182, 1
      %p186 = scmp.eq.s32.totalorder %s80, 1
      %p187 = scmp.ne.s32.totalorder %s182, %s184
      %p188 = scmp.eq.s32.totalorder %s80, 0
      %p189 = por %p187, %p188
      %p190 = scmp.ne.s32.totalorder %s182, %s184
      %p191 = scmp.eq.s32.totalorder %s85, 1
      %p192 = por %p190, %p191
      %p193 = scmp.ne.s32.totalorder %s184, %s185
      %p194 = scmp.eq.s32.totalorder %s85, 0
      %p195 = por %p193, %p194
      %p196 = scmp.ne.s32.totalorder %s184, %s185
      %p197 = scmp.eq.s32.totalorder %s86, 1
      %p198 = por %p196, %p197
      %p200 = scmp.ne.s32.totalorder %s185, %s199
      %p201 = scmp.eq.s32.totalorder %s86, 0
      %p202 = por %p200, %p201
      %s204 = sadd.s32 %s203, 1
      %p207 = scmp.eq.s32.totalorder %s80, 1
      %p208 = scmp.ne.s32.totalorder %s203, %s205
      %p209 = scmp.eq.s32.totalorder %s80, 0
      %p210 = por %p208, %p209
      %p211 = scmp.ne.s32.totalorder %s203, %s205
      %p212 = scmp.eq.s32.totalorder %s85, 1
      %p213 = por %p211, %p212
      %p214 = scmp.ne.s32.totalorder %s205, %s206
      %p215 = scmp.eq.s32.totalorder %s85, 0
      %p216 = por %p214, %p215
      %p217 = scmp.ne.s32.totalorder %s205, %s206
      %p218 = scmp.eq.s32.totalorder %s86, 1
      %p219 = por %p217, %p218
      %p221 = scmp.ne.s32.totalorder %s206, %s220
      %p222 = scmp.eq.s32.totalorder %s86, 0
      %p223 = por %p221, %p222
      %s225 = sadd.s32 %s224, 1
      %p228 = scmp.eq.s32.totalorder %s80, 1
      %p229 = scmp.ne.s32.totalorder %s224, %s226
      %p230 = scmp.eq.s32.totalorder %s80, 0
      %p231 = por %p229, %p230
      %p232 = scmp.ne.s32.totalorder %s224, %s226
      %p233 = scmp.eq.s32.totalorder %s85, 1
      %p234 = por %p232, %p233
      %p235 = scmp.ne.s32.totalorder %s226, %s227
      %p236 = scmp.eq.s32.totalorder %s85, 0
      %p237 = por %p235, %p236
      %p238 = scmp.ne.s32.totalorder %s226, %s227
      %p239 = scmp.eq.s32.totalorder %s86, 1
      %p240 = por %p238, %p239
      %p242 = scmp.ne.s32.totalorder %s227, %s241
      %p243 = scmp.eq.s32.totalorder %s86, 0
      %p244 = por %p242, %p243
      %s246 = sadd.s32 %s245, 1
      %p249 = scmp.eq.s32.totalorder %s80, 1
      %p250 = scmp.ne.s32.totalorder %s245, %s247
      %p251 = scmp.eq.s32.totalorder %s80, 0
      %p252 = por %p250, %p251
      %p253 = scmp.ne.s32.totalorder %s245, %s247
      %p254 = scmp.eq.s32.totalorder %s85, 1
      %p255 = por %p253, %p254
      %p256 = scmp.ne.s32.totalorder %s247, %s248
      %p257 = scmp.eq.s32.totalorder %s85, 0
      %p258 = por %p256, %p257
      %p259 = scmp.ne.s32.totalorder %s247, %s248
      %p260 = scmp.eq.s32.totalorder %s86, 1
      %p261 = por %p259, %p260
      %p263 = scmp.ne.s32.totalorder %s248, %s262
      %p264 = scmp.eq.s32.totalorder %s86, 0
      %p265 = por %p263, %p264
      %s267 = sadd.s32 %s266, 1
      %p270 = scmp.eq.s32.totalorder %s80, 1
      %p271 = scmp.ne.s32.totalorder %s266, %s268
      %p272 = scmp.eq.s32.totalorder %s80, 0
      %p273 = por %p271, %p272
      %p274 = scmp.ne.s32.totalorder %s266, %s268
      %p275 = scmp.eq.s32.totalorder %s85, 1
      %p276 = por %p274, %p275
      %p277 = scmp.ne.s32.totalorder %s268, %s269
      %p278 = scmp.eq.s32.totalorder %s85, 0
      %p279 = por %p277, %p278
      %p280 = scmp.ne.s32.totalorder %s268, %s269
      %p281 = scmp.eq.s32.totalorder %s86, 1
      %p282 = por %p280, %p281
      %p284 = scmp.ne.s32.totalorder %s269, %s283
      %p285 = scmp.eq.s32.totalorder %s86, 0
      %p286 = por %p284, %p285
      %s288 = sadd.s32 %s287, 1
      %p291 = scmp.eq.s32.totalorder %s80, 1
      %p292 = scmp.ne.s32.totalorder %s287, %s289
      %p293 = scmp.eq.s32.totalorder %s80, 0
      %p294 = por %p292, %p293
      %p295 = scmp.ne.s32.totalorder %s287, %s289
      %p296 = scmp.eq.s32.totalorder %s85, 1
      %p297 = por %p295, %p296
      %p298 = scmp.ne.s32.totalorder %s289, %s290
      %p299 = scmp.eq.s32.totalorder %s85, 0
      %p300 = por %p298, %p299
      %p301 = scmp.ne.s32.totalorder %s289, %s290
      %p302 = scmp.eq.s32.totalorder %s86, 1
      %p303 = por %p301, %p302
      %p305 = scmp.ne.s32.totalorder %s290, %s304
      %p306 = scmp.eq.s32.totalorder %s86, 0
      %p307 = por %p305, %p306
      %s309 = sadd.s32 %s308, 1
      %p312 = scmp.eq.s32.totalorder %s80, 1
      %p313 = scmp.ne.s32.totalorder %s308, %s310
      %p314 = scmp.eq.s32.totalorder %s80, 0
      %p315 = por %p313, %p314
      %p316 = scmp.ne.s32.totalorder %s308, %s310
      %p317 = scmp.eq.s32.totalorder %s85, 1
      %p318 = por %p316, %p317
      %p319 = scmp.ne.s32.totalorder %s310, %s311
      %p320 = scmp.eq.s32.totalorder %s85, 0
      %p321 = por %p319, %p320
      %p322 = scmp.ne.s32.totalorder %s310, %s311
      %p323 = scmp.eq.s32.totalorder %s86, 1
      %p324 = por %p322, %p323
      %p326 = scmp.ne.s32.totalorder %s311, %s325
      %p327 = scmp.eq.s32.totalorder %s86, 0
      %p328 = por %p326, %p327
      %s330 = sadd.s32 %s329, 1
      %p333 = scmp.eq.s32.totalorder %s80, 1
      %p334 = scmp.ne.s32.totalorder %s329, %s331
      %p335 = scmp.eq.s32.totalorder %s80, 0
      %p336 = por %p334, %p335
      %p337 = scmp.ne.s32.totalorder %s329, %s331
      %p338 = scmp.eq.s32.totalorder %s85, 1
      %p339 = por %p337, %p338
      %p340 = scmp.ne.s32.totalorder %s331, %s332
      %p341 = scmp.eq.s32.totalorder %s85, 0
      %p342 = por %p340, %p341
      %p343 = scmp.ne.s32.totalorder %s331, %s332
      %p344 = scmp.eq.s32.totalorder %s86, 1
      %p345 = por %p343, %p344
      %p347 = scmp.ne.s32.totalorder %s332, %s346
      %p348 = scmp.eq.s32.totalorder %s86, 0
      %p349 = por %p347, %p348
      %s351 = sadd.s32 %s350, 1
      %p354 = scmp.eq.s32.totalorder %s80, 1
      %p355 = scmp.ne.s32.totalorder %s350, %s352
      %p356 = scmp.eq.s32.totalorder %s80, 0
      %p357 = por %p355, %p356
      %p358 = scmp.ne.s32.totalorder %s350, %s352
      %p359 = scmp.eq.s32.totalorder %s85, 1
      %p360 = por %p358, %p359
      %p361 = scmp.ne.s32.totalorder %s352, %s353
      %p362 = scmp.eq.s32.totalorder %s85, 0
      %p363 = por %p361, %p362
      %p364 = scmp.ne.s32.totalorder %s352, %s353
      %p365 = scmp.eq.s32.totalorder %s86, 1
      %p366 = por %p364, %p365
      %p368 = scmp.ne.s32.totalorder %s353, %s367
      %p369 = scmp.eq.s32.totalorder %s86, 0
      %p370 = por %p368, %p369
      %s372 = sadd.s32 %s371, 1
      %p375 = scmp.eq.s32.totalorder %s80, 1
      %p376 = scmp.ne.s32.totalorder %s371, %s373
      %p377 = scmp.eq.s32.totalorder %s80, 0
      %p378 = por %p376, %p377
      %p379 = scmp.ne.s32.totalorder %s371, %s373
      %p380 = scmp.eq.s32.totalorder %s85, 1
      %p381 = por %p379, %p380
      %p382 = scmp.ne.s32.totalorder %s373, %s374
      %p383 = scmp.eq.s32.totalorder %s85, 0
      %p384 = por %p382, %p383
      %p385 = scmp.ne.s32.totalorder %s373, %s374
      %p386 = scmp.eq.s32.totalorder %s86, 1
      %p387 = por %p385, %p386
      %p389 = scmp.ne.s32.totalorder %s374, %s388
      %p390 = scmp.eq.s32.totalorder %s86, 0
      %p391 = por %p389, %p390
      %s393 = sadd.s32 %s392, 1
      %p396 = scmp.eq.s32.totalorder %s80, 1
      %p397 = scmp.ne.s32.totalorder %s392, %s394
      %p398 = scmp.eq.s32.totalorder %s80, 0
      %p399 = por %p397, %p398
      %p400 = scmp.ne.s32.totalorder %s392, %s394
      %p401 = scmp.eq.s32.totalorder %s85, 1
      %p402 = por %p400, %p401
      %p403 = scmp.ne.s32.totalorder %s394, %s395
      %p404 = scmp.eq.s32.totalorder %s85, 0
      %p405 = por %p403, %p404
      %p406 = scmp.ne.s32.totalorder %s394, %s395
      %p407 = scmp.eq.s32.totalorder %s86, 1
      %p408 = por %p406, %p407
      %p410 = scmp.ne.s32.totalorder %s395, %s409
      %p411 = scmp.eq.s32.totalorder %s86, 0
      %p412 = por %p410, %p411
      %s414 = sadd.s32 %s413, 1
      %p417 = scmp.eq.s32.totalorder %s80, 1
      %p418 = scmp.ne.s32.totalorder %s413, %s415
      %p419 = scmp.eq.s32.totalorder %s80, 0
      %p420 = por %p418, %p419
      %p421 = scmp.ne.s32.totalorder %s413, %s415
      %p422 = scmp.eq.s32.totalorder %s85, 1
      %p423 = por %p421, %p422
      %p424 = scmp.ne.s32.totalorder %s415, %s416
      %p425 = scmp.eq.s32.totalorder %s85, 0
      %p426 = por %p424, %p425
      %p427 = scmp.ne.s32.totalorder %s415, %s416
      %p428 = scmp.eq.s32.totalorder %s86, 1
      %p429 = por %p427, %p428
      %p431 = scmp.ne.s32.totalorder %s416, %s430
      %p432 = scmp.eq.s32.totalorder %s86, 0
      %p433 = por %p431, %p432
      %s435 = sadd.s32 %s434, 1
      %p438 = scmp.eq.s32.totalorder %s80, 1
      %p439 = scmp.ne.s32.totalorder %s434, %s436
      %p440 = scmp.eq.s32.totalorder %s80, 0
      %p441 = por %p439, %p440
      %p442 = scmp.ne.s32.totalorder %s434, %s436
      %p443 = scmp.eq.s32.totalorder %s85, 1
      %p444 = por %p442, %p443
      %p445 = scmp.ne.s32.totalorder %s436, %s437
      %p446 = scmp.eq.s32.totalorder %s85, 0
      %p447 = por %p445, %p446
      %p448 = scmp.ne.s32.totalorder %s436, %s437
      %p449 = scmp.eq.s32.totalorder %s86, 1
      %p450 = por %p448, %p449
      %p452 = scmp.ne.s32.totalorder %s437, %s451
      %p453 = scmp.eq.s32.totalorder %s86, 0
      %p454 = por %p452, %p453
      %s456 = sadd.s32 %s455, 1
      %p459 = scmp.eq.s32.totalorder %s80, 1
      %p460 = scmp.ne.s32.totalorder %s455, %s457
      %p461 = scmp.eq.s32.totalorder %s80, 0
      %p462 = por %p460, %p461
      %p463 = scmp.ne.s32.totalorder %s455, %s457
      %p464 = scmp.eq.s32.totalorder %s85, 1
      %p465 = por %p463, %p464
      %p466 = scmp.ne.s32.totalorder %s457, %s458
      %p467 = scmp.eq.s32.totalorder %s85, 0
      %p468 = por %p466, %p467
      %p469 = scmp.ne.s32.totalorder %s457, %s458
      %p470 = scmp.eq.s32.totalorder %s86, 1
      %p471 = por %p469, %p470
      %p473 = scmp.ne.s32.totalorder %s458, %s472
      %p474 = scmp.eq.s32.totalorder %s86, 0
      %p475 = por %p473, %p474
      %s477 = sadd.s32 %s476, 1
      %p480 = scmp.eq.s32.totalorder %s80, 1
      %p481 = scmp.ne.s32.totalorder %s476, %s478
      %p482 = scmp.eq.s32.totalorder %s80, 0
      %p483 = por %p481, %p482
      %p484 = scmp.ne.s32.totalorder %s476, %s478
      %p485 = scmp.eq.s32.totalorder %s85, 1
      %p486 = por %p484, %p485
      %p487 = scmp.ne.s32.totalorder %s478, %s479
      %p488 = scmp.eq.s32.totalorder %s85, 0
      %p489 = por %p487, %p488
      %p490 = scmp.ne.s32.totalorder %s478, %s479
      %p491 = scmp.eq.s32.totalorder %s86, 1
      %p492 = por %p490, %p491
      %p494 = scmp.ne.s32.totalorder %s479, %s493
      %p495 = scmp.eq.s32.totalorder %s86, 0
      %p496 = por %p494, %p495
      %s498 = sadd.s32 %s497, 1
      %p501 = scmp.eq.s32.totalorder %s80, 1
      %p502 = scmp.ne.s32.totalorder %s497, %s499
      %p503 = scmp.eq.s32.totalorder %s80, 0
      %p504 = por %p502, %p503
      %p505 = scmp.ne.s32.totalorder %s497, %s499
      %p506 = scmp.eq.s32.totalorder %s85, 1
      %p507 = por %p505, %p506
      %p508 = scmp.ne.s32.totalorder %s499, %s500
      %p509 = scmp.eq.s32.totalorder %s85, 0
      %p510 = por %p508, %p509
      %p511 = scmp.ne.s32.totalorder %s499, %s500
      %p512 = scmp.eq.s32.totalorder %s86, 1
      %p513 = por %p511, %p512
      %p515 = scmp.ne.s32.totalorder %s500, %s514
      %p516 = scmp.eq.s32.totalorder %s86, 0
      %p517 = por %p515, %p516
      %s519 = sadd.s32 %s518, 1
      %p522 = scmp.eq.s32.totalorder %s80, 1
      %p523 = scmp.ne.s32.totalorder %s518, %s520
      %p524 = scmp.eq.s32.totalorder %s80, 0
      %p525 = por %p523, %p524
      %p526 = scmp.ne.s32.totalorder %s518, %s520
      %p527 = scmp.eq.s32.totalorder %s85, 1
      %p528 = por %p526, %p527
      %p529 = scmp.ne.s32.totalorder %s520, %s521
      %p530 = scmp.eq.s32.totalorder %s85, 0
      %p531 = por %p529, %p530
      %p532 = scmp.ne.s32.totalorder %s520, %s521
      %p533 = scmp.eq.s32.totalorder %s86, 1
      %p534 = por %p532, %p533
      %p536 = scmp.ne.s32.totalorder %s521, %s535
      %p537 = scmp.eq.s32.totalorder %s86, 0
      %p538 = por %p536, %p537
      %s540 = sadd.s32 %s539, 1
      %p543 = scmp.eq.s32.totalorder %s80, 1
      %p544 = scmp.ne.s32.totalorder %s539, %s541
      %p545 = scmp.eq.s32.totalorder %s80, 0
      %p546 = por %p544, %p545
      %p547 = scmp.ne.s32.totalorder %s539, %s541
      %p548 = scmp.eq.s32.totalorder %s85, 1
      %p549 = por %p547, %p548
      %p550 = scmp.ne.s32.totalorder %s541, %s542
      %p551 = scmp.eq.s32.totalorder %s85, 0
      %p552 = por %p550, %p551
      %p553 = scmp.ne.s32.totalorder %s541, %s542
      %p554 = scmp.eq.s32.totalorder %s86, 1
      %p555 = por %p553, %p554
      %p557 = scmp.ne.s32.totalorder %s542, %s556
      %p558 = scmp.eq.s32.totalorder %s86, 0
      %p559 = por %p557, %p558
      %s561 = sadd.s32 %s560, 1
      %p564 = scmp.eq.s32.totalorder %s80, 1
      %p565 = scmp.ne.s32.totalorder %s560, %s562
      %p566 = scmp.eq.s32.totalorder %s80, 0
      %p567 = por %p565, %p566
      %p568 = scmp.ne.s32.totalorder %s560, %s562
      %p569 = scmp.eq.s32.totalorder %s85, 1
      %p570 = por %p568, %p569
      %p571 = scmp.ne.s32.totalorder %s562, %s563
      %p572 = scmp.eq.s32.totalorder %s85, 0
      %p573 = por %p571, %p572
      %p574 = scmp.ne.s32.totalorder %s562, %s563
      %p575 = scmp.eq.s32.totalorder %s86, 1
      %p576 = por %p574, %p575
      %p578 = scmp.ne.s32.totalorder %s563, %s577
      %p579 = scmp.eq.s32.totalorder %s86, 0
      %p580 = por %p578, %p579
      %s582 = sadd.s32 %s581, 1
      %p585 = scmp.eq.s32.totalorder %s80, 1
      %p586 = scmp.ne.s32.totalorder %s581, %s583
      %p587 = scmp.eq.s32.totalorder %s80, 0
      %p588 = por %p586, %p587
      %p589 = scmp.ne.s32.totalorder %s581, %s583
      %p590 = scmp.eq.s32.totalorder %s85, 1
      %p591 = por %p589, %p590
      %p592 = scmp.ne.s32.totalorder %s583, %s584
      %p593 = scmp.eq.s32.totalorder %s85, 0
      %p594 = por %p592, %p593
      %p595 = scmp.ne.s32.totalorder %s583, %s584
      %p596 = scmp.eq.s32.totalorder %s86, 1
      %p597 = por %p595, %p596
      %p599 = scmp.ne.s32.totalorder %s584, %s598
      %p600 = scmp.eq.s32.totalorder %s86, 0
      %p601 = por %p599, %p600
      %s603 = sadd.s32 %s602, 1
      %p606 = scmp.eq.s32.totalorder %s80, 1
      %p607 = scmp.ne.s32.totalorder %s602, %s604
      %p608 = scmp.eq.s32.totalorder %s80, 0
      %p609 = por %p607, %p608
      %p610 = scmp.ne.s32.totalorder %s602, %s604
      %p611 = scmp.eq.s32.totalorder %s85, 1
      %p612 = por %p610, %p611
      %p613 = scmp.ne.s32.totalorder %s604, %s605
      %p614 = scmp.eq.s32.totalorder %s85, 0
      %p615 = por %p613, %p614
      %p616 = scmp.ne.s32.totalorder %s604, %s605
      %p617 = scmp.eq.s32.totalorder %s86, 1
      %p618 = por %p616, %p617
      %p620 = scmp.ne.s32.totalorder %s605, %s619
      %p621 = scmp.eq.s32.totalorder %s86, 0
      %p622 = por %p620, %p621
      %s624 = sadd.s32 %s623, 1
      %p627 = scmp.eq.s32.totalorder %s80, 1
      %p628 = scmp.ne.s32.totalorder %s623, %s625
      %p629 = scmp.eq.s32.totalorder %s80, 0
      %p630 = por %p628, %p629
      %p631 = scmp.ne.s32.totalorder %s623, %s625
      %p632 = scmp.eq.s32.totalorder %s85, 1
      %p633 = por %p631, %p632
      %p634 = scmp.ne.s32.totalorder %s625, %s626
      %p635 = scmp.eq.s32.totalorder %s85, 0
      %p636 = por %p634, %p635
      %p637 = scmp.ne.s32.totalorder %s625, %s626
      %p638 = scmp.eq.s32.totalorder %s86, 1
      %p639 = por %p637, %p638
      %p641 = scmp.ne.s32.totalorder %s626, %s640
      %p642 = scmp.eq.s32.totalorder %s86, 0
      %p643 = por %p641, %p642
      %s645 = sadd.s32 %s644, 1
      %p648 = scmp.eq.s32.totalorder %s80, 1
      %p649 = scmp.ne.s32.totalorder %s644, %s646
      %p650 = scmp.eq.s32.totalorder %s80, 0
      %p651 = por %p649, %p650
      %p652 = scmp.ne.s32.totalorder %s644, %s646
      %p653 = scmp.eq.s32.totalorder %s85, 1
      %p654 = por %p652, %p653
      %p655 = scmp.ne.s32.totalorder %s646, %s647
      %p656 = scmp.eq.s32.totalorder %s85, 0
      %p657 = por %p655, %p656
      %p658 = scmp.ne.s32.totalorder %s646, %s647
      %p659 = scmp.eq.s32.totalorder %s86, 1
      %p660 = por %p658, %p659
      %p662 = scmp.ne.s32.totalorder %s647, %s661
      %p663 = scmp.eq.s32.totalorder %s86, 0
      %p664 = por %p662, %p663
      %s666 = sadd.s32 %s665, 1
      %p669 = scmp.eq.s32.totalorder %s80, 1
      %p670 = scmp.ne.s32.totalorder %s665, %s667
      %p671 = scmp.eq.s32.totalorder %s80, 0
      %p672 = por %p670, %p671
      %p673 = scmp.ne.s32.totalorder %s665, %s667
      %p674 = scmp.eq.s32.totalorder %s85, 1
      %p675 = por %p673, %p674
      %p676 = scmp.ne.s32.totalorder %s667, %s668
      %p677 = scmp.eq.s32.totalorder %s85, 0
      %p678 = por %p676, %p677
      %p679 = scmp.ne.s32.totalorder %s667, %s668
      %p680 = scmp.eq.s32.totalorder %s86, 1
      %p681 = por %p679, %p680
      %p683 = scmp.ne.s32.totalorder %s668, %s682
      %p684 = scmp.eq.s32.totalorder %s86, 0
      %p685 = por %p683, %p684
      %s687 = sadd.s32 %s686, 1
      %p690 = scmp.eq.s32.totalorder %s80, 1
      %p691 = scmp.ne.s32.totalorder %s686, %s688
      %p692 = scmp.eq.s32.totalorder %s80, 0
      %p693 = por %p691, %p692
      %p694 = scmp.ne.s32.totalorder %s686, %s688
      %p695 = scmp.eq.s32.totalorder %s85, 1
      %p696 = por %p694, %p695
      %p697 = scmp.ne.s32.totalorder %s688, %s689
      %p698 = scmp.eq.s32.totalorder %s85, 0
      %p699 = por %p697, %p698
      %p700 = scmp.ne.s32.totalorder %s688, %s689
      %p701 = scmp.eq.s32.totalorder %s86, 1
      %p702 = por %p700, %p701
      %p704 = scmp.ne.s32.totalorder %s689, %s703
      %p705 = scmp.eq.s32.totalorder %s86, 0
      %p706 = por %p704, %p705
      %s708 = sadd.s32 %s707, 1
      %p711 = scmp.eq.s32.totalorder %s80, 1
      %p712 = scmp.ne.s32.totalorder %s707, %s709
      %p713 = scmp.eq.s32.totalorder %s80, 0
      %p714 = por %p712, %p713
      %p715 = scmp.ne.s32.totalorder %s707, %s709
      %p716 = scmp.eq.s32.totalorder %s85, 1
      %p717 = por %p715, %p716
      %p718 = scmp.ne.s32.totalorder %s709, %s710
      %p719 = scmp.eq.s32.totalorder %s85, 0
      %p720 = por %p718, %p719
      %p721 = scmp.ne.s32.totalorder %s709, %s710
      %p722 = scmp.eq.s32.totalorder %s86, 1
      %p723 = por %p721, %p722
      %p725 = scmp.ne.s32.totalorder %s710, %s724
      %p726 = scmp.eq.s32.totalorder %s86, 0
      %p727 = por %p725, %p726
      %s728 = ssub.s32 %s80, %s87
      %p729 = scmp.eq.s32.totalorder %s728, 0
      %s731 = sadd.s32 %s730, 1
      %s732 = scalar_select %p729, %s730, %s731
      %p735 = pneg %p729
      %p736 = scmp.eq.s32.totalorder %s80, 1
      %p737 = por %p735, %p736
      %p738 = scmp.ne.s32.totalorder %s730, %s733
      %p739 = scmp.eq.s32.totalorder %s80, 0
      %p740 = por %p738, %p739
      %p741 = scmp.ne.s32.totalorder %s730, %s733
      %p742 = scmp.eq.s32.totalorder %s85, 1
      %p743 = por %p741, %p742
      %p744 = scmp.ne.s32.totalorder %s733, %s734
      %p745 = scmp.eq.s32.totalorder %s85, 0
      %p746 = por %p744, %p745
      %p747 = scmp.ne.s32.totalorder %s733, %s734
      %p748 = scmp.eq.s32.totalorder %s86, 1
      %p749 = por %p747, %p748
      %p751 = scmp.ne.s32.totalorder %s734, %s750
      %p752 = scmp.eq.s32.totalorder %s86, 0
      %p753 = por %p751, %p752
      %p754 = scmp.le.s32.totalorder 1, %s80
      %p755 = scmp.lt.s32.totalorder %s80, 3
      %p756 = pnand %p754, %p755
      %p757 = pneg %p756
      // Predicated region
      $region9: #{tpu_custom_call.1} parent=5 // pred_check
        _
      $region10: #{tpu_custom_call.1} parent=5 // pred_check_branch
        %759 = sbr.rel (%p756) target = $region12
      $region11: #{tpu_custom_call.1} parent=5 // pred_region
        %s760 = ssub.s32 %s80, 1
        // Predicated region
        $region13: #{tpu_custom_call.1} parent=11 // pred_check
          %p761 = pneg %p153
        $region14: #{tpu_custom_call.1} parent=11 // pred_check_branch
          %763 = sbr.rel (%p761) target = $region16
        $region15: #{tpu_custom_call.1} parent=11 // pred_region
          %s765 = ssub.s32 128, 128
          %766 = vsyncadd [#allocation7], %s765
          %s768 = sshll.u32 [#allocation6], 4
          %s769 = int_to_ptr.vmem [resolvable:$true] %s768
          %771 = dma.hbm_to_vmem [thread:$0]  %s5, 128, %s769, [#allocation7]
        $region16: #{tpu_custom_call.1} parent=11 // pred_fallthru
          _
        // Predicated region
        $region17: #{tpu_custom_call.1} parent=11 // pred_check
          %p772 = pneg %p174
        $region18: #{tpu_custom_call.1} parent=11 // pred_check_branch
          %774 = sbr.rel (%p772) target = $region20
        $region19: #{tpu_custom_call.1} parent=11 // pred_region
          %s776 = ssub.s32 256, 256
          %777 = vsyncadd [#allocation7], %s776
          %s778 = sshll.u32 [#allocation8], 4
          %s779 = int_to_ptr.vmem [resolvable:$true] %s778
          %784 = dma.hbm_to_vmem [thread:$0]  %s7, 256, %s779, [#allocation7], 128, 128, 8
        $region20: #{tpu_custom_call.1} parent=11 // pred_fallthru
          _
        // Predicated region
        $region21: #{tpu_custom_call.1} parent=11 // pred_check
          %p785 = pneg %p195
        $region22: #{tpu_custom_call.1} parent=11 // pred_check_branch
          %787 = sbr.rel (%p785) target = $region24
        $region23: #{tpu_custom_call.1} parent=11 // pred_region
          _
        $region24: #{tpu_custom_call.1} parent=11 // pred_fallthru
          _
        // Predicated region
        $region25: #{tpu_custom_call.1} parent=11 // pred_check
          %p788 = pneg %p216
        $region26: #{tpu_custom_call.1} parent=11 // pred_check_branch
          %790 = sbr.rel (%p788) target = $region28
        $region27: #{tpu_custom_call.1} parent=11 // pred_region
          %s792 = ssub.s32 16, 16
          %793 = vsyncadd [#allocation10], %s792
          %s795 = sshll.u32 [#allocation9], 4
          %s796 = int_to_ptr.vmem [resolvable:$true] %s795
          %798 = dma.hbm_to_vmem [thread:$0]  %s11, 16, %s796, [#allocation10]
        $region28: #{tpu_custom_call.1} parent=11 // pred_fallthru
          _
        // Predicated region
        $region29: #{tpu_custom_call.1} parent=11 // pred_check
          %p799 = pneg %p237
        $region30: #{tpu_custom_call.1} parent=11 // pred_check_branch
          %801 = sbr.rel (%p799) target = $region32
        $region31: #{tpu_custom_call.1} parent=11 // pred_region
          _
        $region32: #{tpu_custom_call.1} parent=11 // pred_fallthru
          _
        // Predicated region
        $region33: #{tpu_custom_call.1} parent=11 // pred_check
          %p802 = pneg %p258
        $region34: #{tpu_custom_call.1} parent=11 // pred_check_branch
          %804 = sbr.rel (%p802) target = $region36
        $region35: #{tpu_custom_call.1} parent=11 // pred_region
          %s806 = ssub.s32 16, 16
          %807 = vsyncadd [#allocation10], %s806
          %s809 = sshll.u32 [#allocation11], 4
          %s810 = int_to_ptr.vmem [resolvable:$true] %s809
          %812 = dma.hbm_to_vmem [thread:$0]  %s15, 16, %s810, [#allocation10]
        $region36: #{tpu_custom_call.1} parent=11 // pred_fallthru
          _
        // Predicated region
        $region37: #{tpu_custom_call.1} parent=11 // pred_check
          %p813 = pneg %p279
        $region38: #{tpu_custom_call.1} parent=11 // pred_check_branch
          %815 = sbr.rel (%p813) target = $region40
        $region39: #{tpu_custom_call.1} parent=11 // pred_region
          %s817 = ssub.s32 512, 512
          %818 = vsyncadd [#allocation13], %s817
          %s819 = sshll.u32 [#allocation12], 4
          %s820 = int_to_ptr.vmem [resolvable:$true] %s819
          %825 = dma.hbm_to_vmem [thread:$0]  %s17, 512, %s820, [#allocation13], 128, 128, 8
        $region40: #{tpu_custom_call.1} parent=11 // pred_fallthru
          _
        // Predicated region
        $region41: #{tpu_custom_call.1} parent=11 // pred_check
          %p826 = pneg %p300
        $region42: #{tpu_custom_call.1} parent=11 // pred_check_branch
          %828 = sbr.rel (%p826) target = $region44
        $region43: #{tpu_custom_call.1} parent=11 // pred_region
          %s830 = ssub.s32 16, 16
          %831 = vsyncadd [#allocation13], %s830
          %s833 = sshll.u32 [#allocation14], 4
          %s834 = int_to_ptr.vmem [resolvable:$true] %s833
          %836 = dma.hbm_to_vmem [thread:$0]  %s19, 16, %s834, [#allocation13]
        $region44: #{tpu_custom_call.1} parent=11 // pred_fallthru
          _
        // Predicated region
        $region45: #{tpu_custom_call.1} parent=11 // pred_check
          %p837 = pneg %p321
        $region46: #{tpu_custom_call.1} parent=11 // pred_check_branch
          %839 = sbr.rel (%p837) target = $region48
        $region47: #{tpu_custom_call.1} parent=11 // pred_region
          _
        $region48: #{tpu_custom_call.1} parent=11 // pred_fallthru
          _
        // Predicated region
        $region49: #{tpu_custom_call.1} parent=11 // pred_check
          %p840 = pneg %p342
        $region50: #{tpu_custom_call.1} parent=11 // pred_check_branch
          %842 = sbr.rel (%p840) target = $region52
        $region51: #{tpu_custom_call.1} parent=11 // pred_region
          %s844 = ssub.s32 16, 16
          %845 = vsyncadd [#allocation16], %s844
          %s847 = sshll.u32 [#allocation15], 4
          %s848 = int_to_ptr.vmem [resolvable:$true] %s847
          %850 = dma.hbm_to_vmem [thread:$0]  %s23, 16, %s848, [#allocation16]
        $region52: #{tpu_custom_call.1} parent=11 // pred_fallthru
          _
        // Predicated region
        $region53: #{tpu_custom_call.1} parent=11 // pred_check
          %p851 = pneg %p363
        $region54: #{tpu_custom_call.1} parent=11 // pred_check_branch
          %853 = sbr.rel (%p851) target = $region56
        $region55: #{tpu_custom_call.1} parent=11 // pred_region
          %s855 = ssub.s32 512, 512
          %856 = vsyncadd [#allocation16], %s855
          %s857 = sshll.u32 [#allocation17], 4
          %s858 = int_to_ptr.vmem [resolvable:$true] %s857
          %863 = dma.hbm_to_vmem [thread:$0]  %s25, 512, %s858, [#allocation16], 128, 128, 8
        $region56: #{tpu_custom_call.1} parent=11 // pred_fallthru
          _
        // Predicated region
        $region57: #{tpu_custom_call.1} parent=11 // pred_check
          %p864 = pneg %p384
        $region58: #{tpu_custom_call.1} parent=11 // pred_check_branch
          %866 = sbr.rel (%p864) target = $region60
        $region59: #{tpu_custom_call.1} parent=11 // pred_region
          %s868 = ssub.s32 16, 16
          %869 = vsyncadd [#allocation19], %s868
          %s871 = sshll.u32 [#allocation18], 4
          %s872 = int_to_ptr.vmem [resolvable:$true] %s871
          %874 = dma.hbm_to_vmem [thread:$0]  %s27, 16, %s872, [#allocation19]
        $region60: #{tpu_custom_call.1} parent=11 // pred_fallthru
          _
        // Predicated region
        $region61: #{tpu_custom_call.1} parent=11 // pred_check
          %p875 = pneg %p405
        $region62: #{tpu_custom_call.1} parent=11 // pred_check_branch
          %877 = sbr.rel (%p875) target = $region64
        $region63: #{tpu_custom_call.1} parent=11 // pred_region
          %s879 = ssub.s32 512, 512
          %880 = vsyncadd [#allocation19], %s879
          %s881 = sshll.u32 [#allocation20], 4
          %s882 = int_to_ptr.vmem [resolvable:$true] %s881
          %887 = dma.hbm_to_vmem [thread:$0]  %s29, 512, %s882, [#allocation19], 128, 128, 8
        $region64: #{tpu_custom_call.1} parent=11 // pred_fallthru
          _
        // Predicated region
        $region65: #{tpu_custom_call.1} parent=11 // pred_check
          %p888 = pneg %p426
        $region66: #{tpu_custom_call.1} parent=11 // pred_check_branch
          %890 = sbr.rel (%p888) target = $region68
        $region67: #{tpu_custom_call.1} parent=11 // pred_region
          %s892 = ssub.s32 16, 16
          %893 = vsyncadd [#allocation22], %s892
          %s895 = sshll.u32 [#allocation21], 4
          %s896 = int_to_ptr.vmem [resolvable:$true] %s895
          %898 = dma.hbm_to_vmem [thread:$0]  %s31, 16, %s896, [#allocation22]
        $region68: #{tpu_custom_call.1} parent=11 // pred_fallthru
          _
        // Predicated region
        $region69: #{tpu_custom_call.1} parent=11 // pred_check
          %p899 = pneg %p447
        $region70: #{tpu_custom_call.1} parent=11 // pred_check_branch
          %901 = sbr.rel (%p899) target = $region72
        $region71: #{tpu_custom_call.1} parent=11 // pred_region
          %s903 = ssub.s32 512, 512
          %904 = vsyncadd [#allocation22], %s903
          %s905 = sshll.u32 [#allocation23], 4
          %s906 = int_to_ptr.vmem [resolvable:$true] %s905
          %911 = dma.hbm_to_vmem [thread:$0]  %s33, 512, %s906, [#allocation22], 128, 128, 8
        $region72: #{tpu_custom_call.1} parent=11 // pred_fallthru
          _
        // Predicated region
        $region73: #{tpu_custom_call.1} parent=11 // pred_check
          %p912 = pneg %p468
        $region74: #{tpu_custom_call.1} parent=11 // pred_check_branch
          %914 = sbr.rel (%p912) target = $region76
        $region75: #{tpu_custom_call.1} parent=11 // pred_region
          %s916 = ssub.s32 16, 16
          %917 = vsyncadd [#allocation25], %s916
          %s919 = sshll.u32 [#allocation24], 4
          %s920 = int_to_ptr.vmem [resolvable:$true] %s919
          %922 = dma.hbm_to_vmem [thread:$0]  %s35, 16, %s920, [#allocation25]
        $region76: #{tpu_custom_call.1} parent=11 // pred_fallthru
          _
        // Predicated region
        $region77: #{tpu_custom_call.1} parent=11 // pred_check
          %p923 = pneg %p489
        $region78: #{tpu_custom_call.1} parent=11 // pred_check_branch
          %925 = sbr.rel (%p923) target = $region80
        $region79: #{tpu_custom_call.1} parent=11 // pred_region
          _
        $region80: #{tpu_custom_call.1} parent=11 // pred_fallthru
          _
        // Predicated region
        $region81: #{tpu_custom_call.1} parent=11 // pred_check
          %p926 = pneg %p510
        $region82: #{tpu_custom_call.1} parent=11 // pred_check_branch
          %928 = sbr.rel (%p926) target = $region84
        $region83: #{tpu_custom_call.1} parent=11 // pred_region
          _
        $region84: #{tpu_custom_call.1} parent=11 // pred_fallthru
          _
        // Predicated region
        $region85: #{tpu_custom_call.1} parent=11 // pred_check
          %p929 = pneg %p531
        $region86: #{tpu_custom_call.1} parent=11 // pred_check_branch
          %931 = sbr.rel (%p929) target = $region88
        $region87: #{tpu_custom_call.1} parent=11 // pred_region
          %s933 = ssub.s32 512, 512
          %934 = vsyncadd [#allocation25], %s933
          %s935 = sshll.u32 [#allocation26], 4
          %s936 = int_to_ptr.vmem [resolvable:$true] %s935
          %941 = dma.hbm_to_vmem [thread:$0]  %s41, 512, %s936, [#allocation25], 128, 128, 8
        $region88: #{tpu_custom_call.1} parent=11 // pred_fallthru
          _
        // Predicated region
        $region89: #{tpu_custom_call.1} parent=11 // pred_check
          %p942 = pneg %p552
        $region90: #{tpu_custom_call.1} parent=11 // pred_check_branch
          %944 = sbr.rel (%p942) target = $region92
        $region91: #{tpu_custom_call.1} parent=11 // pred_region
          _
        $region92: #{tpu_custom_call.1} parent=11 // pred_fallthru
          _
        // Predicated region
        $region93: #{tpu_custom_call.1} parent=11 // pred_check
          %p945 = pneg %p573
        $region94: #{tpu_custom_call.1} parent=11 // pred_check_branch
          %947 = sbr.rel (%p945) target = $region96
        $region95: #{tpu_custom_call.1} parent=11 // pred_region
          _
        $region96: #{tpu_custom_call.1} parent=11 // pred_fallthru
          _
        // Predicated region
        $region97: #{tpu_custom_call.1} parent=11 // pred_check
          %p948 = pneg %p594
        $region98: #{tpu_custom_call.1} parent=11 // pred_check_branch
          %950 = sbr.rel (%p948) target = $region100
        $region99: #{tpu_custom_call.1} parent=11 // pred_region
          _
        $region100: #{tpu_custom_call.1} parent=11 // pred_fallthru
          _
        // Predicated region
        $region101: #{tpu_custom_call.1} parent=11 // pred_check
          %p951 = pneg %p615
        $region102: #{tpu_custom_call.1} parent=11 // pred_check_branch
          %953 = sbr.rel (%p951) target = $region104
        $region103: #{tpu_custom_call.1} parent=11 // pred_region
          _
        $region104: #{tpu_custom_call.1} parent=11 // pred_fallthru
          _
        // Predicated region
        $region105: #{tpu_custom_call.1} parent=11 // pred_check
          %p954 = pneg %p636
        $region106: #{tpu_custom_call.1} parent=11 // pred_check_branch
          %956 = sbr.rel (%p954) target = $region108
        $region107: #{tpu_custom_call.1} parent=11 // pred_region
          _
        $region108: #{tpu_custom_call.1} parent=11 // pred_fallthru
          _
        // Predicated region
        $region109: #{tpu_custom_call.1} parent=11 // pred_check
          %p957 = pneg %p657
        $region110: #{tpu_custom_call.1} parent=11 // pred_check_branch
          %959 = sbr.rel (%p957) target = $region112
        $region111: #{tpu_custom_call.1} parent=11 // pred_region
          _
        $region112: #{tpu_custom_call.1} parent=11 // pred_fallthru
          _
        // Predicated region
        $region113: #{tpu_custom_call.1} parent=11 // pred_check
          %p960 = pneg %p678
        $region114: #{tpu_custom_call.1} parent=11 // pred_check_branch
          %962 = sbr.rel (%p960) target = $region116
        $region115: #{tpu_custom_call.1} parent=11 // pred_region
          _
        $region116: #{tpu_custom_call.1} parent=11 // pred_fallthru
          _
        // Predicated region
        $region117: #{tpu_custom_call.1} parent=11 // pred_check
          %p963 = pneg %p699
        $region118: #{tpu_custom_call.1} parent=11 // pred_check_branch
          %965 = sbr.rel (%p963) target = $region120
        $region119: #{tpu_custom_call.1} parent=11 // pred_region
          _
        $region120: #{tpu_custom_call.1} parent=11 // pred_fallthru
          _
        // Predicated region
        $region121: #{tpu_custom_call.1} parent=11 // pred_check
          %p966 = pneg %p720
        $region122: #{tpu_custom_call.1} parent=11 // pred_check_branch
          %968 = sbr.rel (%p966) target = $region124
        $region123: #{tpu_custom_call.1} parent=11 // pred_region
          _
        $region124: #{tpu_custom_call.1} parent=11 // pred_fallthru
          _
      $region12: #{tpu_custom_call.1} parent=5 // pred_fallthru
        _
      %p969 = scmp.lt.s32.totalorder %s80, 2
      // Predicated region
      $region125: #{tpu_custom_call.1} parent=5 // pred_check
        %p970 = pneg %p969
      $region126: #{tpu_custom_call.1} parent=5 // pred_check_branch
        %972 = sbr.rel (%p970) target = $region128
      $region127: #{tpu_custom_call.1} parent=5 // pred_region
        // Predicated region
        $region129: #{tpu_custom_call.1} parent=127 // pred_check
          %p973 = pneg %p100
        $region130: #{tpu_custom_call.1} parent=127 // pred_check_branch
          %975 = sbr.rel (%p973) target = $region132
        $region131: #{tpu_custom_call.1} parent=127 // pred_region
          %s976 = sand.u32 %s90, 1
          %s977 = scalar_lea.sflag [#allocation4], %s976
          %s978 = sand.u32 %s90, 1
          %s979 = smul.addr %s978, 8
          %s980 = scalar_lea.vmem [#allocation3], %s979
          %s982 = ssub.s32 128, 128
          %983 = vsyncadd %s977, %s982
          %s984 = smul.addr %s80, 128
          %s985 = scalar_lea.hbm %s1, %s984
          %s987 = sshll.u32 %s980, 4
          %s988 = int_to_ptr.vmem [resolvable:$true] %s987
          %990 = dma.hbm_to_vmem [thread:$0]  %s985, 128, %s988, %s977
        $region132: #{tpu_custom_call.1} parent=127 // pred_fallthru
          _
        // Predicated region
        $region133: #{tpu_custom_call.1} parent=127 // pred_check
          %p991 = pneg %p126
        $region134: #{tpu_custom_call.1} parent=127 // pred_check_branch
          %993 = sbr.rel (%p991) target = $region136
        $region135: #{tpu_custom_call.1} parent=127 // pred_region
          %p994 = scmp.lt.s32.totalorder %s80, 1
          %s995 = scalar_select %p994, %s80, 1
          %s996 = smul.addr %s995, 2
          %s997 = smul.addr %s996, 8
          %s998 = scalar_lea.vmem %s3, %s997
        $region136: #{tpu_custom_call.1} parent=127 // pred_fallthru
          _
      $region128: #{tpu_custom_call.1} parent=5 // pred_fallthru
        _
      %p999 = scmp.le.s32.totalorder 1, %s80
      %p1000 = scmp.lt.s32.totalorder %s80, 3
      %p1001 = pnand %p999, %p1000
      %p1002 = pneg %p1001
      // Predicated region
      $region137: #{tpu_custom_call.1} parent=5 // pred_check
        _
      $region138: #{tpu_custom_call.1} parent=5 // pred_check_branch
        %1004 = sbr.rel (%p1001) target = $region140
      $region139: #{tpu_custom_call.1} parent=5 // pred_region
        %s1005 = ssub.s32 %s80, 1
        %s1006 = sand.u32 %s93, 1
        %s1007 = scalar_lea.sflag [#allocation4], %s1006
        %s1008 = sand.u32 %s93, 1
        %s1009 = smul.addr %s1008, 8
        %s1010 = scalar_lea.vmem [#allocation3], %s1009
        // Predicated region
        $region141: #{tpu_custom_call.1} parent=139 // pred_check
          %p1011 = pneg %p106
        $region142: #{tpu_custom_call.1} parent=139 // pred_check_branch
          %1013 = sbr.rel (%p1011) target = $region144
        $region143: #{tpu_custom_call.1} parent=139 // pred_region
          %1014 = dma.done %s1007, 128
        $region144: #{tpu_custom_call.1} parent=139 // pred_fallthru
          _
        // Predicated region
        $region145: #{tpu_custom_call.1} parent=139 // pred_check
          %p1015 = pneg %p153
        $region146: #{tpu_custom_call.1} parent=139 // pred_check_branch
          %1017 = sbr.rel (%p1015) target = $region148
        $region147: #{tpu_custom_call.1} parent=139 // pred_region
          %1018 = dma.done [#allocation7], 128
        $region148: #{tpu_custom_call.1} parent=139 // pred_fallthru
          _
        // Predicated region
        $region149: #{tpu_custom_call.1} parent=139 // pred_check
          %p1019 = pneg %p174
        $region150: #{tpu_custom_call.1} parent=139 // pred_check_branch
          %1021 = sbr.rel (%p1019) target = $region152
        $region151: #{tpu_custom_call.1} parent=139 // pred_region
          %1022 = dma.done [#allocation7], 256
        $region152: #{tpu_custom_call.1} parent=139 // pred_fallthru
          _
        // Predicated region
        $region153: #{tpu_custom_call.1} parent=139 // pred_check
          %p1023 = pneg %p216
        $region154: #{tpu_custom_call.1} parent=139 // pred_check_branch
          %1025 = sbr.rel (%p1023) target = $region156
        $region155: #{tpu_custom_call.1} parent=139 // pred_region
          %1026 = dma.done [#allocation10], 16
        $region156: #{tpu_custom_call.1} parent=139 // pred_fallthru
          _
        // Predicated region
        $region157: #{tpu_custom_call.1} parent=139 // pred_check
          %p1027 = pneg %p258
        $region158: #{tpu_custom_call.1} parent=139 // pred_check_branch
          %1029 = sbr.rel (%p1027) target = $region160
        $region159: #{tpu_custom_call.1} parent=139 // pred_region
          %1030 = dma.done [#allocation10], 16
        $region160: #{tpu_custom_call.1} parent=139 // pred_fallthru
          _
        // Predicated region
        $region161: #{tpu_custom_call.1} parent=139 // pred_check
          %p1031 = pneg %p279
        $region162: #{tpu_custom_call.1} parent=139 // pred_check_branch
          %1033 = sbr.rel (%p1031) target = $region164
        $region163: #{tpu_custom_call.1} parent=139 // pred_region
          %1034 = dma.done [#allocation13], 512
        $region164: #{tpu_custom_call.1} parent=139 // pred_fallthru
          _
        // Predicated region
        $region165: #{tpu_custom_call.1} parent=139 // pred_check
          %p1035 = pneg %p300
        $region166: #{tpu_custom_call.1} parent=139 // pred_check_branch
          %1037 = sbr.rel (%p1035) target = $region168
        $region167: #{tpu_custom_call.1} parent=139 // pred_region
          %1038 = dma.done [#allocation13], 16
        $region168: #{tpu_custom_call.1} parent=139 // pred_fallthru
          _
        // Predicated region
        $region169: #{tpu_custom_call.1} parent=139 // pred_check
          %p1039 = pneg %p342
        $region170: #{tpu_custom_call.1} parent=139 // pred_check_branch
          %1041 = sbr.rel (%p1039) target = $region172
        $region171: #{tpu_custom_call.1} parent=139 // pred_region
          %1042 = dma.done [#allocation16], 16
        $region172: #{tpu_custom_call.1} parent=139 // pred_fallthru
          _
        // Predicated region
        $region173: #{tpu_custom_call.1} parent=139 // pred_check
          %p1043 = pneg %p363
        $region174: #{tpu_custom_call.1} parent=139 // pred_check_branch
          %1045 = sbr.rel (%p1043) target = $region176
        $region175: #{tpu_custom_call.1} parent=139 // pred_region
          %1046 = dma.done [#allocation16], 512
        $region176: #{tpu_custom_call.1} parent=139 // pred_fallthru
          _
        // Predicated region
        $region177: #{tpu_custom_call.1} parent=139 // pred_check
          %p1047 = pneg %p384
        $region178: #{tpu_custom_call.1} parent=139 // pred_check_branch
          %1049 = sbr.rel (%p1047) target = $region180
        $region179: #{tpu_custom_call.1} parent=139 // pred_region
          %1050 = dma.done [#allocation19], 16
        $region180: #{tpu_custom_call.1} parent=139 // pred_fallthru
          _
        // Predicated region
        $region181: #{tpu_custom_call.1} parent=139 // pred_check
          %p1051 = pneg %p405
        $region182: #{tpu_custom_call.1} parent=139 // pred_check_branch
          %1053 = sbr.rel (%p1051) target = $region184
        $region183: #{tpu_custom_call.1} parent=139 // pred_region
          %1054 = dma.done [#allocation19], 512
        $region184: #{tpu_custom_call.1} parent=139 // pred_fallthru
          _
        // Predicated region
        $region185: #{tpu_custom_call.1} parent=139 // pred_check
          %p1055 = pneg %p426
        $region186: #{tpu_custom_call.1} parent=139 // pred_check_branch
          %1057 = sbr.rel (%p1055) target = $region188
        $region187: #{tpu_custom_call.1} parent=139 // pred_region
          %1058 = dma.done [#allocation22], 16
        $region188: #{tpu_custom_call.1} parent=139 // pred_fallthru
          _
        // Predicated region
        $region189: #{tpu_custom_call.1} parent=139 // pred_check
          %p1059 = pneg %p447
        $region190: #{tpu_custom_call.1} parent=139 // pred_check_branch
          %1061 = sbr.rel (%p1059) target = $region192
        $region191: #{tpu_custom_call.1} parent=139 // pred_region
          %1062 = dma.done [#allocation22], 512
        $region192: #{tpu_custom_call.1} parent=139 // pred_fallthru
          _
        // Predicated region
        $region193: #{tpu_custom_call.1} parent=139 // pred_check
          %p1063 = pneg %p468
        $region194: #{tpu_custom_call.1} parent=139 // pred_check_branch
          %1065 = sbr.rel (%p1063) target = $region196
        $region195: #{tpu_custom_call.1} parent=139 // pred_region
          %1066 = dma.done [#allocation25], 16
        $region196: #{tpu_custom_call.1} parent=139 // pred_fallthru
          _
        // Predicated region
        $region197: #{tpu_custom_call.1} parent=139 // pred_check
          %p1067 = pneg %p531
        $region198: #{tpu_custom_call.1} parent=139 // pred_check_branch
          %1069 = sbr.rel (%p1067) target = $region200
        $region199: #{tpu_custom_call.1} parent=139 // pred_region
          %1070 = dma.done [#allocation25], 512
        $region200: #{tpu_custom_call.1} parent=139 // pred_fallthru
          _
        %s1071 = sand.u32 %s93, 1
        %s1072 = scalar_lea.sflag [#allocation4], %s1071
        %s1073 = sand.u32 %s93, 1
        %s1074 = smul.addr %s1073, 8
        %s1075 = scalar_lea.vmem [#allocation3], %s1074
        %p1076 = pneg %p106
        %p1077 = pneg %p103
        %p1078 = scmp.lt.s32.totalorder %s85, 1
        %s1079 = scalar_select %p1078, %s85, 1
        %s1080 = smul.addr %s1079, 2
        %s1081 = smul.addr %s1080, 8
        %s1082 = scalar_lea.vmem %s3, %s1081
        %p1083 = pneg %p132
        %p1084 = pneg %p129
        %p1085 = pneg %p153
        %p1086 = pneg %p150
        %p1087 = pneg %p174
        %p1088 = pneg %p171
        %p1089 = pneg %p195
        %p1090 = pneg %p192
        %p1091 = pneg %p216
        %p1092 = pneg %p213
        %p1093 = pneg %p237
        %p1094 = pneg %p234
        %p1095 = pneg %p258
        %p1096 = pneg %p255
        %p1097 = pneg %p279
        %p1098 = pneg %p276
        %p1099 = pneg %p300
        %p1100 = pneg %p297
        %p1101 = pneg %p321
        %p1102 = pneg %p318
        %p1103 = pneg %p342
        %p1104 = pneg %p339
        %p1105 = pneg %p363
        %p1106 = pneg %p360
        %p1107 = pneg %p384
        %p1108 = pneg %p381
        %p1109 = pneg %p405
        %p1110 = pneg %p402
        %p1111 = pneg %p426
        %p1112 = pneg %p423
        %p1113 = pneg %p447
        %p1114 = pneg %p444
        %p1115 = pneg %p468
        %p1116 = pneg %p465
        %p1117 = pneg %p489
        %p1118 = pneg %p486
        %p1119 = pneg %p510
        %p1120 = pneg %p507
        %p1121 = pneg %p531
        %p1122 = pneg %p528
        %p1123 = pneg %p552
        %p1124 = pneg %p549
        %p1125 = pneg %p573
        %p1126 = pneg %p570
        %p1127 = pneg %p594
        %p1128 = pneg %p591
        %p1129 = pneg %p615
        %p1130 = pneg %p612
        %p1131 = pneg %p636
        %p1132 = pneg %p633
        %p1133 = pneg %p657
        %p1134 = pneg %p654
        %p1135 = pneg %p678
        %p1136 = pneg %p675
        %p1137 = pneg %p699
        %p1138 = pneg %p696
        %p1139 = pneg %p720
        %p1140 = pneg %p717
        %p1141 = pneg %p746
        %p1142 = pneg %p743
        %s1143 = sand.u32 %s733, 1
        %s1144 = scalar_lea.sflag [#allocation5], %s1143
        %s1145 = sand.u32 %s733, 1
        %s1146 = smul.addr %s1145, 8
        %s1147 = scalar_lea.vmem [#allocation27], %s1146
        %p1148 = scmp.lt.s32.totalorder %s85, 1
        %s1149 = scalar_select %p1148, %s85, 1
        %s1150 = smul.addr %s1149, 2
        %s1151 = smul.addr %s1150, 8
        %s1152 = scalar_lea.vmem %s3, %s1151
        %v1153 = vld [vmem:[%s1010] sm:$0xff]
        %v1154 = vld [vmem:[%s1152] sm:$0xff]
        %v1155 = vld [vmem:[%s1152 + $0x8] sm:$0xff]
        %v1156 = vld [vmem:[#allocation6] sm:$0xff]
        %v1157 = vld [vmem:[#allocation8] sm:$0xff]
        %v1158 = vld [vmem:[#allocation8 + $0x8] sm:$0xff]
        %v1159 = vadd.f32 %v1153, %v1156
        %v1160 = vld [vmem:[%s9] sm:$0xff]
        %v1161 = vld [vmem:[%s9 + $0x8] sm:$0xff]
        %v1162 = vld [vmem:[%s9 + $0x10] sm:$0xff]
        %v1163 = vld [vmem:[%s9 + $0x18] sm:$0xff]
        %v1164 = vld [vmem:[#allocation9] sm:$0x1]
        %v1166 = vlaneseq
        %v1167 = vshrl.u32 %v1166, 7
        %v1168 = vsub.s32 0, %v1167
        %v1169 = vrot.slane %v1164, %v1168
        %vm1171 = vcmask 261120
        %v1173 = vsel %vm1171, %v1159, 0
        %1175 = vmatprep.subr.mxu0 0.0
        %1176 = vmatpush1.msra.mxu0 %v1160
        %1177 = vmatprep.subr.mxu0 0.0
        %1178 = vmatpush1.msra.mxu0 %v1161
        %1179 = vmatprep.subr.mxu0 0.0
        %1180 = vmatpush1.msra.mxu0 %v1162
        %1181 = vmatprep.subr.mxu0 0.0
        %1182 = vmatpush1.msra.mxu0 %v1163
        %1183 = vmatprep.subr.mxu0 0.0
        %1184 = vmatpush1.msra.mxu0 0.0
        %1185 = vmatprep.subr.mxu0 0.0
        %1186 = vmatpush1.msra.mxu0 0.0
        %1187 = vmatprep.subr.mxu0 0.0
        %1188 = vmatpush1.msra.mxu0 0.0
        %1189 = vmatprep.subr.mxu0 0.0
        %1190 = vmatpush1.msra.mxu0 0.0
        %1191 = vmatprep.subr.mxu0 0.0
        %1192 = vmatpush1.msra.mxu0 0.0
        %1193 = vmatprep.subr.mxu0 0.0
        %1194 = vmatpush1.msra.mxu0 0.0
        %1195 = vmatprep.subr.mxu0 0.0
        %1196 = vmatpush1.msra.mxu0 0.0
        %1197 = vmatprep.subr.mxu0 0.0
        %1198 = vmatpush1.msra.mxu0 0.0
        %1199 = vmatprep.subr.mxu0 0.0
        %1200 = vmatpush1.msra.mxu0 0.0
        %1201 = vmatprep.subr.mxu0 0.0
        %1202 = vmatpush1.msra.mxu0 0.0
        %1203 = vmatprep.subr.mxu0 0.0
        %1204 = vmatpush1.msra.mxu0 0.0
        %1205 = vmatprep.subr.mxu0 0.0
        %1206 = vmatpush1.msra.mxu0 0.0
        %1207 = vmatprep.subr.mxu0 0.0
        %1208 = vmatpush1.msra.mxu0 0.0
        %1209 = vmatprep.subr.mxu0 0.0
        %1210 = vmatpush1.msra.mxu0 0.0
        %1211 = vmatprep.subr.mxu0 0.0
        %1212 = vmatpush1.msra.mxu0 0.0
        %1213 = vmatprep.subr.mxu0 0.0
        %1214 = vmatpush1.msra.mxu0 0.0
        %1215 = vmatprep.subr.mxu0 0.0
        %1216 = vmatpush1.msra.mxu0 0.0
        %1217 = vmatprep.subr.mxu0 0.0
        %1218 = vmatpush1.msra.mxu0 0.0
        %1219 = vmatprep.subr.mxu0 0.0
        %1220 = vmatpush1.msra.mxu0 0.0
        %1221 = vmatprep.subr.mxu0 0.0
        %1222 = vmatpush1.msra.mxu0 0.0
        %1223 = vmatprep.subr.mxu0 0.0
        %1224 = vmatpush1.msra.mxu0 0.0
        %1225 = vmatprep.subr.mxu0 0.0
        %1226 = vmatpush1.msra.mxu0 0.0
        %1227 = vmatprep.subr.mxu0 0.0
        %1228 = vmatpush1.msra.mxu0 0.0
        %1229 = vmatprep.subr.mxu0 0.0
        %1230 = vmatpush1.msra.mxu0 0.0
        %1231 = vmatprep.subr.mxu0 0.0
        %1232 = vmatpush1.msra.mxu0 0.0
        %1233 = vmatprep.subr.mxu0 0.0
        %1234 = vmatpush1.msra.mxu0 0.0
        %1235 = vmatprep.subr.mxu0 0.0
        %1236 = vmatpush1.msra.mxu0 0.0
        %1237 = vmatprep.subr.mxu0 0.0
        %1238 = vmatpush1.msra.mxu0 0.0
        %1239 = vmatprep.mubr.f32.mxu0 0.0
        %1240 = vmatmul.mubr.f32.gmra.mrb[0].mxu0 %v1173
        %v1241 = vpop.f32.mrb[0].mxu0
        %v1242 = vadd.f32 %v1169, %v1241
        %v1243 = vpop.f32.mrb[0].mxu0
        %1244 = vdwg.mxu0
        %v1245 = vmul.f32 %v1242, 0.35355338
        %v1246 = vld [vmem:[%s13] sm:$0xff]
        %v1247 = vld [vmem:[%s13 + $0x8] sm:$0xff]
        %v1248 = vld [vmem:[%s13 + $0x10] sm:$0xff]
        %v1249 = vld [vmem:[%s13 + $0x18] sm:$0xff]
        %v1250 = vld [vmem:[#allocation11] sm:$0x1]
        %v1252 = vlaneseq
        %v1253 = vshrl.u32 %v1252, 7
        %v1254 = vsub.s32 0, %v1253
        %v1255 = vrot.slane %v1250, %v1254
        %1257 = vmatprep.subr.mxu0 0.0
        %1258 = vmatpush1.msra.mxu0 %v1246
        %1259 = vmatprep.subr.mxu0 0.0
        %1260 = vmatpush1.msra.mxu0 %v1247
        %1261 = vmatprep.subr.mxu0 0.0
        %1262 = vmatpush1.msra.mxu0 %v1248
        %1263 = vmatprep.subr.mxu0 0.0
        %1264 = vmatpush1.msra.mxu0 %v1249
        %1265 = vmatprep.subr.mxu0 0.0
        %1266 = vmatpush1.msra.mxu0 0.0
        %1267 = vmatprep.subr.mxu0 0.0
        %1268 = vmatpush1.msra.mxu0 0.0
        %1269 = vmatprep.subr.mxu0 0.0
        %1270 = vmatpush1.msra.mxu0 0.0
        %1271 = vmatprep.subr.mxu0 0.0
        %1272 = vmatpush1.msra.mxu0 0.0
        %1273 = vmatprep.subr.mxu0 0.0
        %1274 = vmatpush1.msra.mxu0 0.0
        %1275 = vmatprep.subr.mxu0 0.0
        %1276 = vmatpush1.msra.mxu0 0.0
        %1277 = vmatprep.subr.mxu0 0.0
        %1278 = vmatpush1.msra.mxu0 0.0
        %1279 = vmatprep.subr.mxu0 0.0
        %1280 = vmatpush1.msra.mxu0 0.0
        %1281 = vmatprep.subr.mxu0 0.0
        %1282 = vmatpush1.msra.mxu0 0.0
        %1283 = vmatprep.subr.mxu0 0.0
        %1284 = vmatpush1.msra.mxu0 0.0
        %1285 = vmatprep.subr.mxu0 0.0
        %1286 = vmatpush1.msra.mxu0 0.0
        %1287 = vmatprep.subr.mxu0 0.0
        %1288 = vmatpush1.msra.mxu0 0.0
        %1289 = vmatprep.subr.mxu0 0.0
        %1290 = vmatpush1.msra.mxu0 0.0
        %1291 = vmatprep.subr.mxu0 0.0
        %1292 = vmatpush1.msra.mxu0 0.0
        %1293 = vmatprep.subr.mxu0 0.0
        %1294 = vmatpush1.msra.mxu0 0.0
        %1295 = vmatprep.subr.mxu0 0.0
        %1296 = vmatpush1.msra.mxu0 0.0
        %1297 = vmatprep.subr.mxu0 0.0
        %1298 = vmatpush1.msra.mxu0 0.0
        %1299 = vmatprep.subr.mxu0 0.0
        %1300 = vmatpush1.msra.mxu0 0.0
        %1301 = vmatprep.subr.mxu0 0.0
        %1302 = vmatpush1.msra.mxu0 0.0
        %1303 = vmatprep.subr.mxu0 0.0
        %1304 = vmatpush1.msra.mxu0 0.0
        %1305 = vmatprep.subr.mxu0 0.0
        %1306 = vmatpush1.msra.mxu0 0.0
        %1307 = vmatprep.subr.mxu0 0.0
        %1308 = vmatpush1.msra.mxu0 0.0
        %1309 = vmatprep.subr.mxu0 0.0
        %1310 = vmatpush1.msra.mxu0 0.0
        %1311 = vmatprep.subr.mxu0 0.0
        %1312 = vmatpush1.msra.mxu0 0.0
        %1313 = vmatprep.subr.mxu0 0.0
        %1314 = vmatpush1.msra.mxu0 0.0
        %1315 = vmatprep.subr.mxu0 0.0
        %1316 = vmatpush1.msra.mxu0 0.0
        %1317 = vmatprep.subr.mxu0 0.0
        %1318 = vmatpush1.msra.mxu0 0.0
        %1319 = vmatprep.subr.mxu0 0.0
        %1320 = vmatpush1.msra.mxu0 0.0
        %1321 = vmatprep.mubr.f32.mxu0 0.0
        %1322 = vmatmul.mubr.f32.gmra.mrb[0].mxu0 %v1173
        %v1323 = vpop.f32.mrb[0].mxu0
        %v1324 = vadd.f32 %v1255, %v1323
        %v1325 = vpop.f32.mrb[0].mxu0
        %1326 = vdwg.mxu0
        %v1327 = vld [vmem:[#allocation12] sm:$0xff]
        %v1328 = vld [vmem:[#allocation12 + $0x8] sm:$0xff]
        %v1329 = vld [vmem:[#allocation12 + $0x10] sm:$0xff]
        %v1330 = vld [vmem:[#allocation12 + $0x18] sm:$0xff]
        %v1331 = vld [vmem:[#allocation14] sm:$0x1]
        %v1333 = vlaneseq
        %v1334 = vshrl.u32 %v1333, 7
        %v1335 = vsub.s32 0, %v1334
        %v1336 = vrot.slane %v1331, %v1335
        %v1339 = vsel %vm1171, %v1153, 0
        %1341 = vmatprep.subr.mxu0 0.0
        %1342 = vmatpush1.msra.mxu0 %v1327
        %1343 = vmatprep.subr.mxu0 0.0
        %1344 = vmatpush1.msra.mxu0 %v1328
        %1345 = vmatprep.subr.mxu0 0.0
        %1346 = vmatpush1.msra.mxu0 %v1329
        %1347 = vmatprep.subr.mxu0 0.0
        %1348 = vmatpush1.msra.mxu0 %v1330
        %1349 = vmatprep.subr.mxu0 0.0
        %1350 = vmatpush1.msra.mxu0 0.0
        %1351 = vmatprep.subr.mxu0 0.0
        %1352 = vmatpush1.msra.mxu0 0.0
        %1353 = vmatprep.subr.mxu0 0.0
        %1354 = vmatpush1.msra.mxu0 0.0
        %1355 = vmatprep.subr.mxu0 0.0
        %1356 = vmatpush1.msra.mxu0 0.0
        %1357 = vmatprep.subr.mxu0 0.0
        %1358 = vmatpush1.msra.mxu0 0.0
        %1359 = vmatprep.subr.mxu0 0.0
        %1360 = vmatpush1.msra.mxu0 0.0
        %1361 = vmatprep.subr.mxu0 0.0
        %1362 = vmatpush1.msra.mxu0 0.0
        %1363 = vmatprep.subr.mxu0 0.0
        %1364 = vmatpush1.msra.mxu0 0.0
        %1365 = vmatprep.subr.mxu0 0.0
        %1366 = vmatpush1.msra.mxu0 0.0
        %1367 = vmatprep.subr.mxu0 0.0
        %1368 = vmatpush1.msra.mxu0 0.0
        %1369 = vmatprep.subr.mxu0 0.0
        %1370 = vmatpush1.msra.mxu0 0.0
        %1371 = vmatprep.subr.mxu0 0.0
        %1372 = vmatpush1.msra.mxu0 0.0
        %1373 = vmatprep.subr.mxu0 0.0
        %1374 = vmatpush1.msra.mxu0 0.0
        %1375 = vmatprep.subr.mxu0 0.0
        %1376 = vmatpush1.msra.mxu0 0.0
        %1377 = vmatprep.subr.mxu0 0.0
        %1378 = vmatpush1.msra.mxu0 0.0
        %1379 = vmatprep.subr.mxu0 0.0
        %1380 = vmatpush1.msra.mxu0 0.0
        %1381 = vmatprep.subr.mxu0 0.0
        %1382 = vmatpush1.msra.mxu0 0.0
        %1383 = vmatprep.subr.mxu0 0.0
        %1384 = vmatpush1.msra.mxu0 0.0
        %1385 = vmatprep.subr.mxu0 0.0
        %1386 = vmatpush1.msra.mxu0 0.0
        %1387 = vmatprep.subr.mxu0 0.0
        %1388 = vmatpush1.msra.mxu0 0.0
        %1389 = vmatprep.subr.mxu0 0.0
        %1390 = vmatpush1.msra.mxu0 0.0
        %1391 = vmatprep.subr.mxu0 0.0
        %1392 = vmatpush1.msra.mxu0 0.0
        %1393 = vmatprep.subr.mxu0 0.0
        %1394 = vmatpush1.msra.mxu0 0.0
        %1395 = vmatprep.subr.mxu0 0.0
        %1396 = vmatpush1.msra.mxu0 0.0
        %1397 = vmatprep.subr.mxu0 0.0
        %1398 = vmatpush1.msra.mxu0 0.0
        %1399 = vmatprep.subr.mxu0 0.0
        %1400 = vmatpush1.msra.mxu0 0.0
        %1401 = vmatprep.subr.mxu0 0.0
        %1402 = vmatpush1.msra.mxu0 0.0
        %1403 = vmatprep.subr.mxu0 0.0
        %1404 = vmatpush1.msra.mxu0 0.0
        %1405 = vmatprep.mubr.f32.mxu0 0.0
        %1406 = vmatmul.mubr.f32.gmra.mrb[0].mxu0 %v1339
        %v1407 = vpop.f32.mrb[0].mxu0
        %v1408 = vadd.f32 %v1336, %v1407
        %v1409 = vpop.f32.mrb[0].mxu0
        %1410 = vdwg.mxu0
        %vm1411 = vcmask 64512
        %v1413 = vsel %vm1411, %v1245, 0
        %v1416 = vsel %vm1411, %v1324, 0
        %1418 = vmatprep.subr.mxu0 0.0
        %1419 = vmatpush1.xpose.msra.mxu0 %v1416
        %1420 = vmatprep.subr.mxu0 0.0
        %1421 = vmatpush1.xpose.msra.mxu0 0.0
        %1422 = vmatprep.subr.mxu0 0.0
        %1423 = vmatpush1.xpose.msra.mxu0 0.0
        %1424 = vmatprep.subr.mxu0 0.0
        %1425 = vmatpush1.xpose.msra.mxu0 0.0
        %1426 = vmatprep.subr.mxu0 0.0
        %1427 = vmatpush1.xpose.msra.mxu0 0.0
        %1428 = vmatprep.subr.mxu0 0.0
        %1429 = vmatpush1.xpose.msra.mxu0 0.0
        %1430 = vmatprep.subr.mxu0 0.0
        %1431 = vmatpush1.xpose.msra.mxu0 0.0
        %1432 = vmatprep.subr.mxu0 0.0
        %1433 = vmatpush1.xpose.msra.mxu0 0.0
        %1434 = vmatprep.subr.mxu0 0.0
        %1435 = vmatpush1.xpose.msra.mxu0 0.0
        %1436 = vmatprep.subr.mxu0 0.0
        %1437 = vmatpush1.xpose.msra.mxu0 0.0
        %1438 = vmatprep.subr.mxu0 0.0
        %1439 = vmatpush1.xpose.msra.mxu0 0.0
        %1440 = vmatprep.subr.mxu0 0.0
        %1441 = vmatpush1.xpose.msra.mxu0 0.0
        %1442 = vmatprep.subr.mxu0 0.0
        %1443 = vmatpush1.xpose.msra.mxu0 0.0
        %1444 = vmatprep.subr.mxu0 0.0
        %1445 = vmatpush1.xpose.msra.mxu0 0.0
        %1446 = vmatprep.subr.mxu0 0.0
        %1447 = vmatpush1.xpose.msra.mxu0 0.0
        %1448 = vmatprep.subr.mxu0 0.0
        %1449 = vmatpush1.xpose.msra.mxu0 0.0
        %1450 = vmatprep.subr.mxu0 0.0
        %1451 = vmatpush1.xpose.msra.mxu0 0.0
        %1452 = vmatprep.subr.mxu0 0.0
        %1453 = vmatpush1.xpose.msra.mxu0 0.0
        %1454 = vmatprep.subr.mxu0 0.0
        %1455 = vmatpush1.xpose.msra.mxu0 0.0
        %1456 = vmatprep.subr.mxu0 0.0
        %1457 = vmatpush1.xpose.msra.mxu0 0.0
        %1458 = vmatprep.subr.mxu0 0.0
        %1459 = vmatpush1.xpose.msra.mxu0 0.0
        %1460 = vmatprep.subr.mxu0 0.0
        %1461 = vmatpush1.xpose.msra.mxu0 0.0
        %1462 = vmatprep.subr.mxu0 0.0
        %1463 = vmatpush1.xpose.msra.mxu0 0.0
        %1464 = vmatprep.subr.mxu0 0.0
        %1465 = vmatpush1.xpose.msra.mxu0 0.0
        %1466 = vmatprep.subr.mxu0 0.0
        %1467 = vmatpush1.xpose.msra.mxu0 0.0
        %1468 = vmatprep.subr.mxu0 0.0
        %1469 = vmatpush1.xpose.msra.mxu0 0.0
        %1470 = vmatprep.subr.mxu0 0.0
        %1471 = vmatpush1.xpose.msra.mxu0 0.0
        %1472 = vmatprep.subr.mxu0 0.0
        %1473 = vmatpush1.xpose.msra.mxu0 0.0
        %1474 = vmatprep.subr.mxu0 0.0
        %1475 = vmatpush1.xpose.msra.mxu0 0.0
        %1476 = vmatprep.subr.mxu0 0.0
        %1477 = vmatpush1.xpose.msra.mxu0 0.0
        %1478 = vmatprep.subr.mxu0 0.0
        %1479 = vmatpush1.xpose.msra.mxu0 0.0
        %1480 = vmatprep.subr.mxu0 0.0
        %1481 = vmatpush1.xpose.msra.mxu0 0.0
        %1482 = vmatprep.mubr.f32.mxu0 0.0
        %1483 = vmatmul.mubr.f32.gmra.mrb[0].mxu0 %v1413
        %v1484 = vpop.f32.mrb[0].mxu0
        %v1485 = vadd.f32 0.0, %v1484
        %v1486 = vpop.f32.mrb[0].mxu0
        %1487 = vdwg.mxu0
        %v1488 = vsel %vm1411, %v1485, -inf
        %1489 = vmax.xlane.f32.xlu0 %v1488
        %v1490 = vpop.xlane.xlu0 %1489
        %v1491 = vsub.f32 %v1485, %v1490
        %v1492 = vmul.f32 %v1491, 1.442695
        %v1493 = vpow.pop %v1492
        %v1494 = vsel %vm1411, %v1493, 0.0
        %1495 = vadd.xlane.f32.xlu0 %v1494
        %v1496 = vpop.xlane.xlu0 %1495
        %v1497 = vrcp.pop %v1496
        %v1498 = vmul.f32 %v1493, %v1497
        %v1500 = vsel %vm1411, %v1498, 0
        %1502 = vmatprep.subr.mxu0 0.0
        %1503 = vmatpush1.msra.mxu0 %v1408
        %1504 = vmatprep.subr.mxu0 0.0
        %1505 = vmatpush1.msra.mxu0 0.0
        %1506 = vmatprep.subr.mxu0 0.0
        %1507 = vmatpush1.msra.mxu0 0.0
        %1508 = vmatprep.subr.mxu0 0.0
        %1509 = vmatpush1.msra.mxu0 0.0
        %1510 = vmatprep.subr.mxu0 0.0
        %1511 = vmatpush1.msra.mxu0 0.0
        %1512 = vmatprep.subr.mxu0 0.0
        %1513 = vmatpush1.msra.mxu0 0.0
        %1514 = vmatprep.subr.mxu0 0.0
        %1515 = vmatpush1.msra.mxu0 0.0
        %1516 = vmatprep.subr.mxu0 0.0
        %1517 = vmatpush1.msra.mxu0 0.0
        %1518 = vmatprep.subr.mxu0 0.0
        %1519 = vmatpush1.msra.mxu0 0.0
        %1520 = vmatprep.subr.mxu0 0.0
        %1521 = vmatpush1.msra.mxu0 0.0
        %1522 = vmatprep.subr.mxu0 0.0
        %1523 = vmatpush1.msra.mxu0 0.0
        %1524 = vmatprep.subr.mxu0 0.0
        %1525 = vmatpush1.msra.mxu0 0.0
        %1526 = vmatprep.subr.mxu0 0.0
        %1527 = vmatpush1.msra.mxu0 0.0
        %1528 = vmatprep.subr.mxu0 0.0
        %1529 = vmatpush1.msra.mxu0 0.0
        %1530 = vmatprep.subr.mxu0 0.0
        %1531 = vmatpush1.msra.mxu0 0.0
        %1532 = vmatprep.subr.mxu0 0.0
        %1533 = vmatpush1.msra.mxu0 0.0
        %1534 = vmatprep.subr.mxu0 0.0
        %1535 = vmatpush1.msra.mxu0 0.0
        %1536 = vmatprep.subr.mxu0 0.0
        %1537 = vmatpush1.msra.mxu0 0.0
        %1538 = vmatprep.subr.mxu0 0.0
        %1539 = vmatpush1.msra.mxu0 0.0
        %1540 = vmatprep.subr.mxu0 0.0
        %1541 = vmatpush1.msra.mxu0 0.0
        %1542 = vmatprep.subr.mxu0 0.0
        %1543 = vmatpush1.msra.mxu0 0.0
        %1544 = vmatprep.subr.mxu0 0.0
        %1545 = vmatpush1.msra.mxu0 0.0
        %1546 = vmatprep.subr.mxu0 0.0
        %1547 = vmatpush1.msra.mxu0 0.0
        %1548 = vmatprep.subr.mxu0 0.0
        %1549 = vmatpush1.msra.mxu0 0.0
        %1550 = vmatprep.subr.mxu0 0.0
        %1551 = vmatpush1.msra.mxu0 0.0
        %1552 = vmatprep.subr.mxu0 0.0
        %1553 = vmatpush1.msra.mxu0 0.0
        %1554 = vmatprep.subr.mxu0 0.0
        %1555 = vmatpush1.msra.mxu0 0.0
        %1556 = vmatprep.subr.mxu0 0.0
        %1557 = vmatpush1.msra.mxu0 0.0
        %1558 = vmatprep.subr.mxu0 0.0
        %1559 = vmatpush1.msra.mxu0 0.0
        %1560 = vmatprep.subr.mxu0 0.0
        %1561 = vmatpush1.msra.mxu0 0.0
        %1562 = vmatprep.subr.mxu0 0.0
        %1563 = vmatpush1.msra.mxu0 0.0
        %1564 = vmatprep.subr.mxu0 0.0
        %1565 = vmatpush1.msra.mxu0 0.0
        %1566 = vmatprep.mubr.f32.mxu0 0.0
        %1567 = vmatmul.mubr.f32.gmra.mrb[0].mxu0 %v1500
        %v1568 = vpop.f32.mrb[0].mxu0
        %v1569 = vadd.f32 0.0, %v1568
        %v1570 = vpop.f32.mrb[0].mxu0
        %1571 = vdwg.mxu0
        %1572 = vst.msk [vmem:[#allocation2] sm:$0xff] %vm1411, %v1569
        %1573 = vrot.lane.b32.xlu0 %v1245, 120
        %v1574 = vpop.permute.xlu0 %1573
        %1575 = vrot.lane.b32.xlu0 %v1324, 120
        %v1576 = vpop.permute.xlu0 %1575
        %v1577 = vsel %vm1411, %v1574, 0
        %v1579 = vsel %vm1411, %v1576, 0
        %1581 = vmatprep.subr.mxu0 0.0
        %1582 = vmatpush1.xpose.msra.mxu0 %v1579
        %1583 = vmatprep.subr.mxu0 0.0
        %1584 = vmatpush1.xpose.msra.mxu0 0.0
        %1585 = vmatprep.subr.mxu0 0.0
        %1586 = vmatpush1.xpose.msra.mxu0 0.0
        %1587 = vmatprep.subr.mxu0 0.0
        %1588 = vmatpush1.xpose.msra.mxu0 0.0
        %1589 = vmatprep.subr.mxu0 0.0
        %1590 = vmatpush1.xpose.msra.mxu0 0.0
        %1591 = vmatprep.subr.mxu0 0.0
        %1592 = vmatpush1.xpose.msra.mxu0 0.0
        %1593 = vmatprep.subr.mxu0 0.0
        %1594 = vmatpush1.xpose.msra.mxu0 0.0
        %1595 = vmatprep.subr.mxu0 0.0
        %1596 = vmatpush1.xpose.msra.mxu0 0.0
        %1597 = vmatprep.subr.mxu0 0.0
        %1598 = vmatpush1.xpose.msra.mxu0 0.0
        %1599 = vmatprep.subr.mxu0 0.0
        %1600 = vmatpush1.xpose.msra.mxu0 0.0
        %1601 = vmatprep.subr.mxu0 0.0
        %1602 = vmatpush1.xpose.msra.mxu0 0.0
        %1603 = vmatprep.subr.mxu0 0.0
        %1604 = vmatpush1.xpose.msra.mxu0 0.0
        %1605 = vmatprep.subr.mxu0 0.0
        %1606 = vmatpush1.xpose.msra.mxu0 0.0
        %1607 = vmatprep.subr.mxu0 0.0
        %1608 = vmatpush1.xpose.msra.mxu0 0.0
        %1609 = vmatprep.subr.mxu0 0.0
        %1610 = vmatpush1.xpose.msra.mxu0 0.0
        %1611 = vmatprep.subr.mxu0 0.0
        %1612 = vmatpush1.xpose.msra.mxu0 0.0
        %1613 = vmatprep.subr.mxu0 0.0
        %1614 = vmatpush1.xpose.msra.mxu0 0.0
        %1615 = vmatprep.subr.mxu0 0.0
        %1616 = vmatpush1.xpose.msra.mxu0 0.0
        %1617 = vmatprep.subr.mxu0 0.0
        %1618 = vmatpush1.xpose.msra.mxu0 0.0
        %1619 = vmatprep.subr.mxu0 0.0
        %1620 = vmatpush1.xpose.msra.mxu0 0.0
        %1621 = vmatprep.subr.mxu0 0.0
        %1622 = vmatpush1.xpose.msra.mxu0 0.0
        %1623 = vmatprep.subr.mxu0 0.0
        %1624 = vmatpush1.xpose.msra.mxu0 0.0
        %1625 = vmatprep.subr.mxu0 0.0
        %1626 = vmatpush1.xpose.msra.mxu0 0.0
        %1627 = vmatprep.subr.mxu0 0.0
        %1628 = vmatpush1.xpose.msra.mxu0 0.0
        %1629 = vmatprep.subr.mxu0 0.0
        %1630 = vmatpush1.xpose.msra.mxu0 0.0
        %1631 = vmatprep.subr.mxu0 0.0
        %1632 = vmatpush1.xpose.msra.mxu0 0.0
        %1633 = vmatprep.subr.mxu0 0.0
        %1634 = vmatpush1.xpose.msra.mxu0 0.0
        %1635 = vmatprep.subr.mxu0 0.0
        %1636 = vmatpush1.xpose.msra.mxu0 0.0
        %1637 = vmatprep.subr.mxu0 0.0
        %1638 = vmatpush1.xpose.msra.mxu0 0.0
        %1639 = vmatprep.subr.mxu0 0.0
        %1640 = vmatpush1.xpose.msra.mxu0 0.0
        %1641 = vmatprep.subr.mxu0 0.0
        %1642 = vmatpush1.xpose.msra.mxu0 0.0
        %1643 = vmatprep.subr.mxu0 0.0
        %1644 = vmatpush1.xpose.msra.mxu0 0.0
        %1645 = vmatprep.mubr.f32.mxu0 0.0
        %1646 = vmatmul.mubr.f32.gmra.mrb[0].mxu0 %v1577
        %v1647 = vpop.f32.mrb[0].mxu0
        %v1648 = vadd.f32 0.0, %v1647
        %v1649 = vpop.f32.mrb[0].mxu0
        %1650 = vdwg.mxu0
        %v1651 = vsel %vm1411, %v1648, -inf
        %1652 = vmax.xlane.f32.xlu0 %v1651
        %v1653 = vpop.xlane.xlu0 %1652
        %v1654 = vsub.f32 %v1648, %v1653
        %v1655 = vmul.f32 %v1654, 1.442695
        %v1656 = vpow.pop %v1655
        %v1657 = vsel %vm1411, %v1656, 0.0
        %1658 = vadd.xlane.f32.xlu0 %v1657
        %v1659 = vpop.xlane.xlu0 %1658
        %v1660 = vrcp.pop %v1659
        %v1661 = vmul.f32 %v1656, %v1660
        %1663 = vrot.lane.b32.xlu0 %v1408, 120
        %v1664 = vpop.permute.xlu0 %1663
        %v1667 = vsel %vm1411, %v1661, 0
        %1669 = vmatprep.subr.mxu0 0.0
        %1670 = vmatpush1.msra.mxu0 %v1664
        %1671 = vmatprep.subr.mxu0 0.0
        %1672 = vmatpush1.msra.mxu0 0.0
        %1673 = vmatprep.subr.mxu0 0.0
        %1674 = vmatpush1.msra.mxu0 0.0
        %1675 = vmatprep.subr.mxu0 0.0
        %1676 = vmatpush1.msra.mxu0 0.0
        %1677 = vmatprep.subr.mxu0 0.0
        %1678 = vmatpush1.msra.mxu0 0.0
        %1679 = vmatprep.subr.mxu0 0.0
        %1680 = vmatpush1.msra.mxu0 0.0
        %1681 = vmatprep.subr.mxu0 0.0
        %1682 = vmatpush1.msra.mxu0 0.0
        %1683 = vmatprep.subr.mxu0 0.0
        %1684 = vmatpush1.msra.mxu0 0.0
        %1685 = vmatprep.subr.mxu0 0.0
        %1686 = vmatpush1.msra.mxu0 0.0
        %1687 = vmatprep.subr.mxu0 0.0
        %1688 = vmatpush1.msra.mxu0 0.0
        %1689 = vmatprep.subr.mxu0 0.0
        %1690 = vmatpush1.msra.mxu0 0.0
        %1691 = vmatprep.subr.mxu0 0.0
        %1692 = vmatpush1.msra.mxu0 0.0
        %1693 = vmatprep.subr.mxu0 0.0
        %1694 = vmatpush1.msra.mxu0 0.0
        %1695 = vmatprep.subr.mxu0 0.0
        %1696 = vmatpush1.msra.mxu0 0.0
        %1697 = vmatprep.subr.mxu0 0.0
        %1698 = vmatpush1.msra.mxu0 0.0
        %1699 = vmatprep.subr.mxu0 0.0
        %1700 = vmatpush1.msra.mxu0 0.0
        %1701 = vmatprep.subr.mxu0 0.0
        %1702 = vmatpush1.msra.mxu0 0.0
        %1703 = vmatprep.subr.mxu0 0.0
        %1704 = vmatpush1.msra.mxu0 0.0
        %1705 = vmatprep.subr.mxu0 0.0
        %1706 = vmatpush1.msra.mxu0 0.0
        %1707 = vmatprep.subr.mxu0 0.0
        %1708 = vmatpush1.msra.mxu0 0.0
        %1709 = vmatprep.subr.mxu0 0.0
        %1710 = vmatpush1.msra.mxu0 0.0
        %1711 = vmatprep.subr.mxu0 0.0
        %1712 = vmatpush1.msra.mxu0 0.0
        %1713 = vmatprep.subr.mxu0 0.0
        %1714 = vmatpush1.msra.mxu0 0.0
        %1715 = vmatprep.subr.mxu0 0.0
        %1716 = vmatpush1.msra.mxu0 0.0
        %1717 = vmatprep.subr.mxu0 0.0
        %1718 = vmatpush1.msra.mxu0 0.0
        %1719 = vmatprep.subr.mxu0 0.0
        %1720 = vmatpush1.msra.mxu0 0.0
        %1721 = vmatprep.subr.mxu0 0.0
        %1722 = vmatpush1.msra.mxu0 0.0
        %1723 = vmatprep.subr.mxu0 0.0
        %1724 = vmatpush1.msra.mxu0 0.0
        %1725 = vmatprep.subr.mxu0 0.0
        %1726 = vmatpush1.msra.mxu0 0.0
        %1727 = vmatprep.subr.mxu0 0.0
        %1728 = vmatpush1.msra.mxu0 0.0
        %1729 = vmatprep.subr.mxu0 0.0
        %1730 = vmatpush1.msra.mxu0 0.0
        %1731 = vmatprep.subr.mxu0 0.0
        %1732 = vmatpush1.msra.mxu0 0.0
        %1733 = vmatprep.mubr.f32.mxu0 0.0
        %1734 = vmatmul.mubr.f32.gmra.mrb[0].mxu0 %v1667
        %v1735 = vpop.f32.mrb[0].mxu0
        %v1736 = vadd.f32 0.0, %v1735
        %v1737 = vpop.f32.mrb[0].mxu0
        %1738 = vdwg.mxu0
        %1740 = vrot.lane.b32.xlu0 %v1736, 8
        %v1741 = vpop.permute.xlu0 %1740
        %vm1743 = vcmask 130112
        %1744 = vst.msk [vmem:[#allocation2] sm:$0xff] %vm1743, %v1741
        %1745 = vrot.lane.b32.xlu0 %v1245, 112
        %v1746 = vpop.permute.xlu0 %1745
        %1747 = vrot.lane.b32.xlu0 %v1324, 112
        %v1748 = vpop.permute.xlu0 %1747
        %v1749 = vsel %vm1411, %v1746, 0
        %v1751 = vsel %vm1411, %v1748, 0
        %1753 = vmatprep.subr.mxu0 0.0
        %1754 = vmatpush1.xpose.msra.mxu0 %v1751
        %1755 = vmatprep.subr.mxu0 0.0
        %1756 = vmatpush1.xpose.msra.mxu0 0.0
        %1757 = vmatprep.subr.mxu0 0.0
        %1758 = vmatpush1.xpose.msra.mxu0 0.0
        %1759 = vmatprep.subr.mxu0 0.0
        %1760 = vmatpush1.xpose.msra.mxu0 0.0
        %1761 = vmatprep.subr.mxu0 0.0
        %1762 = vmatpush1.xpose.msra.mxu0 0.0
        %1763 = vmatprep.subr.mxu0 0.0
        %1764 = vmatpush1.xpose.msra.mxu0 0.0
        %1765 = vmatprep.subr.mxu0 0.0
        %1766 = vmatpush1.xpose.msra.mxu0 0.0
        %1767 = vmatprep.subr.mxu0 0.0
        %1768 = vmatpush1.xpose.msra.mxu0 0.0
        %1769 = vmatprep.subr.mxu0 0.0
        %1770 = vmatpush1.xpose.msra.mxu0 0.0
        %1771 = vmatprep.subr.mxu0 0.0
        %1772 = vmatpush1.xpose.msra.mxu0 0.0
        %1773 = vmatprep.subr.mxu0 0.0
        %1774 = vmatpush1.xpose.msra.mxu0 0.0
        %1775 = vmatprep.subr.mxu0 0.0
        %1776 = vmatpush1.xpose.msra.mxu0 0.0
        %1777 = vmatprep.subr.mxu0 0.0
        %1778 = vmatpush1.xpose.msra.mxu0 0.0
        %1779 = vmatprep.subr.mxu0 0.0
        %1780 = vmatpush1.xpose.msra.mxu0 0.0
        %1781 = vmatprep.subr.mxu0 0.0
        %1782 = vmatpush1.xpose.msra.mxu0 0.0
        %1783 = vmatprep.subr.mxu0 0.0
        %1784 = vmatpush1.xpose.msra.mxu0 0.0
        %1785 = vmatprep.subr.mxu0 0.0
        %1786 = vmatpush1.xpose.msra.mxu0 0.0
        %1787 = vmatprep.subr.mxu0 0.0
        %1788 = vmatpush1.xpose.msra.mxu0 0.0
        %1789 = vmatprep.subr.mxu0 0.0
        %1790 = vmatpush1.xpose.msra.mxu0 0.0
        %1791 = vmatprep.subr.mxu0 0.0
        %1792 = vmatpush1.xpose.msra.mxu0 0.0
        %1793 = vmatprep.subr.mxu0 0.0
        %1794 = vmatpush1.xpose.msra.mxu0 0.0
        %1795 = vmatprep.subr.mxu0 0.0
        %1796 = vmatpush1.xpose.msra.mxu0 0.0
        %1797 = vmatprep.subr.mxu0 0.0
        %1798 = vmatpush1.xpose.msra.mxu0 0.0
        %1799 = vmatprep.subr.mxu0 0.0
        %1800 = vmatpush1.xpose.msra.mxu0 0.0
        %1801 = vmatprep.subr.mxu0 0.0
        %1802 = vmatpush1.xpose.msra.mxu0 0.0
        %1803 = vmatprep.subr.mxu0 0.0
        %1804 = vmatpush1.xpose.msra.mxu0 0.0
        %1805 = vmatprep.subr.mxu0 0.0
        %1806 = vmatpush1.xpose.msra.mxu0 0.0
        %1807 = vmatprep.subr.mxu0 0.0
        %1808 = vmatpush1.xpose.msra.mxu0 0.0
        %1809 = vmatprep.subr.mxu0 0.0
        %1810 = vmatpush1.xpose.msra.mxu0 0.0
        %1811 = vmatprep.subr.mxu0 0.0
        %1812 = vmatpush1.xpose.msra.mxu0 0.0
        %1813 = vmatprep.subr.mxu0 0.0
        %1814 = vmatpush1.xpose.msra.mxu0 0.0
        %1815 = vmatprep.subr.mxu0 0.0
        %1816 = vmatpush1.xpose.msra.mxu0 0.0
        %1817 = vmatprep.mubr.f32.mxu0 0.0
        %1818 = vmatmul.mubr.f32.gmra.mrb[0].mxu0 %v1749
        %v1819 = vpop.f32.mrb[0].mxu0
        %v1820 = vadd.f32 0.0, %v1819
        %v1821 = vpop.f32.mrb[0].mxu0
        %1822 = vdwg.mxu0
        %v1823 = vsel %vm1411, %v1820, -inf
        %1824 = vmax.xlane.f32.xlu0 %v1823
        %v1825 = vpop.xlane.xlu0 %1824
        %v1826 = vsub.f32 %v1820, %v1825
        %v1827 = vmul.f32 %v1826, 1.442695
        %v1828 = vpow.pop %v1827
        %v1829 = vsel %vm1411, %v1828, 0.0
        %1830 = vadd.xlane.f32.xlu0 %v1829
        %v1831 = vpop.xlane.xlu0 %1830
        %v1832 = vrcp.pop %v1831
        %v1833 = vmul.f32 %v1828, %v1832
        %1834 = vrot.lane.b32.xlu0 %v1408, 112
        %v1835 = vpop.permute.xlu0 %1834
        %v1838 = vsel %vm1411, %v1833, 0
        %1840 = vmatprep.subr.mxu0 0.0
        %1841 = vmatpush1.msra.mxu0 %v1835
        %1842 = vmatprep.subr.mxu0 0.0
        %1843 = vmatpush1.msra.mxu0 0.0
        %1844 = vmatprep.subr.mxu0 0.0
        %1845 = vmatpush1.msra.mxu0 0.0
        %1846 = vmatprep.subr.mxu0 0.0
        %1847 = vmatpush1.msra.mxu0 0.0
        %1848 = vmatprep.subr.mxu0 0.0
        %1849 = vmatpush1.msra.mxu0 0.0
        %1850 = vmatprep.subr.mxu0 0.0
        %1851 = vmatpush1.msra.mxu0 0.0
        %1852 = vmatprep.subr.mxu0 0.0
        %1853 = vmatpush1.msra.mxu0 0.0
        %1854 = vmatprep.subr.mxu0 0.0
        %1855 = vmatpush1.msra.mxu0 0.0
        %1856 = vmatprep.subr.mxu0 0.0
        %1857 = vmatpush1.msra.mxu0 0.0
        %1858 = vmatprep.subr.mxu0 0.0
        %1859 = vmatpush1.msra.mxu0 0.0
        %1860 = vmatprep.subr.mxu0 0.0
        %1861 = vmatpush1.msra.mxu0 0.0
        %1862 = vmatprep.subr.mxu0 0.0
        %1863 = vmatpush1.msra.mxu0 0.0
        %1864 = vmatprep.subr.mxu0 0.0
        %1865 = vmatpush1.msra.mxu0 0.0
        %1866 = vmatprep.subr.mxu0 0.0
        %1867 = vmatpush1.msra.mxu0 0.0
        %1868 = vmatprep.subr.mxu0 0.0
        %1869 = vmatpush1.msra.mxu0 0.0
        %1870 = vmatprep.subr.mxu0 0.0
        %1871 = vmatpush1.msra.mxu0 0.0
        %1872 = vmatprep.subr.mxu0 0.0
        %1873 = vmatpush1.msra.mxu0 0.0
        %1874 = vmatprep.subr.mxu0 0.0
        %1875 = vmatpush1.msra.mxu0 0.0
        %1876 = vmatprep.subr.mxu0 0.0
        %1877 = vmatpush1.msra.mxu0 0.0
        %1878 = vmatprep.subr.mxu0 0.0
        %1879 = vmatpush1.msra.mxu0 0.0
        %1880 = vmatprep.subr.mxu0 0.0
        %1881 = vmatpush1.msra.mxu0 0.0
        %1882 = vmatprep.subr.mxu0 0.0
        %1883 = vmatpush1.msra.mxu0 0.0
        %1884 = vmatprep.subr.mxu0 0.0
        %1885 = vmatpush1.msra.mxu0 0.0
        %1886 = vmatprep.subr.mxu0 0.0
        %1887 = vmatpush1.msra.mxu0 0.0
        %1888 = vmatprep.subr.mxu0 0.0
        %1889 = vmatpush1.msra.mxu0 0.0
        %1890 = vmatprep.subr.mxu0 0.0
        %1891 = vmatpush1.msra.mxu0 0.0
        %1892 = vmatprep.subr.mxu0 0.0
        %1893 = vmatpush1.msra.mxu0 0.0
        %1894 = vmatprep.subr.mxu0 0.0
        %1895 = vmatpush1.msra.mxu0 0.0
        %1896 = vmatprep.subr.mxu0 0.0
        %1897 = vmatpush1.msra.mxu0 0.0
        %1898 = vmatprep.subr.mxu0 0.0
        %1899 = vmatpush1.msra.mxu0 0.0
        %1900 = vmatprep.subr.mxu0 0.0
        %1901 = vmatpush1.msra.mxu0 0.0
        %1902 = vmatprep.subr.mxu0 0.0
        %1903 = vmatpush1.msra.mxu0 0.0
        %1904 = vmatprep.mubr.f32.mxu0 0.0
        %1905 = vmatmul.mubr.f32.gmra.mrb[0].mxu0 %v1838
        %v1906 = vpop.f32.mrb[0].mxu0
        %v1907 = vadd.f32 0.0, %v1906
        %v1908 = vpop.f32.mrb[0].mxu0
        %1909 = vdwg.mxu0
        %1911 = vrot.lane.b32.xlu0 %v1907, 16
        %v1912 = vpop.permute.xlu0 %1911
        %vm1914 = vcmask 195712
        %1915 = vst.msk [vmem:[#allocation2] sm:$0xff] %vm1914, %v1912
        %1916 = vrot.lane.b32.xlu0 %v1245, 104
        %v1917 = vpop.permute.xlu0 %1916
        %1918 = vrot.lane.b32.xlu0 %v1324, 104
        %v1919 = vpop.permute.xlu0 %1918
        %v1920 = vsel %vm1411, %v1917, 0
        %v1922 = vsel %vm1411, %v1919, 0
        %1924 = vmatprep.subr.mxu0 0.0
        %1925 = vmatpush1.xpose.msra.mxu0 %v1922
        %1926 = vmatprep.subr.mxu0 0.0
        %1927 = vmatpush1.xpose.msra.mxu0 0.0
        %1928 = vmatprep.subr.mxu0 0.0
        %1929 = vmatpush1.xpose.msra.mxu0 0.0
        %1930 = vmatprep.subr.mxu0 0.0
        %1931 = vmatpush1.xpose.msra.mxu0 0.0
        %1932 = vmatprep.subr.mxu0 0.0
        %1933 = vmatpush1.xpose.msra.mxu0 0.0
        %1934 = vmatprep.subr.mxu0 0.0
        %1935 = vmatpush1.xpose.msra.mxu0 0.0
        %1936 = vmatprep.subr.mxu0 0.0
        %1937 = vmatpush1.xpose.msra.mxu0 0.0
        %1938 = vmatprep.subr.mxu0 0.0
        %1939 = vmatpush1.xpose.msra.mxu0 0.0
        %1940 = vmatprep.subr.mxu0 0.0
        %1941 = vmatpush1.xpose.msra.mxu0 0.0
        %1942 = vmatprep.subr.mxu0 0.0
        %1943 = vmatpush1.xpose.msra.mxu0 0.0
        %1944 = vmatprep.subr.mxu0 0.0
        %1945 = vmatpush1.xpose.msra.mxu0 0.0
        %1946 = vmatprep.subr.mxu0 0.0
        %1947 = vmatpush1.xpose.msra.mxu0 0.0
        %1948 = vmatprep.subr.mxu0 0.0
        %1949 = vmatpush1.xpose.msra.mxu0 0.0
        %1950 = vmatprep.subr.mxu0 0.0
        %1951 = vmatpush1.xpose.msra.mxu0 0.0
        %1952 = vmatprep.subr.mxu0 0.0
        %1953 = vmatpush1.xpose.msra.mxu0 0.0
        %1954 = vmatprep.subr.mxu0 0.0
        %1955 = vmatpush1.xpose.msra.mxu0 0.0
        %1956 = vmatprep.subr.mxu0 0.0
        %1957 = vmatpush1.xpose.msra.mxu0 0.0
        %1958 = vmatprep.subr.mxu0 0.0
        %1959 = vmatpush1.xpose.msra.mxu0 0.0
        %1960 = vmatprep.subr.mxu0 0.0
        %1961 = vmatpush1.xpose.msra.mxu0 0.0
        %1962 = vmatprep.subr.mxu0 0.0
        %1963 = vmatpush1.xpose.msra.mxu0 0.0
        %1964 = vmatprep.subr.mxu0 0.0
        %1965 = vmatpush1.xpose.msra.mxu0 0.0
        %1966 = vmatprep.subr.mxu0 0.0
        %1967 = vmatpush1.xpose.msra.mxu0 0.0
        %1968 = vmatprep.subr.mxu0 0.0
        %1969 = vmatpush1.xpose.msra.mxu0 0.0
        %1970 = vmatprep.subr.mxu0 0.0
        %1971 = vmatpush1.xpose.msra.mxu0 0.0
        %1972 = vmatprep.subr.mxu0 0.0
        %1973 = vmatpush1.xpose.msra.mxu0 0.0
        %1974 = vmatprep.subr.mxu0 0.0
        %1975 = vmatpush1.xpose.msra.mxu0 0.0
        %1976 = vmatprep.subr.mxu0 0.0
        %1977 = vmatpush1.xpose.msra.mxu0 0.0
        %1978 = vmatprep.subr.mxu0 0.0
        %1979 = vmatpush1.xpose.msra.mxu0 0.0
        %1980 = vmatprep.subr.mxu0 0.0
        %1981 = vmatpush1.xpose.msra.mxu0 0.0
        %1982 = vmatprep.subr.mxu0 0.0
        %1983 = vmatpush1.xpose.msra.mxu0 0.0
        %1984 = vmatprep.subr.mxu0 0.0
        %1985 = vmatpush1.xpose.msra.mxu0 0.0
        %1986 = vmatprep.subr.mxu0 0.0
        %1987 = vmatpush1.xpose.msra.mxu0 0.0
        %1988 = vmatprep.mubr.f32.mxu0 0.0
        %1989 = vmatmul.mubr.f32.gmra.mrb[0].mxu0 %v1920
        %v1990 = vpop.f32.mrb[0].mxu0
        %v1991 = vadd.f32 0.0, %v1990
        %v1992 = vpop.f32.mrb[0].mxu0
        %1993 = vdwg.mxu0
        %v1994 = vsel %vm1411, %v1991, -inf
        %1995 = vmax.xlane.f32.xlu0 %v1994
        %v1996 = vpop.xlane.xlu0 %1995
        %v1997 = vsub.f32 %v1991, %v1996
        %v1998 = vmul.f32 %v1997, 1.442695
        %v1999 = vpow.pop %v1998
        %v2000 = vsel %vm1411, %v1999, 0.0
        %2001 = vadd.xlane.f32.xlu0 %v2000
        %v2002 = vpop.xlane.xlu0 %2001
        %v2003 = vrcp.pop %v2002
        %v2004 = vmul.f32 %v1999, %v2003
        %2005 = vrot.lane.b32.xlu0 %v1408, 104
        %v2006 = vpop.permute.xlu0 %2005
        %v2009 = vsel %vm1411, %v2004, 0
        %2011 = vmatprep.subr.mxu0 0.0
        %2012 = vmatpush1.msra.mxu0 %v2006
        %2013 = vmatprep.subr.mxu0 0.0
        %2014 = vmatpush1.msra.mxu0 0.0
        %2015 = vmatprep.subr.mxu0 0.0
        %2016 = vmatpush1.msra.mxu0 0.0
        %2017 = vmatprep.subr.mxu0 0.0
        %2018 = vmatpush1.msra.mxu0 0.0
        %2019 = vmatprep.subr.mxu0 0.0
        %2020 = vmatpush1.msra.mxu0 0.0
        %2021 = vmatprep.subr.mxu0 0.0
        %2022 = vmatpush1.msra.mxu0 0.0
        %2023 = vmatprep.subr.mxu0 0.0
        %2024 = vmatpush1.msra.mxu0 0.0
        %2025 = vmatprep.subr.mxu0 0.0
        %2026 = vmatpush1.msra.mxu0 0.0
        %2027 = vmatprep.subr.mxu0 0.0
        %2028 = vmatpush1.msra.mxu0 0.0
        %2029 = vmatprep.subr.mxu0 0.0
        %2030 = vmatpush1.msra.mxu0 0.0
        %2031 = vmatprep.subr.mxu0 0.0
        %2032 = vmatpush1.msra.mxu0 0.0
        %2033 = vmatprep.subr.mxu0 0.0
        %2034 = vmatpush1.msra.mxu0 0.0
        %2035 = vmatprep.subr.mxu0 0.0
        %2036 = vmatpush1.msra.mxu0 0.0
        %2037 = vmatprep.subr.mxu0 0.0
        %2038 = vmatpush1.msra.mxu0 0.0
        %2039 = vmatprep.subr.mxu0 0.0
        %2040 = vmatpush1.msra.mxu0 0.0
        %2041 = vmatprep.subr.mxu0 0.0
        %2042 = vmatpush1.msra.mxu0 0.0
        %2043 = vmatprep.subr.mxu0 0.0
        %2044 = vmatpush1.msra.mxu0 0.0
        %2045 = vmatprep.subr.mxu0 0.0
        %2046 = vmatpush1.msra.mxu0 0.0
        %2047 = vmatprep.subr.mxu0 0.0
        %2048 = vmatpush1.msra.mxu0 0.0
        %2049 = vmatprep.subr.mxu0 0.0
        %2050 = vmatpush1.msra.mxu0 0.0
        %2051 = vmatprep.subr.mxu0 0.0
        %2052 = vmatpush1.msra.mxu0 0.0
        %2053 = vmatprep.subr.mxu0 0.0
        %2054 = vmatpush1.msra.mxu0 0.0
        %2055 = vmatprep.subr.mxu0 0.0
        %2056 = vmatpush1.msra.mxu0 0.0
        %2057 = vmatprep.subr.mxu0 0.0
        %2058 = vmatpush1.msra.mxu0 0.0
        %2059 = vmatprep.subr.mxu0 0.0
        %2060 = vmatpush1.msra.mxu0 0.0
        %2061 = vmatprep.subr.mxu0 0.0
        %2062 = vmatpush1.msra.mxu0 0.0
        %2063 = vmatprep.subr.mxu0 0.0
        %2064 = vmatpush1.msra.mxu0 0.0
        %2065 = vmatprep.subr.mxu0 0.0
        %2066 = vmatpush1.msra.mxu0 0.0
        %2067 = vmatprep.subr.mxu0 0.0
        %2068 = vmatpush1.msra.mxu0 0.0
        %2069 = vmatprep.subr.mxu0 0.0
        %2070 = vmatpush1.msra.mxu0 0.0
        %2071 = vmatprep.subr.mxu0 0.0
        %2072 = vmatpush1.msra.mxu0 0.0
        %2073 = vmatprep.subr.mxu0 0.0
        %2074 = vmatpush1.msra.mxu0 0.0
        %2075 = vmatprep.mubr.f32.mxu0 0.0
        %2076 = vmatmul.mubr.f32.gmra.mrb[0].mxu0 %v2009
        %v2077 = vpop.f32.mrb[0].mxu0
        %v2078 = vadd.f32 0.0, %v2077
        %v2079 = vpop.f32.mrb[0].mxu0
        %2080 = vdwg.mxu0
        %2082 = vrot.lane.b32.xlu0 %v2078, 24
        %v2083 = vpop.permute.xlu0 %2082
        %vm2085 = vcmask 261312
        %2086 = vst.msk [vmem:[#allocation2] sm:$0xff] %vm2085, %v2083
        %v2087 = vld [vmem:[#allocation2] sm:$0xff]
        %v2088 = vld [vmem:[%s21] sm:$0xff]
        %v2089 = vld [vmem:[%s21 + $0x8] sm:$0xff]
        %v2090 = vld [vmem:[%s21 + $0x10] sm:$0xff]
        %v2091 = vld [vmem:[%s21 + $0x18] sm:$0xff]
        %v2092 = vld [vmem:[#allocation15] sm:$0x1]
        %v2094 = vlaneseq
        %v2095 = vshrl.u32 %v2094, 7
        %v2096 = vsub.s32 0, %v2095
        %v2097 = vrot.slane %v2092, %v2096
        %v2100 = vsel %vm1171, %v2087, 0
        %2102 = vmatprep.subr.mxu0 0.0
        %2103 = vmatpush1.msra.mxu0 %v2088
        %2104 = vmatprep.subr.mxu0 0.0
        %2105 = vmatpush1.msra.mxu0 %v2089
        %2106 = vmatprep.subr.mxu0 0.0
        %2107 = vmatpush1.msra.mxu0 %v2090
        %2108 = vmatprep.subr.mxu0 0.0
        %2109 = vmatpush1.msra.mxu0 %v2091
        %2110 = vmatprep.subr.mxu0 0.0
        %2111 = vmatpush1.msra.mxu0 0.0
        %2112 = vmatprep.subr.mxu0 0.0
        %2113 = vmatpush1.msra.mxu0 0.0
        %2114 = vmatprep.subr.mxu0 0.0
        %2115 = vmatpush1.msra.mxu0 0.0
        %2116 = vmatprep.subr.mxu0 0.0
        %2117 = vmatpush1.msra.mxu0 0.0
        %2118 = vmatprep.subr.mxu0 0.0
        %2119 = vmatpush1.msra.mxu0 0.0
        %2120 = vmatprep.subr.mxu0 0.0
        %2121 = vmatpush1.msra.mxu0 0.0
        %2122 = vmatprep.subr.mxu0 0.0
        %2123 = vmatpush1.msra.mxu0 0.0
        %2124 = vmatprep.subr.mxu0 0.0
        %2125 = vmatpush1.msra.mxu0 0.0
        %2126 = vmatprep.subr.mxu0 0.0
        %2127 = vmatpush1.msra.mxu0 0.0
        %2128 = vmatprep.subr.mxu0 0.0
        %2129 = vmatpush1.msra.mxu0 0.0
        %2130 = vmatprep.subr.mxu0 0.0
        %2131 = vmatpush1.msra.mxu0 0.0
        %2132 = vmatprep.subr.mxu0 0.0
        %2133 = vmatpush1.msra.mxu0 0.0
        %2134 = vmatprep.subr.mxu0 0.0
        %2135 = vmatpush1.msra.mxu0 0.0
        %2136 = vmatprep.subr.mxu0 0.0
        %2137 = vmatpush1.msra.mxu0 0.0
        %2138 = vmatprep.subr.mxu0 0.0
        %2139 = vmatpush1.msra.mxu0 0.0
        %2140 = vmatprep.subr.mxu0 0.0
        %2141 = vmatpush1.msra.mxu0 0.0
        %2142 = vmatprep.subr.mxu0 0.0
        %2143 = vmatpush1.msra.mxu0 0.0
        %2144 = vmatprep.subr.mxu0 0.0
        %2145 = vmatpush1.msra.mxu0 0.0
        %2146 = vmatprep.subr.mxu0 0.0
        %2147 = vmatpush1.msra.mxu0 0.0
        %2148 = vmatprep.subr.mxu0 0.0
        %2149 = vmatpush1.msra.mxu0 0.0
        %2150 = vmatprep.subr.mxu0 0.0
        %2151 = vmatpush1.msra.mxu0 0.0
        %2152 = vmatprep.subr.mxu0 0.0
        %2153 = vmatpush1.msra.mxu0 0.0
        %2154 = vmatprep.subr.mxu0 0.0
        %2155 = vmatpush1.msra.mxu0 0.0
        %2156 = vmatprep.subr.mxu0 0.0
        %2157 = vmatpush1.msra.mxu0 0.0
        %2158 = vmatprep.subr.mxu0 0.0
        %2159 = vmatpush1.msra.mxu0 0.0
        %2160 = vmatprep.subr.mxu0 0.0
        %2161 = vmatpush1.msra.mxu0 0.0
        %2162 = vmatprep.subr.mxu0 0.0
        %2163 = vmatpush1.msra.mxu0 0.0
        %2164 = vmatprep.subr.mxu0 0.0
        %2165 = vmatpush1.msra.mxu0 0.0
        %2166 = vmatprep.mubr.f32.mxu0 0.0
        %2167 = vmatmul.mubr.f32.gmra.mrb[0].mxu0 %v2100
        %v2168 = vpop.f32.mrb[0].mxu0
        %v2169 = vadd.f32 %v2097, %v2168
        %v2170 = vpop.f32.mrb[0].mxu0
        %2171 = vdwg.mxu0
        %v2172 = vadd.f32 %v1153, %v2169
        %v2173 = vsel %vm1171, %v2172, 0.0
        %2174 = vadd.xlane.f32.xlu0 %v2173
        %v2175 = vpop.xlane.xlu0 %2174
        %v2176 = vmul.f32 %v2175, 0.03125
        %v2177 = vmul.f32 %v2172, %v2172
        %v2178 = vsel %vm1171, %v2177, 0.0
        %2179 = vadd.xlane.f32.xlu0 %v2178
        %v2180 = vpop.xlane.xlu0 %2179
        %v2181 = vmul.f32 %v2180, 0.03125
        %v2182 = vmul.f32 %v2176, %v2176
        %v2183 = vsub.f32 %v2181, %v2182
        %v2184 = vsub.f32 %v2172, %v2176
        %v2185 = vadd.f32 %v2183, 1e-05
        %v2186 = vrsqrt.pop %v2185
        %v2187 = vmul.f32 %v2184, %v2186
        %v2188 = vld [vmem:[%s49] sm:$0x1]
        %v2190 = vlaneseq
        %v2191 = vshrl.u32 %v2190, 7
        %v2192 = vsub.s32 0, %v2191
        %v2193 = vrot.slane %v2188, %v2192
        %v2195 = vmul.f32 %v2187, %v2193
        %v2196 = vld [vmem:[%s51] sm:$0x1]
        %v2198 = vlaneseq
        %v2199 = vshrl.u32 %v2198, 7
        %v2200 = vsub.s32 0, %v2199
        %v2201 = vrot.slane %v2196, %v2200
        %v2203 = vadd.f32 %v2195, %v2201
        %v2204 = vadd.f32 %v2203, %v1156
        %v2205 = vadd.f32 %v1154, %v1157
        %v2206 = vadd.f32 %v1155, %v1158
        %v2207 = vld [vmem:[#allocation17] sm:$0xff]
        %v2208 = vld [vmem:[#allocation17 + $0x8] sm:$0xff]
        %v2209 = vld [vmem:[#allocation17 + $0x10] sm:$0xff]
        %v2210 = vld [vmem:[#allocation17 + $0x18] sm:$0xff]
        %v2211 = vld [vmem:[#allocation18] sm:$0x1]
        %v2213 = vlaneseq
        %v2214 = vshrl.u32 %v2213, 7
        %v2215 = vsub.s32 0, %v2214
        %v2216 = vrot.slane %v2211, %v2215
        %v2219 = vsel %vm1171, %v2204, 0
        %2221 = vmatprep.subr.mxu0 0.0
        %2222 = vmatpush1.msra.mxu0 %v2207
        %2223 = vmatprep.subr.mxu0 0.0
        %2224 = vmatpush1.msra.mxu0 %v2208
        %2225 = vmatprep.subr.mxu0 0.0
        %2226 = vmatpush1.msra.mxu0 %v2209
        %2227 = vmatprep.subr.mxu0 0.0
        %2228 = vmatpush1.msra.mxu0 %v2210
        %2229 = vmatprep.subr.mxu0 0.0
        %2230 = vmatpush1.msra.mxu0 0.0
        %2231 = vmatprep.subr.mxu0 0.0
        %2232 = vmatpush1.msra.mxu0 0.0
        %2233 = vmatprep.subr.mxu0 0.0
        %2234 = vmatpush1.msra.mxu0 0.0
        %2235 = vmatprep.subr.mxu0 0.0
        %2236 = vmatpush1.msra.mxu0 0.0
        %2237 = vmatprep.subr.mxu0 0.0
        %2238 = vmatpush1.msra.mxu0 0.0
        %2239 = vmatprep.subr.mxu0 0.0
        %2240 = vmatpush1.msra.mxu0 0.0
        %2241 = vmatprep.subr.mxu0 0.0
        %2242 = vmatpush1.msra.mxu0 0.0
        %2243 = vmatprep.subr.mxu0 0.0
        %2244 = vmatpush1.msra.mxu0 0.0
        %2245 = vmatprep.subr.mxu0 0.0
        %2246 = vmatpush1.msra.mxu0 0.0
        %2247 = vmatprep.subr.mxu0 0.0
        %2248 = vmatpush1.msra.mxu0 0.0
        %2249 = vmatprep.subr.mxu0 0.0
        %2250 = vmatpush1.msra.mxu0 0.0
        %2251 = vmatprep.subr.mxu0 0.0
        %2252 = vmatpush1.msra.mxu0 0.0
        %2253 = vmatprep.subr.mxu0 0.0
        %2254 = vmatpush1.msra.mxu0 0.0
        %2255 = vmatprep.subr.mxu0 0.0
        %2256 = vmatpush1.msra.mxu0 0.0
        %2257 = vmatprep.subr.mxu0 0.0
        %2258 = vmatpush1.msra.mxu0 0.0
        %2259 = vmatprep.subr.mxu0 0.0
        %2260 = vmatpush1.msra.mxu0 0.0
        %2261 = vmatprep.subr.mxu0 0.0
        %2262 = vmatpush1.msra.mxu0 0.0
        %2263 = vmatprep.subr.mxu0 0.0
        %2264 = vmatpush1.msra.mxu0 0.0
        %2265 = vmatprep.subr.mxu0 0.0
        %2266 = vmatpush1.msra.mxu0 0.0
        %2267 = vmatprep.subr.mxu0 0.0
        %2268 = vmatpush1.msra.mxu0 0.0
        %2269 = vmatprep.subr.mxu0 0.0
        %2270 = vmatpush1.msra.mxu0 0.0
        %2271 = vmatprep.subr.mxu0 0.0
        %2272 = vmatpush1.msra.mxu0 0.0
        %2273 = vmatprep.subr.mxu0 0.0
        %2274 = vmatpush1.msra.mxu0 0.0
        %2275 = vmatprep.subr.mxu0 0.0
        %2276 = vmatpush1.msra.mxu0 0.0
        %2277 = vmatprep.subr.mxu0 0.0
        %2278 = vmatpush1.msra.mxu0 0.0
        %2279 = vmatprep.subr.mxu0 0.0
        %2280 = vmatpush1.msra.mxu0 0.0
        %2281 = vmatprep.subr.mxu0 0.0
        %2282 = vmatpush1.msra.mxu0 0.0
        %2283 = vmatprep.subr.mxu0 0.0
        %2284 = vmatpush1.msra.mxu0 0.0
        %2285 = vmatprep.mubr.f32.mxu0 0.0
        %2286 = vmatmul.mubr.f32.gmra.mrb[0].mxu0 %v2219
        %v2287 = vpop.f32.mrb[0].mxu0
        %v2288 = vadd.f32 %v2216, %v2287
        %v2289 = vpop.f32.mrb[0].mxu0
        %2290 = vdwg.mxu0
        %v2291 = vmul.f32 %v2288, 0.35355338
        %v2292 = vld [vmem:[#allocation20] sm:$0xff]
        %v2293 = vld [vmem:[#allocation20 + $0x8] sm:$0xff]
        %v2294 = vld [vmem:[#allocation20 + $0x10] sm:$0xff]
        %v2295 = vld [vmem:[#allocation20 + $0x18] sm:$0xff]
        %v2296 = vld [vmem:[#allocation21] sm:$0x1]
        %v2298 = vlaneseq
        %v2299 = vshrl.u32 %v2298, 7
        %v2300 = vsub.s32 0, %v2299
        %v2301 = vrot.slane %v2296, %v2300
        %v2304 = vsel %vm1171, %v2205, 0
        %v2307 = vsel %vm1171, %v2206, 0
        %2309 = vmatprep.subr.mxu0 0.0
        %2310 = vmatpush1.msra.mxu0 %v2292
        %2311 = vmatprep.subr.mxu0 0.0
        %2312 = vmatpush1.msra.mxu0 %v2293
        %2313 = vmatprep.subr.mxu0 0.0
        %2314 = vmatpush1.msra.mxu0 %v2294
        %2315 = vmatprep.subr.mxu0 0.0
        %2316 = vmatpush1.msra.mxu0 %v2295
        %2317 = vmatprep.subr.mxu0 0.0
        %2318 = vmatpush1.msra.mxu0 0.0
        %2319 = vmatprep.subr.mxu0 0.0
        %2320 = vmatpush1.msra.mxu0 0.0
        %2321 = vmatprep.subr.mxu0 0.0
        %2322 = vmatpush1.msra.mxu0 0.0
        %2323 = vmatprep.subr.mxu0 0.0
        %2324 = vmatpush1.msra.mxu0 0.0
        %2325 = vmatprep.subr.mxu0 0.0
        %2326 = vmatpush1.msra.mxu0 0.0
        %2327 = vmatprep.subr.mxu0 0.0
        %2328 = vmatpush1.msra.mxu0 0.0
        %2329 = vmatprep.subr.mxu0 0.0
        %2330 = vmatpush1.msra.mxu0 0.0
        %2331 = vmatprep.subr.mxu0 0.0
        %2332 = vmatpush1.msra.mxu0 0.0
        %2333 = vmatprep.subr.mxu0 0.0
        %2334 = vmatpush1.msra.mxu0 0.0
        %2335 = vmatprep.subr.mxu0 0.0
        %2336 = vmatpush1.msra.mxu0 0.0
        %2337 = vmatprep.subr.mxu0 0.0
        %2338 = vmatpush1.msra.mxu0 0.0
        %2339 = vmatprep.subr.mxu0 0.0
        %2340 = vmatpush1.msra.mxu0 0.0
        %2341 = vmatprep.subr.mxu0 0.0
        %2342 = vmatpush1.msra.mxu0 0.0
        %2343 = vmatprep.subr.mxu0 0.0
        %2344 = vmatpush1.msra.mxu0 0.0
        %2345 = vmatprep.subr.mxu0 0.0
        %2346 = vmatpush1.msra.mxu0 0.0
        %2347 = vmatprep.subr.mxu0 0.0
        %2348 = vmatpush1.msra.mxu0 0.0
        %2349 = vmatprep.subr.mxu0 0.0
        %2350 = vmatpush1.msra.mxu0 0.0
        %2351 = vmatprep.subr.mxu0 0.0
        %2352 = vmatpush1.msra.mxu0 0.0
        %2353 = vmatprep.subr.mxu0 0.0
        %2354 = vmatpush1.msra.mxu0 0.0
        %2355 = vmatprep.subr.mxu0 0.0
        %2356 = vmatpush1.msra.mxu0 0.0
        %2357 = vmatprep.subr.mxu0 0.0
        %2358 = vmatpush1.msra.mxu0 0.0
        %2359 = vmatprep.subr.mxu0 0.0
        %2360 = vmatpush1.msra.mxu0 0.0
        %2361 = vmatprep.subr.mxu0 0.0
        %2362 = vmatpush1.msra.mxu0 0.0
        %2363 = vmatprep.subr.mxu0 0.0
        %2364 = vmatpush1.msra.mxu0 0.0
        %2365 = vmatprep.subr.mxu0 0.0
        %2366 = vmatpush1.msra.mxu0 0.0
        %2367 = vmatprep.subr.mxu0 0.0
        %2368 = vmatpush1.msra.mxu0 0.0
        %2369 = vmatprep.subr.mxu0 0.0
        %2370 = vmatpush1.msra.mxu0 0.0
        %2371 = vmatprep.subr.mxu0 0.0
        %2372 = vmatpush1.msra.mxu0 0.0
        %2373 = vmatprep.mubr.f32.mxu0 0.0
        %2374 = vmatmul.mubr.f32.gmra.mrb[0].mxu0 %v2304
        %v2375 = vpop.f32.mrb[0].mxu0
        %v2376 = vadd.f32 %v2301, %v2375
        %v2377 = vpop.f32.mrb[0].mxu0
        %2378 = vmatprep.mubr.f32.mxu0 0.0
        %2379 = vmatmul.mubr.f32.gmra.mrb[0].mxu0 %v2307
        %v2380 = vpop.f32.mrb[0].mxu0
        %v2381 = vadd.f32 %v2301, %v2380
        %v2382 = vpop.f32.mrb[0].mxu0
        %2383 = vdwg.mxu0
        %v2384 = vld [vmem:[#allocation23] sm:$0xff]
        %v2385 = vld [vmem:[#allocation23 + $0x8] sm:$0xff]
        %v2386 = vld [vmem:[#allocation23 + $0x10] sm:$0xff]
        %v2387 = vld [vmem:[#allocation23 + $0x18] sm:$0xff]
        %v2388 = vld [vmem:[#allocation24] sm:$0x1]
        %v2390 = vlaneseq
        %v2391 = vshrl.u32 %v2390, 7
        %v2392 = vsub.s32 0, %v2391
        %v2393 = vrot.slane %v2388, %v2392
        %v2396 = vsel %vm1171, %v1154, 0
        %v2399 = vsel %vm1171, %v1155, 0
        %2401 = vmatprep.subr.mxu0 0.0
        %2402 = vmatpush1.msra.mxu0 %v2384
        %2403 = vmatprep.subr.mxu0 0.0
        %2404 = vmatpush1.msra.mxu0 %v2385
        %2405 = vmatprep.subr.mxu0 0.0
        %2406 = vmatpush1.msra.mxu0 %v2386
        %2407 = vmatprep.subr.mxu0 0.0
        %2408 = vmatpush1.msra.mxu0 %v2387
        %2409 = vmatprep.subr.mxu0 0.0
        %2410 = vmatpush1.msra.mxu0 0.0
        %2411 = vmatprep.subr.mxu0 0.0
        %2412 = vmatpush1.msra.mxu0 0.0
        %2413 = vmatprep.subr.mxu0 0.0
        %2414 = vmatpush1.msra.mxu0 0.0
        %2415 = vmatprep.subr.mxu0 0.0
        %2416 = vmatpush1.msra.mxu0 0.0
        %2417 = vmatprep.subr.mxu0 0.0
        %2418 = vmatpush1.msra.mxu0 0.0
        %2419 = vmatprep.subr.mxu0 0.0
        %2420 = vmatpush1.msra.mxu0 0.0
        %2421 = vmatprep.subr.mxu0 0.0
        %2422 = vmatpush1.msra.mxu0 0.0
        %2423 = vmatprep.subr.mxu0 0.0
        %2424 = vmatpush1.msra.mxu0 0.0
        %2425 = vmatprep.subr.mxu0 0.0
        %2426 = vmatpush1.msra.mxu0 0.0
        %2427 = vmatprep.subr.mxu0 0.0
        %2428 = vmatpush1.msra.mxu0 0.0
        %2429 = vmatprep.subr.mxu0 0.0
        %2430 = vmatpush1.msra.mxu0 0.0
        %2431 = vmatprep.subr.mxu0 0.0
        %2432 = vmatpush1.msra.mxu0 0.0
        %2433 = vmatprep.subr.mxu0 0.0
        %2434 = vmatpush1.msra.mxu0 0.0
        %2435 = vmatprep.subr.mxu0 0.0
        %2436 = vmatpush1.msra.mxu0 0.0
        %2437 = vmatprep.subr.mxu0 0.0
        %2438 = vmatpush1.msra.mxu0 0.0
        %2439 = vmatprep.subr.mxu0 0.0
        %2440 = vmatpush1.msra.mxu0 0.0
        %2441 = vmatprep.subr.mxu0 0.0
        %2442 = vmatpush1.msra.mxu0 0.0
        %2443 = vmatprep.subr.mxu0 0.0
        %2444 = vmatpush1.msra.mxu0 0.0
        %2445 = vmatprep.subr.mxu0 0.0
        %2446 = vmatpush1.msra.mxu0 0.0
        %2447 = vmatprep.subr.mxu0 0.0
        %2448 = vmatpush1.msra.mxu0 0.0
        %2449 = vmatprep.subr.mxu0 0.0
        %2450 = vmatpush1.msra.mxu0 0.0
        %2451 = vmatprep.subr.mxu0 0.0
        %2452 = vmatpush1.msra.mxu0 0.0
        %2453 = vmatprep.subr.mxu0 0.0
        %2454 = vmatpush1.msra.mxu0 0.0
        %2455 = vmatprep.subr.mxu0 0.0
        %2456 = vmatpush1.msra.mxu0 0.0
        %2457 = vmatprep.subr.mxu0 0.0
        %2458 = vmatpush1.msra.mxu0 0.0
        %2459 = vmatprep.subr.mxu0 0.0
        %2460 = vmatpush1.msra.mxu0 0.0
        %2461 = vmatprep.subr.mxu0 0.0
        %2462 = vmatpush1.msra.mxu0 0.0
        %2463 = vmatprep.subr.mxu0 0.0
        %2464 = vmatpush1.msra.mxu0 0.0
        %2465 = vmatprep.mubr.f32.mxu0 0.0
        %2466 = vmatmul.mubr.f32.gmra.mrb[0].mxu0 %v2396
        %v2467 = vpop.f32.mrb[0].mxu0
        %v2468 = vadd.f32 %v2393, %v2467
        %v2469 = vpop.f32.mrb[0].mxu0
        %2470 = vmatprep.mubr.f32.mxu0 0.0
        %2471 = vmatmul.mubr.f32.gmra.mrb[0].mxu0 %v2399
        %v2472 = vpop.f32.mrb[0].mxu0
        %v2473 = vadd.f32 %v2393, %v2472
        %v2474 = vpop.f32.mrb[0].mxu0
        %2475 = vdwg.mxu0
        %v2477 = vsel %vm1411, %v2291, 0
        %v2480 = vsel %vm1411, %v2376, 0
        %v2483 = vsel %vm1411, %v2381, 0
        %2485 = vmatprep.subr.mxu0 0.0
        %2486 = vmatpush1.xpose.msra.mxu0 %v2480
        %2487 = vmatprep.subr.mxu0 0.0
        %2488 = vmatpush1.xpose.msra.mxu0 %v2483
        %2489 = vmatprep.subr.mxu0 0.0
        %2490 = vmatpush1.xpose.msra.mxu0 0.0
        %2491 = vmatprep.subr.mxu0 0.0
        %2492 = vmatpush1.xpose.msra.mxu0 0.0
        %2493 = vmatprep.subr.mxu0 0.0
        %2494 = vmatpush1.xpose.msra.mxu0 0.0
        %2495 = vmatprep.subr.mxu0 0.0
        %2496 = vmatpush1.xpose.msra.mxu0 0.0
        %2497 = vmatprep.subr.mxu0 0.0
        %2498 = vmatpush1.xpose.msra.mxu0 0.0
        %2499 = vmatprep.subr.mxu0 0.0
        %2500 = vmatpush1.xpose.msra.mxu0 0.0
        %2501 = vmatprep.subr.mxu0 0.0
        %2502 = vmatpush1.xpose.msra.mxu0 0.0
        %2503 = vmatprep.subr.mxu0 0.0
        %2504 = vmatpush1.xpose.msra.mxu0 0.0
        %2505 = vmatprep.subr.mxu0 0.0
        %2506 = vmatpush1.xpose.msra.mxu0 0.0
        %2507 = vmatprep.subr.mxu0 0.0
        %2508 = vmatpush1.xpose.msra.mxu0 0.0
        %2509 = vmatprep.subr.mxu0 0.0
        %2510 = vmatpush1.xpose.msra.mxu0 0.0
        %2511 = vmatprep.subr.mxu0 0.0
        %2512 = vmatpush1.xpose.msra.mxu0 0.0
        %2513 = vmatprep.subr.mxu0 0.0
        %2514 = vmatpush1.xpose.msra.mxu0 0.0
        %2515 = vmatprep.subr.mxu0 0.0
        %2516 = vmatpush1.xpose.msra.mxu0 0.0
        %2517 = vmatprep.subr.mxu0 0.0
        %2518 = vmatpush1.xpose.msra.mxu0 0.0
        %2519 = vmatprep.subr.mxu0 0.0
        %2520 = vmatpush1.xpose.msra.mxu0 0.0
        %2521 = vmatprep.subr.mxu0 0.0
        %2522 = vmatpush1.xpose.msra.mxu0 0.0
        %2523 = vmatprep.subr.mxu0 0.0
        %2524 = vmatpush1.xpose.msra.mxu0 0.0
        %2525 = vmatprep.subr.mxu0 0.0
        %2526 = vmatpush1.xpose.msra.mxu0 0.0
        %2527 = vmatprep.subr.mxu0 0.0
        %2528 = vmatpush1.xpose.msra.mxu0 0.0
        %2529 = vmatprep.subr.mxu0 0.0
        %2530 = vmatpush1.xpose.msra.mxu0 0.0
        %2531 = vmatprep.subr.mxu0 0.0
        %2532 = vmatpush1.xpose.msra.mxu0 0.0
        %2533 = vmatprep.subr.mxu0 0.0
        %2534 = vmatpush1.xpose.msra.mxu0 0.0
        %2535 = vmatprep.subr.mxu0 0.0
        %2536 = vmatpush1.xpose.msra.mxu0 0.0
        %2537 = vmatprep.subr.mxu0 0.0
        %2538 = vmatpush1.xpose.msra.mxu0 0.0
        %2539 = vmatprep.subr.mxu0 0.0
        %2540 = vmatpush1.xpose.msra.mxu0 0.0
        %2541 = vmatprep.subr.mxu0 0.0
        %2542 = vmatpush1.xpose.msra.mxu0 0.0
        %2543 = vmatprep.subr.mxu0 0.0
        %2544 = vmatpush1.xpose.msra.mxu0 0.0
        %2545 = vmatprep.subr.mxu0 0.0
        %2546 = vmatpush1.xpose.msra.mxu0 0.0
        %2547 = vmatprep.subr.mxu0 0.0
        %2548 = vmatpush1.xpose.msra.mxu0 0.0
        %2549 = vmatprep.mubr.f32.mxu0 0.0
        %2550 = vmatmul.mubr.f32.gmra.mrb[0].mxu0 %v2477
        %v2551 = vpop.f32.mrb[0].mxu0
        %v2552 = vadd.f32 0.0, %v2551
        %v2553 = vpop.f32.mrb[0].mxu0
        %2554 = vdwg.mxu0
        %vm2555 = vcmask 130048
        %v2556 = vsel %vm2555, %v2552, -inf
        %2557 = vmax.xlane.f32.xlu0 %v2556
        %v2558 = vpop.xlane.xlu0 %2557
        %v2559 = vsub.f32 %v2552, %v2558
        %v2560 = vmul.f32 %v2559, 1.442695
        %v2561 = vpow.pop %v2560
        %v2562 = vsel %vm2555, %v2561, 0.0
        %2563 = vadd.xlane.f32.xlu0 %v2562
        %v2564 = vpop.xlane.xlu0 %2563
        %v2565 = vrcp.pop %v2564
        %v2566 = vmul.f32 %v2561, %v2565
        %v2568 = vsel %vm2555, %v2566, 0
        %2570 = vmatprep.subr.mxu0 0.0
        %2571 = vmatpush1.msra.mxu0 %v2468
        %2572 = vmatprep.subr.mxu0 0.0
        %2573 = vmatpush1.msra.mxu0 %v2473
        %2574 = vmatprep.subr.mxu0 0.0
        %2575 = vmatpush1.msra.mxu0 0.0
        %2576 = vmatprep.subr.mxu0 0.0
        %2577 = vmatpush1.msra.mxu0 0.0
        %2578 = vmatprep.subr.mxu0 0.0
        %2579 = vmatpush1.msra.mxu0 0.0
        %2580 = vmatprep.subr.mxu0 0.0
        %2581 = vmatpush1.msra.mxu0 0.0
        %2582 = vmatprep.subr.mxu0 0.0
        %2583 = vmatpush1.msra.mxu0 0.0
        %2584 = vmatprep.subr.mxu0 0.0
        %2585 = vmatpush1.msra.mxu0 0.0
        %2586 = vmatprep.subr.mxu0 0.0
        %2587 = vmatpush1.msra.mxu0 0.0
        %2588 = vmatprep.subr.mxu0 0.0
        %2589 = vmatpush1.msra.mxu0 0.0
        %2590 = vmatprep.subr.mxu0 0.0
        %2591 = vmatpush1.msra.mxu0 0.0
        %2592 = vmatprep.subr.mxu0 0.0
        %2593 = vmatpush1.msra.mxu0 0.0
        %2594 = vmatprep.subr.mxu0 0.0
        %2595 = vmatpush1.msra.mxu0 0.0
        %2596 = vmatprep.subr.mxu0 0.0
        %2597 = vmatpush1.msra.mxu0 0.0
        %2598 = vmatprep.subr.mxu0 0.0
        %2599 = vmatpush1.msra.mxu0 0.0
        %2600 = vmatprep.subr.mxu0 0.0
        %2601 = vmatpush1.msra.mxu0 0.0
        %2602 = vmatprep.subr.mxu0 0.0
        %2603 = vmatpush1.msra.mxu0 0.0
        %2604 = vmatprep.subr.mxu0 0.0
        %2605 = vmatpush1.msra.mxu0 0.0
        %2606 = vmatprep.subr.mxu0 0.0
        %2607 = vmatpush1.msra.mxu0 0.0
        %2608 = vmatprep.subr.mxu0 0.0
        %2609 = vmatpush1.msra.mxu0 0.0
        %2610 = vmatprep.subr.mxu0 0.0
        %2611 = vmatpush1.msra.mxu0 0.0
        %2612 = vmatprep.subr.mxu0 0.0
        %2613 = vmatpush1.msra.mxu0 0.0
        %2614 = vmatprep.subr.mxu0 0.0
        %2615 = vmatpush1.msra.mxu0 0.0
        %2616 = vmatprep.subr.mxu0 0.0
        %2617 = vmatpush1.msra.mxu0 0.0
        %2618 = vmatprep.subr.mxu0 0.0
        %2619 = vmatpush1.msra.mxu0 0.0
        %2620 = vmatprep.subr.mxu0 0.0
        %2621 = vmatpush1.msra.mxu0 0.0
        %2622 = vmatprep.subr.mxu0 0.0
        %2623 = vmatpush1.msra.mxu0 0.0
        %2624 = vmatprep.subr.mxu0 0.0
        %2625 = vmatpush1.msra.mxu0 0.0
        %2626 = vmatprep.subr.mxu0 0.0
        %2627 = vmatpush1.msra.mxu0 0.0
        %2628 = vmatprep.subr.mxu0 0.0
        %2629 = vmatpush1.msra.mxu0 0.0
        %2630 = vmatprep.subr.mxu0 0.0
        %2631 = vmatpush1.msra.mxu0 0.0
        %2632 = vmatprep.subr.mxu0 0.0
        %2633 = vmatpush1.msra.mxu0 0.0
        %2634 = vmatprep.mubr.f32.mxu0 0.0
        %2635 = vmatmul.mubr.f32.gmra.mrb[0].mxu0 %v2568
        %v2636 = vpop.f32.mrb[0].mxu0
        %v2637 = vadd.f32 0.0, %v2636
        %v2638 = vpop.f32.mrb[0].mxu0
        %2639 = vdwg.mxu0
        %2640 = vst.msk [vmem:[#allocation2] sm:$0xff] %vm1411, %v2637
        %2641 = vrot.lane.b32.xlu0 %v2291, 120
        %v2642 = vpop.permute.xlu0 %2641
        %2643 = vrot.lane.b32.xlu0 %v2376, 120
        %v2644 = vpop.permute.xlu0 %2643
        %2645 = vrot.lane.b32.xlu0 %v2381, 120
        %v2646 = vpop.permute.xlu0 %2645
        %v2647 = vsel %vm1411, %v2642, 0
        %v2649 = vsel %vm1411, %v2644, 0
        %v2651 = vsel %vm1411, %v2646, 0
        %2653 = vmatprep.subr.mxu0 0.0
        %2654 = vmatpush1.xpose.msra.mxu0 %v2649
        %2655 = vmatprep.subr.mxu0 0.0
        %2656 = vmatpush1.xpose.msra.mxu0 %v2651
        %2657 = vmatprep.subr.mxu0 0.0
        %2658 = vmatpush1.xpose.msra.mxu0 0.0
        %2659 = vmatprep.subr.mxu0 0.0
        %2660 = vmatpush1.xpose.msra.mxu0 0.0
        %2661 = vmatprep.subr.mxu0 0.0
        %2662 = vmatpush1.xpose.msra.mxu0 0.0
        %2663 = vmatprep.subr.mxu0 0.0
        %2664 = vmatpush1.xpose.msra.mxu0 0.0
        %2665 = vmatprep.subr.mxu0 0.0
        %2666 = vmatpush1.xpose.msra.mxu0 0.0
        %2667 = vmatprep.subr.mxu0 0.0
        %2668 = vmatpush1.xpose.msra.mxu0 0.0
        %2669 = vmatprep.subr.mxu0 0.0
        %2670 = vmatpush1.xpose.msra.mxu0 0.0
        %2671 = vmatprep.subr.mxu0 0.0
        %2672 = vmatpush1.xpose.msra.mxu0 0.0
        %2673 = vmatprep.subr.mxu0 0.0
        %2674 = vmatpush1.xpose.msra.mxu0 0.0
        %2675 = vmatprep.subr.mxu0 0.0
        %2676 = vmatpush1.xpose.msra.mxu0 0.0
        %2677 = vmatprep.subr.mxu0 0.0
        %2678 = vmatpush1.xpose.msra.mxu0 0.0
        %2679 = vmatprep.subr.mxu0 0.0
        %2680 = vmatpush1.xpose.msra.mxu0 0.0
        %2681 = vmatprep.subr.mxu0 0.0
        %2682 = vmatpush1.xpose.msra.mxu0 0.0
        %2683 = vmatprep.subr.mxu0 0.0
        %2684 = vmatpush1.xpose.msra.mxu0 0.0
        %2685 = vmatprep.subr.mxu0 0.0
        %2686 = vmatpush1.xpose.msra.mxu0 0.0
        %2687 = vmatprep.subr.mxu0 0.0
        %2688 = vmatpush1.xpose.msra.mxu0 0.0
        %2689 = vmatprep.subr.mxu0 0.0
        %2690 = vmatpush1.xpose.msra.mxu0 0.0
        %2691 = vmatprep.subr.mxu0 0.0
        %2692 = vmatpush1.xpose.msra.mxu0 0.0
        %2693 = vmatprep.subr.mxu0 0.0
        %2694 = vmatpush1.xpose.msra.mxu0 0.0
        %2695 = vmatprep.subr.mxu0 0.0
        %2696 = vmatpush1.xpose.msra.mxu0 0.0
        %2697 = vmatprep.subr.mxu0 0.0
        %2698 = vmatpush1.xpose.msra.mxu0 0.0
        %2699 = vmatprep.subr.mxu0 0.0
        %2700 = vmatpush1.xpose.msra.mxu0 0.0
        %2701 = vmatprep.subr.mxu0 0.0
        %2702 = vmatpush1.xpose.msra.mxu0 0.0
        %2703 = vmatprep.subr.mxu0 0.0
        %2704 = vmatpush1.xpose.msra.mxu0 0.0
        %2705 = vmatprep.subr.mxu0 0.0
        %2706 = vmatpush1.xpose.msra.mxu0 0.0
        %2707 = vmatprep.subr.mxu0 0.0
        %2708 = vmatpush1.xpose.msra.mxu0 0.0
        %2709 = vmatprep.subr.mxu0 0.0
        %2710 = vmatpush1.xpose.msra.mxu0 0.0
        %2711 = vmatprep.subr.mxu0 0.0
        %2712 = vmatpush1.xpose.msra.mxu0 0.0
        %2713 = vmatprep.subr.mxu0 0.0
        %2714 = vmatpush1.xpose.msra.mxu0 0.0
        %2715 = vmatprep.subr.mxu0 0.0
        %2716 = vmatpush1.xpose.msra.mxu0 0.0
        %2717 = vmatprep.mubr.f32.mxu0 0.0
        %2718 = vmatmul.mubr.f32.gmra.mrb[0].mxu0 %v2647
        %v2719 = vpop.f32.mrb[0].mxu0
        %v2720 = vadd.f32 0.0, %v2719
        %v2721 = vpop.f32.mrb[0].mxu0
        %2722 = vdwg.mxu0
        %v2723 = vsel %vm2555, %v2720, -inf
        %2724 = vmax.xlane.f32.xlu0 %v2723
        %v2725 = vpop.xlane.xlu0 %2724
        %v2726 = vsub.f32 %v2720, %v2725
        %v2727 = vmul.f32 %v2726, 1.442695
        %v2728 = vpow.pop %v2727
        %v2729 = vsel %vm2555, %v2728, 0.0
        %2730 = vadd.xlane.f32.xlu0 %v2729
        %v2731 = vpop.xlane.xlu0 %2730
        %v2732 = vrcp.pop %v2731
        %v2733 = vmul.f32 %v2728, %v2732
        %2736 = vrot.lane.b32.xlu0 %v2468, 120
        %v2737 = vpop.permute.xlu0 %2736
        %2738 = vrot.lane.b32.xlu0 %v2473, 120
        %v2739 = vpop.permute.xlu0 %2738
        %v2743 = vsel %vm2555, %v2733, 0
        %2745 = vmatprep.subr.mxu0 0.0
        %2746 = vmatpush1.msra.mxu0 %v2737
        %2747 = vmatprep.subr.mxu0 0.0
        %2748 = vmatpush1.msra.mxu0 %v2739
        %2749 = vmatprep.subr.mxu0 0.0
        %2750 = vmatpush1.msra.mxu0 0.0
        %2751 = vmatprep.subr.mxu0 0.0
        %2752 = vmatpush1.msra.mxu0 0.0
        %2753 = vmatprep.subr.mxu0 0.0
        %2754 = vmatpush1.msra.mxu0 0.0
        %2755 = vmatprep.subr.mxu0 0.0
        %2756 = vmatpush1.msra.mxu0 0.0
        %2757 = vmatprep.subr.mxu0 0.0
        %2758 = vmatpush1.msra.mxu0 0.0
        %2759 = vmatprep.subr.mxu0 0.0
        %2760 = vmatpush1.msra.mxu0 0.0
        %2761 = vmatprep.subr.mxu0 0.0
        %2762 = vmatpush1.msra.mxu0 0.0
        %2763 = vmatprep.subr.mxu0 0.0
        %2764 = vmatpush1.msra.mxu0 0.0
        %2765 = vmatprep.subr.mxu0 0.0
        %2766 = vmatpush1.msra.mxu0 0.0
        %2767 = vmatprep.subr.mxu0 0.0
        %2768 = vmatpush1.msra.mxu0 0.0
        %2769 = vmatprep.subr.mxu0 0.0
        %2770 = vmatpush1.msra.mxu0 0.0
        %2771 = vmatprep.subr.mxu0 0.0
        %2772 = vmatpush1.msra.mxu0 0.0
        %2773 = vmatprep.subr.mxu0 0.0
        %2774 = vmatpush1.msra.mxu0 0.0
        %2775 = vmatprep.subr.mxu0 0.0
        %2776 = vmatpush1.msra.mxu0 0.0
        %2777 = vmatprep.subr.mxu0 0.0
        %2778 = vmatpush1.msra.mxu0 0.0
        %2779 = vmatprep.subr.mxu0 0.0
        %2780 = vmatpush1.msra.mxu0 0.0
        %2781 = vmatprep.subr.mxu0 0.0
        %2782 = vmatpush1.msra.mxu0 0.0
        %2783 = vmatprep.subr.mxu0 0.0
        %2784 = vmatpush1.msra.mxu0 0.0
        %2785 = vmatprep.subr.mxu0 0.0
        %2786 = vmatpush1.msra.mxu0 0.0
        %2787 = vmatprep.subr.mxu0 0.0
        %2788 = vmatpush1.msra.mxu0 0.0
        %2789 = vmatprep.subr.mxu0 0.0
        %2790 = vmatpush1.msra.mxu0 0.0
        %2791 = vmatprep.subr.mxu0 0.0
        %2792 = vmatpush1.msra.mxu0 0.0
        %2793 = vmatprep.subr.mxu0 0.0
        %2794 = vmatpush1.msra.mxu0 0.0
        %2795 = vmatprep.subr.mxu0 0.0
        %2796 = vmatpush1.msra.mxu0 0.0
        %2797 = vmatprep.subr.mxu0 0.0
        %2798 = vmatpush1.msra.mxu0 0.0
        %2799 = vmatprep.subr.mxu0 0.0
        %2800 = vmatpush1.msra.mxu0 0.0
        %2801 = vmatprep.subr.mxu0 0.0
        %2802 = vmatpush1.msra.mxu0 0.0
        %2803 = vmatprep.subr.mxu0 0.0
        %2804 = vmatpush1.msra.mxu0 0.0
        %2805 = vmatprep.subr.mxu0 0.0
        %2806 = vmatpush1.msra.mxu0 0.0
        %2807 = vmatprep.subr.mxu0 0.0
        %2808 = vmatpush1.msra.mxu0 0.0
        %2809 = vmatprep.mubr.f32.mxu0 0.0
        %2810 = vmatmul.mubr.f32.gmra.mrb[0].mxu0 %v2743
        %v2811 = vpop.f32.mrb[0].mxu0
        %v2812 = vadd.f32 0.0, %v2811
        %v2813 = vpop.f32.mrb[0].mxu0
        %2814 = vdwg.mxu0
        %2816 = vrot.lane.b32.xlu0 %v2812, 8
        %v2817 = vpop.permute.xlu0 %2816
        %2819 = vst.msk [vmem:[#allocation2] sm:$0xff] %vm1743, %v2817
        %2820 = vrot.lane.b32.xlu0 %v2291, 112
        %v2821 = vpop.permute.xlu0 %2820
        %2822 = vrot.lane.b32.xlu0 %v2376, 112
        %v2823 = vpop.permute.xlu0 %2822
        %2824 = vrot.lane.b32.xlu0 %v2381, 112
        %v2825 = vpop.permute.xlu0 %2824
        %v2826 = vsel %vm1411, %v2821, 0
        %v2828 = vsel %vm1411, %v2823, 0
        %v2830 = vsel %vm1411, %v2825, 0
        %2832 = vmatprep.subr.mxu0 0.0
        %2833 = vmatpush1.xpose.msra.mxu0 %v2828
        %2834 = vmatprep.subr.mxu0 0.0
        %2835 = vmatpush1.xpose.msra.mxu0 %v2830
        %2836 = vmatprep.subr.mxu0 0.0
        %2837 = vmatpush1.xpose.msra.mxu0 0.0
        %2838 = vmatprep.subr.mxu0 0.0
        %2839 = vmatpush1.xpose.msra.mxu0 0.0
        %2840 = vmatprep.subr.mxu0 0.0
        %2841 = vmatpush1.xpose.msra.mxu0 0.0
        %2842 = vmatprep.subr.mxu0 0.0
        %2843 = vmatpush1.xpose.msra.mxu0 0.0
        %2844 = vmatprep.subr.mxu0 0.0
        %2845 = vmatpush1.xpose.msra.mxu0 0.0
        %2846 = vmatprep.subr.mxu0 0.0
        %2847 = vmatpush1.xpose.msra.mxu0 0.0
        %2848 = vmatprep.subr.mxu0 0.0
        %2849 = vmatpush1.xpose.msra.mxu0 0.0
        %2850 = vmatprep.subr.mxu0 0.0
        %2851 = vmatpush1.xpose.msra.mxu0 0.0
        %2852 = vmatprep.subr.mxu0 0.0
        %2853 = vmatpush1.xpose.msra.mxu0 0.0
        %2854 = vmatprep.subr.mxu0 0.0
        %2855 = vmatpush1.xpose.msra.mxu0 0.0
        %2856 = vmatprep.subr.mxu0 0.0
        %2857 = vmatpush1.xpose.msra.mxu0 0.0
        %2858 = vmatprep.subr.mxu0 0.0
        %2859 = vmatpush1.xpose.msra.mxu0 0.0
        %2860 = vmatprep.subr.mxu0 0.0
        %2861 = vmatpush1.xpose.msra.mxu0 0.0
        %2862 = vmatprep.subr.mxu0 0.0
        %2863 = vmatpush1.xpose.msra.mxu0 0.0
        %2864 = vmatprep.subr.mxu0 0.0
        %2865 = vmatpush1.xpose.msra.mxu0 0.0
        %2866 = vmatprep.subr.mxu0 0.0
        %2867 = vmatpush1.xpose.msra.mxu0 0.0
        %2868 = vmatprep.subr.mxu0 0.0
        %2869 = vmatpush1.xpose.msra.mxu0 0.0
        %2870 = vmatprep.subr.mxu0 0.0
        %2871 = vmatpush1.xpose.msra.mxu0 0.0
        %2872 = vmatprep.subr.mxu0 0.0
        %2873 = vmatpush1.xpose.msra.mxu0 0.0
        %2874 = vmatprep.subr.mxu0 0.0
        %2875 = vmatpush1.xpose.msra.mxu0 0.0
        %2876 = vmatprep.subr.mxu0 0.0
        %2877 = vmatpush1.xpose.msra.mxu0 0.0
        %2878 = vmatprep.subr.mxu0 0.0
        %2879 = vmatpush1.xpose.msra.mxu0 0.0
        %2880 = vmatprep.subr.mxu0 0.0
        %2881 = vmatpush1.xpose.msra.mxu0 0.0
        %2882 = vmatprep.subr.mxu0 0.0
        %2883 = vmatpush1.xpose.msra.mxu0 0.0
        %2884 = vmatprep.subr.mxu0 0.0
        %2885 = vmatpush1.xpose.msra.mxu0 0.0
        %2886 = vmatprep.subr.mxu0 0.0
        %2887 = vmatpush1.xpose.msra.mxu0 0.0
        %2888 = vmatprep.subr.mxu0 0.0
        %2889 = vmatpush1.xpose.msra.mxu0 0.0
        %2890 = vmatprep.subr.mxu0 0.0
        %2891 = vmatpush1.xpose.msra.mxu0 0.0
        %2892 = vmatprep.subr.mxu0 0.0
        %2893 = vmatpush1.xpose.msra.mxu0 0.0
        %2894 = vmatprep.subr.mxu0 0.0
        %2895 = vmatpush1.xpose.msra.mxu0 0.0
        %2896 = vmatprep.mubr.f32.mxu0 0.0
        %2897 = vmatmul.mubr.f32.gmra.mrb[0].mxu0 %v2826
        %v2898 = vpop.f32.mrb[0].mxu0
        %v2899 = vadd.f32 0.0, %v2898
        %v2900 = vpop.f32.mrb[0].mxu0
        %2901 = vdwg.mxu0
        %v2902 = vsel %vm2555, %v2899, -inf
        %2903 = vmax.xlane.f32.xlu0 %v2902
        %v2904 = vpop.xlane.xlu0 %2903
        %v2905 = vsub.f32 %v2899, %v2904
        %v2906 = vmul.f32 %v2905, 1.442695
        %v2907 = vpow.pop %v2906
        %v2908 = vsel %vm2555, %v2907, 0.0
        %2909 = vadd.xlane.f32.xlu0 %v2908
        %v2910 = vpop.xlane.xlu0 %2909
        %v2911 = vrcp.pop %v2910
        %v2912 = vmul.f32 %v2907, %v2911
        %2913 = vrot.lane.b32.xlu0 %v2468, 112
        %v2914 = vpop.permute.xlu0 %2913
        %2915 = vrot.lane.b32.xlu0 %v2473, 112
        %v2916 = vpop.permute.xlu0 %2915
        %v2920 = vsel %vm2555, %v2912, 0
        %2922 = vmatprep.subr.mxu0 0.0
        %2923 = vmatpush1.msra.mxu0 %v2914
        %2924 = vmatprep.subr.mxu0 0.0
        %2925 = vmatpush1.msra.mxu0 %v2916
        %2926 = vmatprep.subr.mxu0 0.0
        %2927 = vmatpush1.msra.mxu0 0.0
        %2928 = vmatprep.subr.mxu0 0.0
        %2929 = vmatpush1.msra.mxu0 0.0
        %2930 = vmatprep.subr.mxu0 0.0
        %2931 = vmatpush1.msra.mxu0 0.0
        %2932 = vmatprep.subr.mxu0 0.0
        %2933 = vmatpush1.msra.mxu0 0.0
        %2934 = vmatprep.subr.mxu0 0.0
        %2935 = vmatpush1.msra.mxu0 0.0
        %2936 = vmatprep.subr.mxu0 0.0
        %2937 = vmatpush1.msra.mxu0 0.0
        %2938 = vmatprep.subr.mxu0 0.0
        %2939 = vmatpush1.msra.mxu0 0.0
        %2940 = vmatprep.subr.mxu0 0.0
        %2941 = vmatpush1.msra.mxu0 0.0
        %2942 = vmatprep.subr.mxu0 0.0
        %2943 = vmatpush1.msra.mxu0 0.0
        %2944 = vmatprep.subr.mxu0 0.0
        %2945 = vmatpush1.msra.mxu0 0.0
        %2946 = vmatprep.subr.mxu0 0.0
        %2947 = vmatpush1.msra.mxu0 0.0
        %2948 = vmatprep.subr.mxu0 0.0
        %2949 = vmatpush1.msra.mxu0 0.0
        %2950 = vmatprep.subr.mxu0 0.0
        %2951 = vmatpush1.msra.mxu0 0.0
        %2952 = vmatprep.subr.mxu0 0.0
        %2953 = vmatpush1.msra.mxu0 0.0
        %2954 = vmatprep.subr.mxu0 0.0
        %2955 = vmatpush1.msra.mxu0 0.0
        %2956 = vmatprep.subr.mxu0 0.0
        %2957 = vmatpush1.msra.mxu0 0.0
        %2958 = vmatprep.subr.mxu0 0.0
        %2959 = vmatpush1.msra.mxu0 0.0
        %2960 = vmatprep.subr.mxu0 0.0
        %2961 = vmatpush1.msra.mxu0 0.0
        %2962 = vmatprep.subr.mxu0 0.0
        %2963 = vmatpush1.msra.mxu0 0.0
        %2964 = vmatprep.subr.mxu0 0.0
        %2965 = vmatpush1.msra.mxu0 0.0
        %2966 = vmatprep.subr.mxu0 0.0
        %2967 = vmatpush1.msra.mxu0 0.0
        %2968 = vmatprep.subr.mxu0 0.0
        %2969 = vmatpush1.msra.mxu0 0.0
        %2970 = vmatprep.subr.mxu0 0.0
        %2971 = vmatpush1.msra.mxu0 0.0
        %2972 = vmatprep.subr.mxu0 0.0
        %2973 = vmatpush1.msra.mxu0 0.0
        %2974 = vmatprep.subr.mxu0 0.0
        %2975 = vmatpush1.msra.mxu0 0.0
        %2976 = vmatprep.subr.mxu0 0.0
        %2977 = vmatpush1.msra.mxu0 0.0
        %2978 = vmatprep.subr.mxu0 0.0
        %2979 = vmatpush1.msra.mxu0 0.0
        %2980 = vmatprep.subr.mxu0 0.0
        %2981 = vmatpush1.msra.mxu0 0.0
        %2982 = vmatprep.subr.mxu0 0.0
        %2983 = vmatpush1.msra.mxu0 0.0
        %2984 = vmatprep.subr.mxu0 0.0
        %2985 = vmatpush1.msra.mxu0 0.0
        %2986 = vmatprep.mubr.f32.mxu0 0.0
        %2987 = vmatmul.mubr.f32.gmra.mrb[0].mxu0 %v2920
        %v2988 = vpop.f32.mrb[0].mxu0
        %v2989 = vadd.f32 0.0, %v2988
        %v2990 = vpop.f32.mrb[0].mxu0
        %2991 = vdwg.mxu0
        %2993 = vrot.lane.b32.xlu0 %v2989, 16
        %v2994 = vpop.permute.xlu0 %2993
        %2996 = vst.msk [vmem:[#allocation2] sm:$0xff] %vm1914, %v2994
        %2997 = vrot.lane.b32.xlu0 %v2291, 104
        %v2998 = vpop.permute.xlu0 %2997
        %2999 = vrot.lane.b32.xlu0 %v2376, 104
        %v3000 = vpop.permute.xlu0 %2999
        %3001 = vrot.lane.b32.xlu0 %v2381, 104
        %v3002 = vpop.permute.xlu0 %3001
        %v3003 = vsel %vm1411, %v2998, 0
        %v3005 = vsel %vm1411, %v3000, 0
        %v3007 = vsel %vm1411, %v3002, 0
        %3009 = vmatprep.subr.mxu0 0.0
        %3010 = vmatpush1.xpose.msra.mxu0 %v3005
        %3011 = vmatprep.subr.mxu0 0.0
        %3012 = vmatpush1.xpose.msra.mxu0 %v3007
        %3013 = vmatprep.subr.mxu0 0.0
        %3014 = vmatpush1.xpose.msra.mxu0 0.0
        %3015 = vmatprep.subr.mxu0 0.0
        %3016 = vmatpush1.xpose.msra.mxu0 0.0
        %3017 = vmatprep.subr.mxu0 0.0
        %3018 = vmatpush1.xpose.msra.mxu0 0.0
        %3019 = vmatprep.subr.mxu0 0.0
        %3020 = vmatpush1.xpose.msra.mxu0 0.0
        %3021 = vmatprep.subr.mxu0 0.0
        %3022 = vmatpush1.xpose.msra.mxu0 0.0
        %3023 = vmatprep.subr.mxu0 0.0
        %3024 = vmatpush1.xpose.msra.mxu0 0.0
        %3025 = vmatprep.subr.mxu0 0.0
        %3026 = vmatpush1.xpose.msra.mxu0 0.0
        %3027 = vmatprep.subr.mxu0 0.0
        %3028 = vmatpush1.xpose.msra.mxu0 0.0
        %3029 = vmatprep.subr.mxu0 0.0
        %3030 = vmatpush1.xpose.msra.mxu0 0.0
        %3031 = vmatprep.subr.mxu0 0.0
        %3032 = vmatpush1.xpose.msra.mxu0 0.0
        %3033 = vmatprep.subr.mxu0 0.0
        %3034 = vmatpush1.xpose.msra.mxu0 0.0
        %3035 = vmatprep.subr.mxu0 0.0
        %3036 = vmatpush1.xpose.msra.mxu0 0.0
        %3037 = vmatprep.subr.mxu0 0.0
        %3038 = vmatpush1.xpose.msra.mxu0 0.0
        %3039 = vmatprep.subr.mxu0 0.0
        %3040 = vmatpush1.xpose.msra.mxu0 0.0
        %3041 = vmatprep.subr.mxu0 0.0
        %3042 = vmatpush1.xpose.msra.mxu0 0.0
        %3043 = vmatprep.subr.mxu0 0.0
        %3044 = vmatpush1.xpose.msra.mxu0 0.0
        %3045 = vmatprep.subr.mxu0 0.0
        %3046 = vmatpush1.xpose.msra.mxu0 0.0
        %3047 = vmatprep.subr.mxu0 0.0
        %3048 = vmatpush1.xpose.msra.mxu0 0.0
        %3049 = vmatprep.subr.mxu0 0.0
        %3050 = vmatpush1.xpose.msra.mxu0 0.0
        %3051 = vmatprep.subr.mxu0 0.0
        %3052 = vmatpush1.xpose.msra.mxu0 0.0
        %3053 = vmatprep.subr.mxu0 0.0
        %3054 = vmatpush1.xpose.msra.mxu0 0.0
        %3055 = vmatprep.subr.mxu0 0.0
        %3056 = vmatpush1.xpose.msra.mxu0 0.0
        %3057 = vmatprep.subr.mxu0 0.0
        %3058 = vmatpush1.xpose.msra.mxu0 0.0
        %3059 = vmatprep.subr.mxu0 0.0
        %3060 = vmatpush1.xpose.msra.mxu0 0.0
        %3061 = vmatprep.subr.mxu0 0.0
        %3062 = vmatpush1.xpose.msra.mxu0 0.0
        %3063 = vmatprep.subr.mxu0 0.0
        %3064 = vmatpush1.xpose.msra.mxu0 0.0
        %3065 = vmatprep.subr.mxu0 0.0
        %3066 = vmatpush1.xpose.msra.mxu0 0.0
        %3067 = vmatprep.subr.mxu0 0.0
        %3068 = vmatpush1.xpose.msra.mxu0 0.0
        %3069 = vmatprep.subr.mxu0 0.0
        %3070 = vmatpush1.xpose.msra.mxu0 0.0
        %3071 = vmatprep.subr.mxu0 0.0
        %3072 = vmatpush1.xpose.msra.mxu0 0.0
        %3073 = vmatprep.mubr.f32.mxu0 0.0
        %3074 = vmatmul.mubr.f32.gmra.mrb[0].mxu0 %v3003
        %v3075 = vpop.f32.mrb[0].mxu0
        %v3076 = vadd.f32 0.0, %v3075
        %v3077 = vpop.f32.mrb[0].mxu0
        %3078 = vdwg.mxu0
        %v3079 = vsel %vm2555, %v3076, -inf
        %3080 = vmax.xlane.f32.xlu0 %v3079
        %v3081 = vpop.xlane.xlu0 %3080
        %v3082 = vsub.f32 %v3076, %v3081
        %v3083 = vmul.f32 %v3082, 1.442695
        %v3084 = vpow.pop %v3083
        %v3085 = vsel %vm2555, %v3084, 0.0
        %3086 = vadd.xlane.f32.xlu0 %v3085
        %v3087 = vpop.xlane.xlu0 %3086
        %v3088 = vrcp.pop %v3087
        %v3089 = vmul.f32 %v3084, %v3088
        %3090 = vrot.lane.b32.xlu0 %v2468, 104
        %v3091 = vpop.permute.xlu0 %3090
        %3092 = vrot.lane.b32.xlu0 %v2473, 104
        %v3093 = vpop.permute.xlu0 %3092
        %v3097 = vsel %vm2555, %v3089, 0
        %3099 = vmatprep.subr.mxu0 0.0
        %3100 = vmatpush1.msra.mxu0 %v3091
        %3101 = vmatprep.subr.mxu0 0.0
        %3102 = vmatpush1.msra.mxu0 %v3093
        %3103 = vmatprep.subr.mxu0 0.0
        %3104 = vmatpush1.msra.mxu0 0.0
        %3105 = vmatprep.subr.mxu0 0.0
        %3106 = vmatpush1.msra.mxu0 0.0
        %3107 = vmatprep.subr.mxu0 0.0
        %3108 = vmatpush1.msra.mxu0 0.0
        %3109 = vmatprep.subr.mxu0 0.0
        %3110 = vmatpush1.msra.mxu0 0.0
        %3111 = vmatprep.subr.mxu0 0.0
        %3112 = vmatpush1.msra.mxu0 0.0
        %3113 = vmatprep.subr.mxu0 0.0
        %3114 = vmatpush1.msra.mxu0 0.0
        %3115 = vmatprep.subr.mxu0 0.0
        %3116 = vmatpush1.msra.mxu0 0.0
        %3117 = vmatprep.subr.mxu0 0.0
        %3118 = vmatpush1.msra.mxu0 0.0
        %3119 = vmatprep.subr.mxu0 0.0
        %3120 = vmatpush1.msra.mxu0 0.0
        %3121 = vmatprep.subr.mxu0 0.0
        %3122 = vmatpush1.msra.mxu0 0.0
        %3123 = vmatprep.subr.mxu0 0.0
        %3124 = vmatpush1.msra.mxu0 0.0
        %3125 = vmatprep.subr.mxu0 0.0
        %3126 = vmatpush1.msra.mxu0 0.0
        %3127 = vmatprep.subr.mxu0 0.0
        %3128 = vmatpush1.msra.mxu0 0.0
        %3129 = vmatprep.subr.mxu0 0.0
        %3130 = vmatpush1.msra.mxu0 0.0
        %3131 = vmatprep.subr.mxu0 0.0
        %3132 = vmatpush1.msra.mxu0 0.0
        %3133 = vmatprep.subr.mxu0 0.0
        %3134 = vmatpush1.msra.mxu0 0.0
        %3135 = vmatprep.subr.mxu0 0.0
        %3136 = vmatpush1.msra.mxu0 0.0
        %3137 = vmatprep.subr.mxu0 0.0
        %3138 = vmatpush1.msra.mxu0 0.0
        %3139 = vmatprep.subr.mxu0 0.0
        %3140 = vmatpush1.msra.mxu0 0.0
        %3141 = vmatprep.subr.mxu0 0.0
        %3142 = vmatpush1.msra.mxu0 0.0
        %3143 = vmatprep.subr.mxu0 0.0
        %3144 = vmatpush1.msra.mxu0 0.0
        %3145 = vmatprep.subr.mxu0 0.0
        %3146 = vmatpush1.msra.mxu0 0.0
        %3147 = vmatprep.subr.mxu0 0.0
        %3148 = vmatpush1.msra.mxu0 0.0
        %3149 = vmatprep.subr.mxu0 0.0
        %3150 = vmatpush1.msra.mxu0 0.0
        %3151 = vmatprep.subr.mxu0 0.0
        %3152 = vmatpush1.msra.mxu0 0.0
        %3153 = vmatprep.subr.mxu0 0.0
        %3154 = vmatpush1.msra.mxu0 0.0
        %3155 = vmatprep.subr.mxu0 0.0
        %3156 = vmatpush1.msra.mxu0 0.0
        %3157 = vmatprep.subr.mxu0 0.0
        %3158 = vmatpush1.msra.mxu0 0.0
        %3159 = vmatprep.subr.mxu0 0.0
        %3160 = vmatpush1.msra.mxu0 0.0
        %3161 = vmatprep.subr.mxu0 0.0
        %3162 = vmatpush1.msra.mxu0 0.0
        %3163 = vmatprep.mubr.f32.mxu0 0.0
        %3164 = vmatmul.mubr.f32.gmra.mrb[0].mxu0 %v3097
        %v3165 = vpop.f32.mrb[0].mxu0
        %v3166 = vadd.f32 0.0, %v3165
        %v3167 = vpop.f32.mrb[0].mxu0
        %3168 = vdwg.mxu0
        %3170 = vrot.lane.b32.xlu0 %v3166, 24
        %v3171 = vpop.permute.xlu0 %3170
        %3173 = vst.msk [vmem:[#allocation2] sm:$0xff] %vm2085, %v3171
        %v3174 = vld [vmem:[#allocation2] sm:$0xff]
        %v3175 = vld [vmem:[%s37] sm:$0xff]
        %v3176 = vld [vmem:[%s37 + $0x8] sm:$0xff]
        %v3177 = vld [vmem:[%s37 + $0x10] sm:$0xff]
        %v3178 = vld [vmem:[%s37 + $0x18] sm:$0xff]
        %v3179 = vld [vmem:[%s39] sm:$0x1]
        %v3181 = vlaneseq
        %v3182 = vshrl.u32 %v3181, 7
        %v3183 = vsub.s32 0, %v3182
        %v3184 = vrot.slane %v3179, %v3183
        %v3187 = vsel %vm1171, %v3174, 0
        %3189 = vmatprep.subr.mxu0 0.0
        %3190 = vmatpush1.msra.mxu0 %v3175
        %3191 = vmatprep.subr.mxu0 0.0
        %3192 = vmatpush1.msra.mxu0 %v3176
        %3193 = vmatprep.subr.mxu0 0.0
        %3194 = vmatpush1.msra.mxu0 %v3177
        %3195 = vmatprep.subr.mxu0 0.0
        %3196 = vmatpush1.msra.mxu0 %v3178
        %3197 = vmatprep.subr.mxu0 0.0
        %3198 = vmatpush1.msra.mxu0 0.0
        %3199 = vmatprep.subr.mxu0 0.0
        %3200 = vmatpush1.msra.mxu0 0.0
        %3201 = vmatprep.subr.mxu0 0.0
        %3202 = vmatpush1.msra.mxu0 0.0
        %3203 = vmatprep.subr.mxu0 0.0
        %3204 = vmatpush1.msra.mxu0 0.0
        %3205 = vmatprep.subr.mxu0 0.0
        %3206 = vmatpush1.msra.mxu0 0.0
        %3207 = vmatprep.subr.mxu0 0.0
        %3208 = vmatpush1.msra.mxu0 0.0
        %3209 = vmatprep.subr.mxu0 0.0
        %3210 = vmatpush1.msra.mxu0 0.0
        %3211 = vmatprep.subr.mxu0 0.0
        %3212 = vmatpush1.msra.mxu0 0.0
        %3213 = vmatprep.subr.mxu0 0.0
        %3214 = vmatpush1.msra.mxu0 0.0
        %3215 = vmatprep.subr.mxu0 0.0
        %3216 = vmatpush1.msra.mxu0 0.0
        %3217 = vmatprep.subr.mxu0 0.0
        %3218 = vmatpush1.msra.mxu0 0.0
        %3219 = vmatprep.subr.mxu0 0.0
        %3220 = vmatpush1.msra.mxu0 0.0
        %3221 = vmatprep.subr.mxu0 0.0
        %3222 = vmatpush1.msra.mxu0 0.0
        %3223 = vmatprep.subr.mxu0 0.0
        %3224 = vmatpush1.msra.mxu0 0.0
        %3225 = vmatprep.subr.mxu0 0.0
        %3226 = vmatpush1.msra.mxu0 0.0
        %3227 = vmatprep.subr.mxu0 0.0
        %3228 = vmatpush1.msra.mxu0 0.0
        %3229 = vmatprep.subr.mxu0 0.0
        %3230 = vmatpush1.msra.mxu0 0.0
        %3231 = vmatprep.subr.mxu0 0.0
        %3232 = vmatpush1.msra.mxu0 0.0
        %3233 = vmatprep.subr.mxu0 0.0
        %3234 = vmatpush1.msra.mxu0 0.0
        %3235 = vmatprep.subr.mxu0 0.0
        %3236 = vmatpush1.msra.mxu0 0.0
        %3237 = vmatprep.subr.mxu0 0.0
        %3238 = vmatpush1.msra.mxu0 0.0
        %3239 = vmatprep.subr.mxu0 0.0
        %3240 = vmatpush1.msra.mxu0 0.0
        %3241 = vmatprep.subr.mxu0 0.0
        %3242 = vmatpush1.msra.mxu0 0.0
        %3243 = vmatprep.subr.mxu0 0.0
        %3244 = vmatpush1.msra.mxu0 0.0
        %3245 = vmatprep.subr.mxu0 0.0
        %3246 = vmatpush1.msra.mxu0 0.0
        %3247 = vmatprep.subr.mxu0 0.0
        %3248 = vmatpush1.msra.mxu0 0.0
        %3249 = vmatprep.subr.mxu0 0.0
        %3250 = vmatpush1.msra.mxu0 0.0
        %3251 = vmatprep.subr.mxu0 0.0
        %3252 = vmatpush1.msra.mxu0 0.0
        %3253 = vmatprep.mubr.f32.mxu0 0.0
        %3254 = vmatmul.mubr.f32.gmra.mrb[0].mxu0 %v3187
        %v3255 = vpop.f32.mrb[0].mxu0
        %v3256 = vadd.f32 %v3184, %v3255
        %v3257 = vpop.f32.mrb[0].mxu0
        %3258 = vdwg.mxu0
        %v3259 = vadd.f32 %v2203, %v3256
        %v3260 = vsel %vm1171, %v3259, 0.0
        %3261 = vadd.xlane.f32.xlu0 %v3260
        %v3262 = vpop.xlane.xlu0 %3261
        %v3263 = vmul.f32 %v3262, 0.03125
        %v3264 = vmul.f32 %v3259, %v3259
        %v3265 = vsel %vm1171, %v3264, 0.0
        %3266 = vadd.xlane.f32.xlu0 %v3265
        %v3267 = vpop.xlane.xlu0 %3266
        %v3268 = vmul.f32 %v3267, 0.03125
        %v3269 = vmul.f32 %v3263, %v3263
        %v3270 = vsub.f32 %v3268, %v3269
        %v3271 = vsub.f32 %v3259, %v3263
        %v3272 = vadd.f32 %v3270, 1e-05
        %v3273 = vrsqrt.pop %v3272
        %v3274 = vmul.f32 %v3271, %v3273
        %v3275 = vld [vmem:[%s53] sm:$0x1]
        %v3277 = vlaneseq
        %v3278 = vshrl.u32 %v3277, 7
        %v3279 = vsub.s32 0, %v3278
        %v3280 = vrot.slane %v3275, %v3279
        %v3282 = vmul.f32 %v3274, %v3280
        %v3283 = vld [vmem:[%s55] sm:$0x1]
        %v3285 = vlaneseq
        %v3286 = vshrl.u32 %v3285, 7
        %v3287 = vsub.s32 0, %v3286
        %v3288 = vrot.slane %v3283, %v3287
        %v3290 = vadd.f32 %v3282, %v3288
        %v3291 = vld [vmem:[#allocation26] sm:$0xff]
        %v3292 = vld [vmem:[#allocation26 + $0x8] sm:$0xff]
        %v3293 = vld [vmem:[#allocation26 + $0x10] sm:$0xff]
        %v3294 = vld [vmem:[#allocation26 + $0x18] sm:$0xff]
        %v3295 = vld [vmem:[%s43] sm:$0x1]
        %v3297 = vlaneseq
        %v3298 = vshrl.u32 %v3297, 7
        %v3299 = vsub.s32 0, %v3298
        %v3300 = vrot.slane %v3295, %v3299
        %v3303 = vsel %vm1171, %v3290, 0
        %3305 = vmatprep.subr.mxu0 0.0
        %3306 = vmatpush1.msra.mxu0 %v3291
        %3307 = vmatprep.subr.mxu0 0.0
        %3308 = vmatpush1.msra.mxu0 %v3292
        %3309 = vmatprep.subr.mxu0 0.0
        %3310 = vmatpush1.msra.mxu0 %v3293
        %3311 = vmatprep.subr.mxu0 0.0
        %3312 = vmatpush1.msra.mxu0 %v3294
        %3313 = vmatprep.subr.mxu0 0.0
        %3314 = vmatpush1.msra.mxu0 0.0
        %3315 = vmatprep.subr.mxu0 0.0
        %3316 = vmatpush1.msra.mxu0 0.0
        %3317 = vmatprep.subr.mxu0 0.0
        %3318 = vmatpush1.msra.mxu0 0.0
        %3319 = vmatprep.subr.mxu0 0.0
        %3320 = vmatpush1.msra.mxu0 0.0
        %3321 = vmatprep.subr.mxu0 0.0
        %3322 = vmatpush1.msra.mxu0 0.0
        %3323 = vmatprep.subr.mxu0 0.0
        %3324 = vmatpush1.msra.mxu0 0.0
        %3325 = vmatprep.subr.mxu0 0.0
        %3326 = vmatpush1.msra.mxu0 0.0
        %3327 = vmatprep.subr.mxu0 0.0
        %3328 = vmatpush1.msra.mxu0 0.0
        %3329 = vmatprep.subr.mxu0 0.0
        %3330 = vmatpush1.msra.mxu0 0.0
        %3331 = vmatprep.subr.mxu0 0.0
        %3332 = vmatpush1.msra.mxu0 0.0
        %3333 = vmatprep.subr.mxu0 0.0
        %3334 = vmatpush1.msra.mxu0 0.0
        %3335 = vmatprep.subr.mxu0 0.0
        %3336 = vmatpush1.msra.mxu0 0.0
        %3337 = vmatprep.subr.mxu0 0.0
        %3338 = vmatpush1.msra.mxu0 0.0
        %3339 = vmatprep.subr.mxu0 0.0
        %3340 = vmatpush1.msra.mxu0 0.0
        %3341 = vmatprep.subr.mxu0 0.0
        %3342 = vmatpush1.msra.mxu0 0.0
        %3343 = vmatprep.subr.mxu0 0.0
        %3344 = vmatpush1.msra.mxu0 0.0
        %3345 = vmatprep.subr.mxu0 0.0
        %3346 = vmatpush1.msra.mxu0 0.0
        %3347 = vmatprep.subr.mxu0 0.0
        %3348 = vmatpush1.msra.mxu0 0.0
        %3349 = vmatprep.subr.mxu0 0.0
        %3350 = vmatpush1.msra.mxu0 0.0
        %3351 = vmatprep.subr.mxu0 0.0
        %3352 = vmatpush1.msra.mxu0 0.0
        %3353 = vmatprep.subr.mxu0 0.0
        %3354 = vmatpush1.msra.mxu0 0.0
        %3355 = vmatprep.subr.mxu0 0.0
        %3356 = vmatpush1.msra.mxu0 0.0
        %3357 = vmatprep.subr.mxu0 0.0
        %3358 = vmatpush1.msra.mxu0 0.0
        %3359 = vmatprep.subr.mxu0 0.0
        %3360 = vmatpush1.msra.mxu0 0.0
        %3361 = vmatprep.subr.mxu0 0.0
        %3362 = vmatpush1.msra.mxu0 0.0
        %3363 = vmatprep.subr.mxu0 0.0
        %3364 = vmatpush1.msra.mxu0 0.0
        %3365 = vmatprep.subr.mxu0 0.0
        %3366 = vmatpush1.msra.mxu0 0.0
        %3367 = vmatprep.subr.mxu0 0.0
        %3368 = vmatpush1.msra.mxu0 0.0
        %3369 = vmatprep.mubr.f32.mxu0 0.0
        %3370 = vmatmul.mubr.f32.gmra.mrb[0].mxu0 %v3303
        %v3371 = vpop.f32.mrb[0].mxu0
        %v3372 = vadd.f32 %v3300, %v3371
        %v3373 = vpop.f32.mrb[0].mxu0
        %3374 = vdwg.mxu0
        %v3375 = vmax.f32 %v3372, 0.0
        %v3376 = vld [vmem:[%s45] sm:$0xff]
        %v3377 = vld [vmem:[%s45 + $0x8] sm:$0xff]
        %v3378 = vld [vmem:[%s45 + $0x10] sm:$0xff]
        %v3379 = vld [vmem:[%s45 + $0x18] sm:$0xff]
        %v3380 = vld [vmem:[%s45 + $0x20] sm:$0xff]
        %v3381 = vld [vmem:[%s45 + $0x28] sm:$0xff]
        %v3382 = vld [vmem:[%s45 + $0x30] sm:$0xff]
        %v3383 = vld [vmem:[%s45 + $0x38] sm:$0xff]
        %v3384 = vld [vmem:[%s47] sm:$0x1]
        %v3386 = vlaneseq
        %v3387 = vshrl.u32 %v3386, 7
        %v3388 = vsub.s32 0, %v3387
        %v3389 = vrot.slane %v3384, %v3388
        %vm3391 = vcmask 523264
        %v3393 = vsel %vm3391, %v3375, 0
        %3395 = vmatprep.subr.mxu0 0.0
        %3396 = vmatpush1.msra.mxu0 %v3376
        %3397 = vmatprep.subr.mxu0 0.0
        %3398 = vmatpush1.msra.mxu0 %v3377
        %3399 = vmatprep.subr.mxu0 0.0
        %3400 = vmatpush1.msra.mxu0 %v3378
        %3401 = vmatprep.subr.mxu0 0.0
        %3402 = vmatpush1.msra.mxu0 %v3379
        %3403 = vmatprep.subr.mxu0 0.0
        %3404 = vmatpush1.msra.mxu0 %v3380
        %3405 = vmatprep.subr.mxu0 0.0
        %3406 = vmatpush1.msra.mxu0 %v3381
        %3407 = vmatprep.subr.mxu0 0.0
        %3408 = vmatpush1.msra.mxu0 %v3382
        %3409 = vmatprep.subr.mxu0 0.0
        %3410 = vmatpush1.msra.mxu0 %v3383
        %3411 = vmatprep.subr.mxu0 0.0
        %3412 = vmatpush1.msra.mxu0 0.0
        %3413 = vmatprep.subr.mxu0 0.0
        %3414 = vmatpush1.msra.mxu0 0.0
        %3415 = vmatprep.subr.mxu0 0.0
        %3416 = vmatpush1.msra.mxu0 0.0
        %3417 = vmatprep.subr.mxu0 0.0
        %3418 = vmatpush1.msra.mxu0 0.0
        %3419 = vmatprep.subr.mxu0 0.0
        %3420 = vmatpush1.msra.mxu0 0.0
        %3421 = vmatprep.subr.mxu0 0.0
        %3422 = vmatpush1.msra.mxu0 0.0
        %3423 = vmatprep.subr.mxu0 0.0
        %3424 = vmatpush1.msra.mxu0 0.0
        %3425 = vmatprep.subr.mxu0 0.0
        %3426 = vmatpush1.msra.mxu0 0.0
        %3427 = vmatprep.subr.mxu0 0.0
        %3428 = vmatpush1.msra.mxu0 0.0
        %3429 = vmatprep.subr.mxu0 0.0
        %3430 = vmatpush1.msra.mxu0 0.0
        %3431 = vmatprep.subr.mxu0 0.0
        %3432 = vmatpush1.msra.mxu0 0.0
        %3433 = vmatprep.subr.mxu0 0.0
        %3434 = vmatpush1.msra.mxu0 0.0
        %3435 = vmatprep.subr.mxu0 0.0
        %3436 = vmatpush1.msra.mxu0 0.0
        %3437 = vmatprep.subr.mxu0 0.0
        %3438 = vmatpush1.msra.mxu0 0.0
        %3439 = vmatprep.subr.mxu0 0.0
        %3440 = vmatpush1.msra.mxu0 0.0
        %3441 = vmatprep.subr.mxu0 0.0
        %3442 = vmatpush1.msra.mxu0 0.0
        %3443 = vmatprep.subr.mxu0 0.0
        %3444 = vmatpush1.msra.mxu0 0.0
        %3445 = vmatprep.subr.mxu0 0.0
        %3446 = vmatpush1.msra.mxu0 0.0
        %3447 = vmatprep.subr.mxu0 0.0
        %3448 = vmatpush1.msra.mxu0 0.0
        %3449 = vmatprep.subr.mxu0 0.0
        %3450 = vmatpush1.msra.mxu0 0.0
        %3451 = vmatprep.subr.mxu0 0.0
        %3452 = vmatpush1.msra.mxu0 0.0
        %3453 = vmatprep.subr.mxu0 0.0
        %3454 = vmatpush1.msra.mxu0 0.0
        %3455 = vmatprep.subr.mxu0 0.0
        %3456 = vmatpush1.msra.mxu0 0.0
        %3457 = vmatprep.subr.mxu0 0.0
        %3458 = vmatpush1.msra.mxu0 0.0
        %3459 = vmatprep.mubr.f32.mxu0 0.0
        %3460 = vmatmul.mubr.f32.gmra.mrb[0].mxu0 %v3393
        %v3461 = vpop.f32.mrb[0].mxu0
        %v3462 = vadd.f32 %v3389, %v3461
        %v3463 = vpop.f32.mrb[0].mxu0
        %3464 = vdwg.mxu0
        %v3465 = vadd.f32 %v3290, %v3462
        %v3466 = vsel %vm1171, %v3465, 0.0
        %3467 = vadd.xlane.f32.xlu0 %v3466
        %v3468 = vpop.xlane.xlu0 %3467
        %v3469 = vmul.f32 %v3468, 0.03125
        %v3470 = vmul.f32 %v3465, %v3465
        %v3471 = vsel %vm1171, %v3470, 0.0
        %3472 = vadd.xlane.f32.xlu0 %v3471
        %v3473 = vpop.xlane.xlu0 %3472
        %v3474 = vmul.f32 %v3473, 0.03125
        %v3475 = vmul.f32 %v3469, %v3469
        %v3476 = vsub.f32 %v3474, %v3475
        %v3477 = vsub.f32 %v3465, %v3469
        %v3478 = vadd.f32 %v3476, 1e-05
        %v3479 = vrsqrt.pop %v3478
        %v3480 = vmul.f32 %v3477, %v3479
        %v3481 = vld [vmem:[%s57] sm:$0x1]
        %v3483 = vlaneseq
        %v3484 = vshrl.u32 %v3483, 7
        %v3485 = vsub.s32 0, %v3484
        %v3486 = vrot.slane %v3481, %v3485
        %v3488 = vmul.f32 %v3480, %v3486
        %v3489 = vld [vmem:[%s59] sm:$0x1]
        %v3491 = vlaneseq
        %v3492 = vshrl.u32 %v3491, 7
        %v3493 = vsub.s32 0, %v3492
        %v3494 = vrot.slane %v3489, %v3493
        %v3496 = vadd.f32 %v3488, %v3494
        %3497 = vst.msk [vmem:[%s1147] sm:$0xff] %vm1171, %v3496
        %s3498 = sand.u32 %s733, 1
        %s3499 = scalar_lea.sflag [#allocation5], %s3498
        %s3500 = sand.u32 %s733, 1
        %s3501 = smul.addr %s3500, 8
        %s3502 = scalar_lea.vmem [#allocation27], %s3501
        // Predicated region
        $region201: #{tpu_custom_call.1} parent=139 // pred_check
          %p3503 = pneg %p743
        $region202: #{tpu_custom_call.1} parent=139 // pred_check_branch
          %3505 = sbr.rel (%p3503) target = $region204
        $region203: #{tpu_custom_call.1} parent=139 // pred_region
          %s3507 = ssub.s32 128, 128
          %3508 = vsyncadd %s3499, %s3507
          %s3509 = smul.addr %s85, 128
          %s3510 = scalar_lea.hbm %s61, %s3509
          %s3512 = sshll.u32 %s3502, 4
          %s3513 = int_to_ptr.vmem [resolvable:$true] %s3512
          %3515 = dma.vmem_to_hbm [thread:$0]  %s3513, 128, %s3510, %s3499
        $region204: #{tpu_custom_call.1} parent=139 // pred_fallthru
          _
      $region140: #{tpu_custom_call.1} parent=5 // pred_fallthru
        _
      %p3516 = scmp.le.s32.totalorder 2, %s80
      // Predicated region
      $region205: #{tpu_custom_call.1} parent=5 // pred_check
        %p3517 = pneg %p3516
      $region206: #{tpu_custom_call.1} parent=5 // pred_check_branch
        %3519 = sbr.rel (%p3517) target = $region208
      $region207: #{tpu_custom_call.1} parent=5 // pred_region
        %s3520 = ssub.s32 %s80, 2
        // Predicated region
        $region209: #{tpu_custom_call.1} parent=207 // pred_check
          %p3521 = pneg %p749
        $region210: #{tpu_custom_call.1} parent=207 // pred_check_branch
          %3523 = sbr.rel (%p3521) target = $region212
        $region211: #{tpu_custom_call.1} parent=207 // pred_region
          %s3524 = sand.u32 %s734, 1
          %s3525 = scalar_lea.sflag [#allocation5], %s3524
          %s3526 = sand.u32 %s734, 1
          %s3527 = smul.addr %s3526, 8
          %s3528 = scalar_lea.vmem [#allocation27], %s3527
          %3529 = dma.done %s3525, 128
        $region212: #{tpu_custom_call.1} parent=207 // pred_fallthru
          _
      $region208: #{tpu_custom_call.1} parent=5 // pred_fallthru
        _
    $region6: #{tpu_custom_call.1} parent=1 // loop_footer
      %s84 = sadd.s32 1, %s80
    $region7: #{tpu_custom_call.1} parent=1 // loop_footer_branch
      %79 = sbr.rel target = $region3
    $region8: #{tpu_custom_call.1} parent=1 // loop_exit
      _
    %3530 = vsyncpa [#allocation4], 1
    %s3531 = scalar_lea.sflag [#allocation4], 1
    %3532 = vsyncpa %s3531, 1
    %3533 = vsyncpa [#allocation7], 1
    %3534 = vsyncpa [#allocation10], 1
    %3535 = vsyncpa [#allocation13], 1
    %3536 = vsyncpa [#allocation16], 1
    %3537 = vsyncpa [#allocation19], 1
    %3538 = vsyncpa [#allocation22], 1
    %3539 = vsyncpa [#allocation25], 1
    %3540 = vsyncpa [#allocation5], 1
    %s3541 = scalar_lea.sflag [#allocation5], 1
    %3542 = vsyncpa %s3541, 1

</llo_original>
